<compile_context>
chip_gen: v6e
topology: v6e:2x2x1
jax: 0.10.0
libtpu: 0.0.40
codegen_flags: <defaults>
</compile_context>

<pallas_src>
import functools
import math

import jax
import jax.numpy as jnp
from jax import lax
from jax.experimental import pallas as pl
from jax.experimental.pallas import tpu as pltpu


# --------------------------------------------------------------------------
# Pallas kernel: fused  o = relu(x @ w + b)  with the whole K,N panel in VMEM
# --------------------------------------------------------------------------

def matmul_bias_relu_kernel(x_ref, w_ref, b_ref, o_ref, *, relu):
    x = x_ref[...].astype(jnp.bfloat16)                 # cast dot operand in-kernel
    y = jnp.dot(x, w_ref[...], preferred_element_type=jnp.float32)
    y = y + b_ref[...]                                  # (tm, Np) + (1, Np), f32
    if relu:
        y = jnp.maximum(y, 0.0)
    o_ref[...] = y.astype(o_ref.dtype)


def _round_up(x, m):
    return (x + m - 1) // m * m


def _cdiv(a, b):
    return -(-a // b)


def _choose_m_tiling(M, max_m_block):
    """Rows-per-block tiling. Returns (grid_m, tm, Mp)."""
    grid_m = _cdiv(M, max_m_block)
    if grid_m == 1 and M >= 16:
        grid_m = 2                       # give v7x's second TensorCore work
    if grid_m == 1:
        return 1, M, M                   # single full-M block (exempt from 8-alignment)
    tm = _round_up(_cdiv(M, grid_m), 8)  # sublane-aligned rows per block
    grid_m = _cdiv(M, tm)
    return grid_m, tm, tm * grid_m


def matmul_bias(x, w_panel, b_panel, n_valid, relu=True, max_m_block=256):
    """relu(x @ w + b) with pre-padded panels.

    x: (M, K) f32; w_panel: (K, Np) bf16 (Np % 128 == 0, zero-padded columns);
    b_panel: (1, Np) f32. Single K step (weight fully resident per grid step),
    grid over M only ("parallel"). Returns (M, n_valid) f32.
    """
    M, K = x.shape
    K2, Np = w_panel.shape
    assert K == K2 and Np % 128 == 0 and b_panel.shape == (1, Np)

    grid_m, tm, Mp = _choose_m_tiling(M, max_m_block)
    if Mp != M:
        x = jnp.pad(x, ((0, Mp - M), (0, 0)))           # small row pad only

    out = pl.pallas_call(
        functools.partial(matmul_bias_relu_kernel, relu=relu),
        out_shape=jax.ShapeDtypeStruct((Mp, Np), jnp.float32),
        grid=(grid_m,),
        in_specs=[
            pl.BlockSpec((tm, K), lambda i: (i, 0)),    # x rows, full K (no K pad)
            pl.BlockSpec((K, Np), lambda i: (0, 0)),    # whole bf16 weight, resident
            pl.BlockSpec((1, Np), lambda i: (0, 0)),    # bias, resident
        ],
        out_specs=pl.BlockSpec((tm, Np), lambda i: (i, 0)),
        compiler_params=pltpu.CompilerParams(
            dimension_semantics=("parallel",)),
    )(x, w_panel, b_panel)
    return out[:M, :n_valid]


# --------------------------------------------------------------------------
# NHWC conv glue (XLA im2col + fused Pallas matmul)
# --------------------------------------------------------------------------

def _im2col_nhwc(x, kh, kw, stride, Ho, Wo):
    """x: (B,H,W,C) -> (B*Ho*Wo, kh*kw*C), feature ordering (kh, kw, C)."""
    B, H, W, C = x.shape
    patches = []
    for i in range(kh):
        for j in range(kw):
            patches.append(
                x[:,
                  i: i + stride * (Ho - 1) + 1: stride,
                  j: j + stride * (Wo - 1) + 1: stride,
                  :])                                   # (B,Ho,Wo,C)
    cols = jnp.stack(patches, axis=3)                   # (B,Ho,Wo,kh*kw,C)
    return cols.reshape(B * Ho * Wo, kh * kw * C)


def conv2d_pallas(x_nhwc, w_panel, b_panel, cout, kh, kw, stride):
    """x: (B,H,W,C) -> (B,Ho,Wo,cout), VALID conv + bias + ReLU."""
    B, H, W, C = x_nhwc.shape
    Ho = (H - kh) // stride + 1
    Wo = (W - kw) // stride + 1
    cols = _im2col_nhwc(x_nhwc, kh, kw, stride, Ho, Wo)
    y = matmul_bias(cols, w_panel, b_panel, cout, relu=True)   # (B*Ho*Wo, cout)
    return y.reshape(B, Ho, Wo, cout)


# --------------------------------------------------------------------------
# DeepMind forward (Pallas path)
# --------------------------------------------------------------------------

def deepmind_forward(pp, x):
    """x: (B,4,84,84) NCHW (PyTorch convention) -> (B,512)."""
    x = jnp.transpose(x, (0, 2, 3, 1))                                 # NHWC once
    x = conv2d_pallas(x, pp["conv1_wm"], pp["conv1_b"], 32, 8, 8, 4)   # (B,20,20,32)
    x = conv2d_pallas(x, pp["conv2_wm"], pp["conv2_b"], 64, 4, 4, 2)   # (B, 9, 9,64)
    x = conv2d_pallas(x, pp["conv3_wm"], pp["conv3_b"], 32, 3, 3, 1)   # (B, 7, 7,32)
    B = x.shape[0]
    # fc1 weight rows were permuted offline to (H,W,C) order -> flatten NHWC
    # directly, no runtime transpose.
    x = x.reshape(B, -1)                                               # (B, 7*7*32)
    return matmul_bias(x, pp["fc1_wm"], pp["fc1_b"], 512, relu=True)   # (B,512)


# --------------------------------------------------------------------------
# Parameters (PyTorch layout) + one-time prep to matmul layout (outside jit)
# --------------------------------------------------------------------------

def _orthogonal(key, shape, gain):
    """Orthogonal init (rows of the (shape[0], prod(rest)) flattening)."""
    rows = shape[0]
    cols = math.prod(shape[1:])
    n, m = max(rows, cols), min(rows, cols)
    a = jax.random.normal(key, (n, m), jnp.float32)
    q, r = jnp.linalg.qr(a)
    q = q * jnp.sign(jnp.diagonal(r))
    if rows < cols:
        q = q.T
    return (gain * q[:rows, :cols]).reshape(shape)


def init_params(key):
    hidden = 32 * 7 * 7
    gain = math.sqrt(2.0)                                # relu gain
    ks = jax.random.split(key, 4)
    return {
        "conv1_w": _orthogonal(ks[0], (32, 4, 8, 8), gain),
        "conv1_b": jnp.zeros((32,), jnp.float32),
        "conv2_w": _orthogonal(ks[1], (64, 32, 4, 4), gain),
        "conv2_b": jnp.zeros((64,), jnp.float32),
        "conv3_w": _orthogonal(ks[2], (32, 64, 3, 3), gain),
        "conv3_b": jnp.zeros((32,), jnp.float32),
        "fc1_w": _orthogonal(ks[3], (512, hidden), gain),
        "fc1_b": jnp.zeros((512,), jnp.float32),
    }


def prepare_params(p, compute_dtype=jnp.bfloat16):
    """One-time prep (outside jit): matmul layout, N-padding to 128, bf16 cast,
    bias panels, and fc1 row permutation to NHWC flatten order."""
    def conv_panel(w):
        cout, cin, kh, kw = w.shape
        wm = jnp.transpose(w, (2, 3, 1, 0)).reshape(kh * kw * cin, cout)
        np_ = _round_up(cout, 128)
        return jnp.pad(wm, ((0, 0), (0, np_ - cout))).astype(compute_dtype)

    def bias_panel(b):
        np_ = _round_up(b.shape[0], 128)
        return jnp.pad(b, (0, np_ - b.shape[0])).reshape(1, np_).astype(jnp.float32)

    # fc1: rows go from PyTorch's (C,H,W) flatten order to NHWC (H,W,C) order.
    fc1 = p["fc1_w"].reshape(512, 32, 7, 7)                       # (out, C, H, W)
    fc1 = jnp.transpose(fc1, (2, 3, 1, 0)).reshape(7 * 7 * 32, 512)

    return {
        "conv1_wm": conv_panel(p["conv1_w"]), "conv1_b": bias_panel(p["conv1_b"]),
        "conv2_wm": conv_panel(p["conv2_w"]), "conv2_b": bias_panel(p["conv2_b"]),
        "conv3_wm": conv_panel(p["conv3_w"]), "conv3_b": bias_panel(p["conv3_b"]),
        "fc1_wm": fc1.astype(compute_dtype),  "fc1_b": bias_panel(p["fc1_b"]),
    }


# --------------------------------------------------------------------------
# Pure-JAX reference (for correctness check)
# --------------------------------------------------------------------------

def ref_forward(p, x):
    def conv(x, w, b, s):
        y = lax.conv_general_dilated(x, w, (s, s), "VALID",
                                     dimension_numbers=("NCHW", "OIHW", "NCHW"))
        return jax.nn.relu(y + b[None, :, None, None])

    x = conv(x, p["conv1_w"], p["conv1_b"], 4)
    x = conv(x, p["conv2_w"], p["conv2_b"], 2)
    x = conv(x, p["conv3_w"], p["conv3_b"], 1)
    B = x.shape[0]
    x = x.reshape(B, -1)
    return jax.nn.relu(x @ p["fc1_w"].T + p["fc1_b"])


# --------------------------------------------------------------------------
# Main
# --------------------------------------------------------------------------

if __name__ == "__main__":
    key = jax.random.PRNGKey(0)
    k_param, k_obs = jax.random.split(key)

    BATCH = 2
    # hidden_units = 32*7*7 in the module implies 84x84 inputs.
    obs = jax.random.normal(k_obs, (BATCH, 4, 84, 84), jnp.float32)

    raw_params = init_params(k_param)
    prepped = prepare_params(raw_params)

    fwd = jax.jit(deepmind_forward)
    out = jax.block_until_ready(fwd(prepped, obs))
    assert out.shape == (BATCH, 512), out.shape

    ref = jax.block_until_ready(ref_forward(raw_params, obs))
    rel_err = float(jnp.max(jnp.abs(out - ref)) / (jnp.max(jnp.abs(ref)) + 1e-6))
    # bf16 MXU operands with f32 accumulation -> loose tolerance vs f32 reference.
    assert rel_err < 5e-2, f"mismatch vs reference: rel_err={rel_err}"
    assert bool(jnp.all(jnp.isfinite(out)))

    print("KERNEL_OK")
</pallas_src>

<mosaic_0001>
module attributes {stable_mosaic.version = 11 : i64} {
  func.func @matmul_bias_relu_kernel(%arg0: i32, %arg1: memref<200x256xf32, #tpu.memory_space<vmem>>, %arg2: memref<256x128xbf16, #tpu.memory_space<vmem>>, %arg3: memref<1x128xf32, #tpu.memory_space<vmem>>, %arg4: memref<200x128xf32, #tpu.memory_space<vmem>>) attributes {dimension_semantics = [#tpu.dimension_semantics<parallel>], iteration_bounds = array<i64: 4>, scalar_prefetch = 0 : i64, scratch_operands = 0 : i64, tpu.core_type = #tpu.core_type<tc>, window_params = [{transform_indices = @transform_0, window_bounds = array<i64: 200, 256>}, {pipeline_mode = #tpu.pipeline_mode<synchronous>, transform_indices = @transform_1, window_bounds = array<i64: 256, 128>}, {pipeline_mode = #tpu.pipeline_mode<synchronous>, transform_indices = @transform_2, window_bounds = array<i64: 1, 128>}, {transform_indices = @transform_3, window_bounds = array<i64: 200, 128>}]} {
    %c0 = arith.constant 0 : index
    %c0_0 = arith.constant 0 : index
    %0 = vector.load %arg1[%c0, %c0_0] : memref<200x256xf32, #tpu.memory_space<vmem>>, vector<200x256xf32>
    %1 = arith.truncf %0 : vector<200x256xf32> to vector<200x256xbf16>
    %c0_1 = arith.constant 0 : index
    %c0_2 = arith.constant 0 : index
    %2 = vector.load %arg2[%c0_1, %c0_2] : memref<256x128xbf16, #tpu.memory_space<vmem>>, vector<256x128xbf16>
    %cst = arith.constant dense<0.000000e+00> : vector<200x128xf32>
    %3 = tpu.matmul %1, %2, %cst {dimension_numbers = #tpu.dot_dimension_numbers<[1], [0], [0], [1], [0, 0, 1, 1], [], []>} : vector<200x256xbf16>, vector<256x128xbf16>, vector<200x128xf32> -> vector<200x128xf32>
    %c0_3 = arith.constant 0 : index
    %c0_4 = arith.constant 0 : index
    %4 = vector.load %arg3[%c0_3, %c0_4] : memref<1x128xf32, #tpu.memory_space<vmem>>, vector<1x128xf32>
    %5 = vector.broadcast %4 : vector<1x128xf32> to vector<200x128xf32>
    %6 = arith.addf %3, %5 : vector<200x128xf32>
    %cst_5 = arith.constant 0.000000e+00 : f32
    %7 = vector.broadcast %cst_5 : f32 to vector<200x128xf32>
    %8 = arith.maximumf %6, %7 : vector<200x128xf32>
    %c0_6 = arith.constant 0 : index
    %c0_7 = arith.constant 0 : index
    %9 = vector.load %arg4[%c0_6, %c0_7] : memref<200x128xf32, #tpu.memory_space<vmem>>, vector<200x128xf32>
    tpu.vector_store %arg4[%c0_6, %c0_7], %8 {strides = array<i32>} : memref<200x128xf32, #tpu.memory_space<vmem>>, vector<200x128xf32>,
    return
  }
  func.func @transform_0(%arg0: i32) -> (i32, i32) {
    %c0_i32 = arith.constant 0 : i32
    %c0_i32_0 = arith.constant 0 : i32
    return %arg0, %c0_i32 : i32, i32
  }
  func.func @transform_1(%arg0: i32) -> (i32, i32) {
    %c0_i32 = arith.constant 0 : i32
    %c0_i32_0 = arith.constant 0 : i32
    %c0_i32_1 = arith.constant 0 : i32
    return %c0_i32, %c0_i32_0 : i32, i32
  }
  func.func @transform_2(%arg0: i32) -> (i32, i32) {
    %c0_i32 = arith.constant 0 : i32
    %c0_i32_0 = arith.constant 0 : i32
    %c0_i32_1 = arith.constant 0 : i32
    return %c0_i32, %c0_i32_0 : i32, i32
  }
  func.func @transform_3(%arg0: i32) -> (i32, i32) {
    %c0_i32 = arith.constant 0 : i32
    %c0_i32_0 = arith.constant 0 : i32
    return %arg0, %c0_i32 : i32, i32
  }
}

module attributes {stable_mosaic.version = 11 : i64} {
  func.func @matmul_bias_relu_kernel(%arg0: i32, %arg1: memref<88x512xf32, #tpu.memory_space<vmem>>, %arg2: memref<512x128xbf16, #tpu.memory_space<vmem>>, %arg3: memref<1x128xf32, #tpu.memory_space<vmem>>, %arg4: memref<88x128xf32, #tpu.memory_space<vmem>>) attributes {dimension_semantics = [#tpu.dimension_semantics<parallel>], iteration_bounds = array<i64: 2>, scalar_prefetch = 0 : i64, scratch_operands = 0 : i64, tpu.core_type = #tpu.core_type<tc>, window_params = [{transform_indices = @transform_0, window_bounds = array<i64: 88, 512>}, {pipeline_mode = #tpu.pipeline_mode<synchronous>, transform_indices = @transform_1, window_bounds = array<i64: 512, 128>}, {pipeline_mode = #tpu.pipeline_mode<synchronous>, transform_indices = @transform_2, window_bounds = array<i64: 1, 128>}, {transform_indices = @transform_3, window_bounds = array<i64: 88, 128>}]} {
    %c0 = arith.constant 0 : index
    %c0_0 = arith.constant 0 : index
    %0 = vector.load %arg1[%c0, %c0_0] : memref<88x512xf32, #tpu.memory_space<vmem>>, vector<88x512xf32>
    %1 = arith.truncf %0 : vector<88x512xf32> to vector<88x512xbf16>
    %c0_1 = arith.constant 0 : index
    %c0_2 = arith.constant 0 : index
    %2 = vector.load %arg2[%c0_1, %c0_2] : memref<512x128xbf16, #tpu.memory_space<vmem>>, vector<512x128xbf16>
    %cst = arith.constant dense<0.000000e+00> : vector<88x128xf32>
    %3 = tpu.matmul %1, %2, %cst {dimension_numbers = #tpu.dot_dimension_numbers<[1], [0], [0], [1], [0, 0, 1, 1], [], []>} : vector<88x512xbf16>, vector<512x128xbf16>, vector<88x128xf32> -> vector<88x128xf32>
    %c0_3 = arith.constant 0 : index
    %c0_4 = arith.constant 0 : index
    %4 = vector.load %arg3[%c0_3, %c0_4] : memref<1x128xf32, #tpu.memory_space<vmem>>, vector<1x128xf32>
    %5 = vector.broadcast %4 : vector<1x128xf32> to vector<88x128xf32>
    %6 = arith.addf %3, %5 : vector<88x128xf32>
    %cst_5 = arith.constant 0.000000e+00 : f32
    %7 = vector.broadcast %cst_5 : f32 to vector<88x128xf32>
    %8 = arith.maximumf %6, %7 : vector<88x128xf32>
    %c0_6 = arith.constant 0 : index
    %c0_7 = arith.constant 0 : index
    %9 = vector.load %arg4[%c0_6, %c0_7] : memref<88x128xf32, #tpu.memory_space<vmem>>, vector<88x128xf32>
    tpu.vector_store %arg4[%c0_6, %c0_7], %8 {strides = array<i32>} : memref<88x128xf32, #tpu.memory_space<vmem>>, vector<88x128xf32>,
    return
  }
  func.func @transform_0(%arg0: i32) -> (i32, i32) {
    %c0_i32 = arith.constant 0 : i32
    %c0_i32_0 = arith.constant 0 : i32
    return %arg0, %c0_i32 : i32, i32
  }
  func.func @transform_1(%arg0: i32) -> (i32, i32) {
    %c0_i32 = arith.constant 0 : i32
    %c0_i32_0 = arith.constant 0 : i32
    %c0_i32_1 = arith.constant 0 : i32
    return %c0_i32, %c0_i32_0 : i32, i32
  }
  func.func @transform_2(%arg0: i32) -> (i32, i32) {
    %c0_i32 = arith.constant 0 : i32
    %c0_i32_0 = arith.constant 0 : i32
    %c0_i32_1 = arith.constant 0 : i32
    return %c0_i32, %c0_i32_0 : i32, i32
  }
  func.func @transform_3(%arg0: i32) -> (i32, i32) {
    %c0_i32 = arith.constant 0 : i32
    %c0_i32_0 = arith.constant 0 : i32
    return %arg0, %c0_i32 : i32, i32
  }
}

module attributes {stable_mosaic.version = 11 : i64} {
  func.func @matmul_bias_relu_kernel(%arg0: i32, %arg1: memref<56x576xf32, #tpu.memory_space<vmem>>, %arg2: memref<576x128xbf16, #tpu.memory_space<vmem>>, %arg3: memref<1x128xf32, #tpu.memory_space<vmem>>, %arg4: memref<56x128xf32, #tpu.memory_space<vmem>>) attributes {dimension_semantics = [#tpu.dimension_semantics<parallel>], iteration_bounds = array<i64: 2>, scalar_prefetch = 0 : i64, scratch_operands = 0 : i64, tpu.core_type = #tpu.core_type<tc>, window_params = [{transform_indices = @transform_0, window_bounds = array<i64: 56, 576>}, {pipeline_mode = #tpu.pipeline_mode<synchronous>, transform_indices = @transform_1, window_bounds = array<i64: 576, 128>}, {pipeline_mode = #tpu.pipeline_mode<synchronous>, transform_indices = @transform_2, window_bounds = array<i64: 1, 128>}, {transform_indices = @transform_3, window_bounds = array<i64: 56, 128>}]} {
    %c0 = arith.constant 0 : index
    %c0_0 = arith.constant 0 : index
    %0 = vector.load %arg1[%c0, %c0_0] : memref<56x576xf32, #tpu.memory_space<vmem>>, vector<56x576xf32>
    %1 = arith.truncf %0 : vector<56x576xf32> to vector<56x576xbf16>
    %c0_1 = arith.constant 0 : index
    %c0_2 = arith.constant 0 : index
    %2 = vector.load %arg2[%c0_1, %c0_2] : memref<576x128xbf16, #tpu.memory_space<vmem>>, vector<576x128xbf16>
    %cst = arith.constant dense<0.000000e+00> : vector<56x128xf32>
    %3 = tpu.matmul %1, %2, %cst {dimension_numbers = #tpu.dot_dimension_numbers<[1], [0], [0], [1], [0, 0, 1, 1], [], []>} : vector<56x576xbf16>, vector<576x128xbf16>, vector<56x128xf32> -> vector<56x128xf32>
    %c0_3 = arith.constant 0 : index
    %c0_4 = arith.constant 0 : index
    %4 = vector.load %arg3[%c0_3, %c0_4] : memref<1x128xf32, #tpu.memory_space<vmem>>, vector<1x128xf32>
    %5 = vector.broadcast %4 : vector<1x128xf32> to vector<56x128xf32>
    %6 = arith.addf %3, %5 : vector<56x128xf32>
    %cst_5 = arith.constant 0.000000e+00 : f32
    %7 = vector.broadcast %cst_5 : f32 to vector<56x128xf32>
    %8 = arith.maximumf %6, %7 : vector<56x128xf32>
    %c0_6 = arith.constant 0 : index
    %c0_7 = arith.constant 0 : index
    %9 = vector.load %arg4[%c0_6, %c0_7] : memref<56x128xf32, #tpu.memory_space<vmem>>, vector<56x128xf32>
    tpu.vector_store %arg4[%c0_6, %c0_7], %8 {strides = array<i32>} : memref<56x128xf32, #tpu.memory_space<vmem>>, vector<56x128xf32>,
    return
  }
  func.func @transform_0(%arg0: i32) -> (i32, i32) {
    %c0_i32 = arith.constant 0 : i32
    %c0_i32_0 = arith.constant 0 : i32
    return %arg0, %c0_i32 : i32, i32
  }
  func.func @transform_1(%arg0: i32) -> (i32, i32) {
    %c0_i32 = arith.constant 0 : i32
    %c0_i32_0 = arith.constant 0 : i32
    %c0_i32_1 = arith.constant 0 : i32
    return %c0_i32, %c0_i32_0 : i32, i32
  }
  func.func @transform_2(%arg0: i32) -> (i32, i32) {
    %c0_i32 = arith.constant 0 : i32
    %c0_i32_0 = arith.constant 0 : i32
    %c0_i32_1 = arith.constant 0 : i32
    return %c0_i32, %c0_i32_0 : i32, i32
  }
  func.func @transform_3(%arg0: i32) -> (i32, i32) {
    %c0_i32 = arith.constant 0 : i32
    %c0_i32_0 = arith.constant 0 : i32
    return %arg0, %c0_i32 : i32, i32
  }
}

module attributes {stable_mosaic.version = 11 : i64} {
  func.func @matmul_bias_relu_kernel(%arg0: i32, %arg1: memref<2x1568xf32, #tpu.memory_space<vmem>>, %arg2: memref<1568x512xbf16, #tpu.memory_space<vmem>>, %arg3: memref<1x512xf32, #tpu.memory_space<vmem>>, %arg4: memref<2x512xf32, #tpu.memory_space<vmem>>) attributes {dimension_semantics = [#tpu.dimension_semantics<parallel>], iteration_bounds = array<i64: 1>, scalar_prefetch = 0 : i64, scratch_operands = 0 : i64, tpu.core_type = #tpu.core_type<tc>, window_params = [{transform_indices = @transform_0, window_bounds = array<i64: 2, 1568>}, {pipeline_mode = #tpu.pipeline_mode<synchronous>, transform_indices = @transform_1, window_bounds = array<i64: 1568, 512>}, {pipeline_mode = #tpu.pipeline_mode<synchronous>, transform_indices = @transform_2, window_bounds = array<i64: 1, 512>}, {transform_indices = @transform_3, window_bounds = array<i64: 2, 512>}]} {
    %c0 = arith.constant 0 : index
    %c0_0 = arith.constant 0 : index
    %0 = vector.load %arg1[%c0, %c0_0] : memref<2x1568xf32, #tpu.memory_space<vmem>>, vector<2x1568xf32>
    %1 = arith.truncf %0 : vector<2x1568xf32> to vector<2x1568xbf16>
    %c0_1 = arith.constant 0 : index
    %c0_2 = arith.constant 0 : index
    %2 = vector.load %arg2[%c0_1, %c0_2] : memref<1568x512xbf16, #tpu.memory_space<vmem>>, vector<1568x512xbf16>
    %cst = arith.constant dense<0.000000e+00> : vector<2x512xf32>
    %3 = tpu.matmul %1, %2, %cst {dimension_numbers = #tpu.dot_dimension_numbers<[1], [0], [0], [1], [0, 0, 1, 1], [], []>} : vector<2x1568xbf16>, vector<1568x512xbf16>, vector<2x512xf32> -> vector<2x512xf32>
    %c0_3 = arith.constant 0 : index
    %c0_4 = arith.constant 0 : index
    %4 = vector.load %arg3[%c0_3, %c0_4] : memref<1x512xf32, #tpu.memory_space<vmem>>, vector<1x512xf32>
    %5 = vector.broadcast %4 : vector<1x512xf32> to vector<2x512xf32>
    %6 = arith.addf %3, %5 : vector<2x512xf32>
    %cst_5 = arith.constant 0.000000e+00 : f32
    %7 = vector.broadcast %cst_5 : f32 to vector<2x512xf32>
    %8 = arith.maximumf %6, %7 : vector<2x512xf32>
    %c0_6 = arith.constant 0 : index
    %c0_7 = arith.constant 0 : index
    %9 = vector.load %arg4[%c0_6, %c0_7] : memref<2x512xf32, #tpu.memory_space<vmem>>, vector<2x512xf32>
    tpu.vector_store %arg4[%c0_6, %c0_7], %8 {strides = array<i32>} : memref<2x512xf32, #tpu.memory_space<vmem>>, vector<2x512xf32>,
    return
  }
  func.func @transform_0(%arg0: i32) -> (i32, i32) {
    %c0_i32 = arith.constant 0 : i32
    %c0_i32_0 = arith.constant 0 : i32
    return %arg0, %c0_i32 : i32, i32
  }
  func.func @transform_1(%arg0: i32) -> (i32, i32) {
    %c0_i32 = arith.constant 0 : i32
    %c0_i32_0 = arith.constant 0 : i32
    %c0_i32_1 = arith.constant 0 : i32
    return %c0_i32, %c0_i32_0 : i32, i32
  }
  func.func @transform_2(%arg0: i32) -> (i32, i32) {
    %c0_i32 = arith.constant 0 : i32
    %c0_i32_0 = arith.constant 0 : i32
    %c0_i32_1 = arith.constant 0 : i32
    return %c0_i32, %c0_i32_0 : i32, i32
  }
  func.func @transform_3(%arg0: i32) -> (i32, i32) {
    %c0_i32 = arith.constant 0 : i32
    %c0_i32_0 = arith.constant 0 : i32
    return %arg0, %c0_i32 : i32, i32
  }
}

</mosaic_0001>

<llo_original>
// kernel: deepmind_forward.4
$region0: #{deepmind_forward.4}
  #allocation0 [shape = 'u32[]', space=smem, size = 0x4, offset = 0x4, fixed_abs, tag = 'smem constant byte address 0x4 - core index']
  #allocation1 [shape = 'u32[144,128]{1,0:T(1,128)}', space=vmem, size = 0x12000, scoped, tag = 'internal scratch']
  %s0 = inlined_call_operand.vmem [shape: f32[800,256], index: 0, kind: input, shape index: {}]
  %s1 = inlined_call_operand.vmem [shape: bf16[256,128], index: 1, kind: input, shape index: {}]
  %s2 = inlined_call_operand.vmem [shape: f32[1,128], index: 2, kind: input, shape index: {}]
  %s3 = inlined_call_operand.vmem [shape: f32[800,128], index: 3, kind: output, shape index: {}]
  %s4 = sld [smem:[#allocation0]]
  $region45: #{deepmind_forward.4} parent=0
    _
  %s6 = ssub.s32 1, %s4
  %s7 = scalar_select 0, %s6, %s4
  loop: start=0, step=1, limit=6
  $region2: #{deepmind_forward.4} parent=0 // loop_pre_header
    _
  $region3: #{deepmind_forward.4} parent=0 // loop_header
    %s9 = sphi 0, %s13
    %p10 = scmp.ge.s32.totalorder %s9, 6
    %s19 = sphi 0, %s21
    %s22 = sphi 0, %s19
    %s23 = sphi 0, %s22
    %s39 = sphi 0, %s23
    %s43 = sphi 0, %s43
    %s45 = sphi 0, %s43
    %s46 = sphi 0, %s45
    %s60 = sphi 0, %s46
    %s64 = sphi 0, %s64
    %s66 = sphi 0, %s64
    %s67 = sphi 0, %s66
    %s81 = sphi 0, %s67
    %s87 = sphi 0, %s89
    %s90 = sphi 0, %s87
    %s91 = sphi 0, %s90
    %s107 = sphi 0, %s91
  $region4: #{deepmind_forward.4} parent=0 // loop_header_branch
    %12 = sbr.rel (%p10) target = $region8
  $region5: #{deepmind_forward.4} parent=0 // loop_body
    %s14 = ssub.s32 %s9, 1
    %s15 = ssub.s32 %s9, 2
    %s16 = sadd.s32 %s9, 1
    %s17 = ssub.s32 %s9, %s16
    %p18 = scmp.eq.s32.totalorder %s17, 0
    %s20 = sadd.s32 %s19, 1
    %s21 = scalar_select %p18, %s19, %s20
    %p24 = pneg %p18
    %p25 = scmp.eq.s32.totalorder %s9, 3
    %p26 = por %p24, %p25
    %p27 = scmp.ne.s32.totalorder %s19, %s22
    %p28 = scmp.eq.s32.totalorder %s9, 0
    %p29 = por %p27, %p28
    %p30 = scmp.ne.s32.totalorder %s19, %s22
    %p31 = scmp.eq.s32.totalorder %s14, 3
    %p32 = por %p30, %p31
    %p33 = scmp.ne.s32.totalorder %s22, %s23
    %p34 = scmp.eq.s32.totalorder %s14, 0
    %p35 = por %p33, %p34
    %p36 = scmp.ne.s32.totalorder %s22, %s23
    %p37 = scmp.eq.s32.totalorder %s15, 3
    %p38 = por %p36, %p37
    %p40 = scmp.ne.s32.totalorder %s23, %s39
    %p41 = scmp.eq.s32.totalorder %s15, 0
    %p42 = por %p40, %p41
    %s44 = sadd.s32 %s43, 1
    %p47 = scmp.eq.s32.totalorder %s9, 3
    %p48 = scmp.ne.s32.totalorder %s43, %s45
    %p49 = scmp.eq.s32.totalorder %s9, 0
    %p50 = por %p48, %p49
    %p51 = scmp.ne.s32.totalorder %s43, %s45
    %p52 = scmp.eq.s32.totalorder %s14, 3
    %p53 = por %p51, %p52
    %p54 = scmp.ne.s32.totalorder %s45, %s46
    %p55 = scmp.eq.s32.totalorder %s14, 0
    %p56 = por %p54, %p55
    %p57 = scmp.ne.s32.totalorder %s45, %s46
    %p58 = scmp.eq.s32.totalorder %s15, 3
    %p59 = por %p57, %p58
    %p61 = scmp.ne.s32.totalorder %s46, %s60
    %p62 = scmp.eq.s32.totalorder %s15, 0
    %p63 = por %p61, %p62
    %s65 = sadd.s32 %s64, 1
    %p68 = scmp.eq.s32.totalorder %s9, 3
    %p69 = scmp.ne.s32.totalorder %s64, %s66
    %p70 = scmp.eq.s32.totalorder %s9, 0
    %p71 = por %p69, %p70
    %p72 = scmp.ne.s32.totalorder %s64, %s66
    %p73 = scmp.eq.s32.totalorder %s14, 3
    %p74 = por %p72, %p73
    %p75 = scmp.ne.s32.totalorder %s66, %s67
    %p76 = scmp.eq.s32.totalorder %s14, 0
    %p77 = por %p75, %p76
    %p78 = scmp.ne.s32.totalorder %s66, %s67
    %p79 = scmp.eq.s32.totalorder %s15, 3
    %p80 = por %p78, %p79
    %p82 = scmp.ne.s32.totalorder %s67, %s81
    %p83 = scmp.eq.s32.totalorder %s15, 0
    %p84 = por %p82, %p83
    %s85 = ssub.s32 %s9, %s16
    %p86 = scmp.eq.s32.totalorder %s85, 0
    %s88 = sadd.s32 %s87, 1
    %s89 = scalar_select %p86, %s87, %s88
    %p92 = pneg %p86
    %p93 = scmp.eq.s32.totalorder %s9, 3
    %p94 = por %p92, %p93
    %p95 = scmp.ne.s32.totalorder %s87, %s90
    %p96 = scmp.eq.s32.totalorder %s9, 0
    %p97 = por %p95, %p96
    %p98 = scmp.ne.s32.totalorder %s87, %s90
    %p99 = scmp.eq.s32.totalorder %s14, 3
    %p100 = por %p98, %p99
    %p101 = scmp.ne.s32.totalorder %s90, %s91
    %p102 = scmp.eq.s32.totalorder %s14, 0
    %p103 = por %p101, %p102
    %p104 = scmp.ne.s32.totalorder %s90, %s91
    %p105 = scmp.eq.s32.totalorder %s15, 3
    %p106 = por %p104, %p105
    %p108 = scmp.ne.s32.totalorder %s91, %s107
    %p109 = scmp.eq.s32.totalorder %s15, 0
    %p110 = por %p108, %p109
    %p111 = scmp.le.s32.totalorder 1, %s9
    %p112 = scmp.lt.s32.totalorder %s9, 5
    %p113 = pnand %p111, %p112
    %p114 = pneg %p113
    // Predicated region
    $region9: #{deepmind_forward.4} parent=5 // pred_check
      _
    $region10: #{deepmind_forward.4} parent=5 // pred_check_branch
      %116 = sbr.rel (%p113) target = $region12
    $region11: #{deepmind_forward.4} parent=5 // pred_region
      %s117 = ssub.s32 %s9, 1
      // Predicated region
      $region13: #{deepmind_forward.4} parent=11 // pred_check
        %p118 = pneg %p56
      $region14: #{deepmind_forward.4} parent=11 // pred_check_branch
        %120 = sbr.rel (%p118) target = $region16
      $region15: #{deepmind_forward.4} parent=11 // pred_region
        _
      $region16: #{deepmind_forward.4} parent=11 // pred_fallthru
        _
      // Predicated region
      $region17: #{deepmind_forward.4} parent=11 // pred_check
        %p121 = pneg %p77
      $region18: #{deepmind_forward.4} parent=11 // pred_check_branch
        %123 = sbr.rel (%p121) target = $region20
      $region19: #{deepmind_forward.4} parent=11 // pred_region
        _
      $region20: #{deepmind_forward.4} parent=11 // pred_fallthru
        _
    $region12: #{deepmind_forward.4} parent=5 // pred_fallthru
      _
    %p124 = scmp.lt.s32.totalorder %s9, 4
    // Predicated region
    $region21: #{deepmind_forward.4} parent=5 // pred_check
      %p125 = pneg %p124
    $region22: #{deepmind_forward.4} parent=5 // pred_check_branch
      %127 = sbr.rel (%p125) target = $region24
    $region23: #{deepmind_forward.4} parent=5 // pred_region
      // Predicated region
      $region25: #{deepmind_forward.4} parent=23 // pred_check
        %p128 = pneg %p29
      $region26: #{deepmind_forward.4} parent=23 // pred_check_branch
        %130 = sbr.rel (%p128) target = $region28
      $region27: #{deepmind_forward.4} parent=23 // pred_region
        %s131 = smul.u32 25, %s9
        %p132 = scmp.lt.s32.totalorder %s131, 99
        %s133 = scalar_select %p132, %s131, 99
        %s134 = smul.addr %s133, 2
        %s135 = smul.addr %s134, 8
        %s136 = scalar_lea.vmem %s0, %s135
        %s137 = smul.u32 25, %s9
      $region28: #{deepmind_forward.4} parent=23 // pred_fallthru
        _
    $region24: #{deepmind_forward.4} parent=5 // pred_fallthru
      _
    %p138 = scmp.le.s32.totalorder 1, %s9
    %p139 = scmp.lt.s32.totalorder %s9, 5
    %p140 = pnand %p138, %p139
    %p141 = pneg %p140
    // Predicated region
    $region29: #{deepmind_forward.4} parent=5 // pred_check
      _
    $region30: #{deepmind_forward.4} parent=5 // pred_check_branch
      %143 = sbr.rel (%p140) target = $region32
    $region31: #{deepmind_forward.4} parent=5 // pred_region
      %s144 = ssub.s32 %s9, 1
      %s145 = smul.u32 25, %s14
      %p146 = scmp.lt.s32.totalorder %s145, 99
      %s147 = scalar_select %p146, %s145, 99
      %s148 = smul.addr %s147, 2
      %s149 = smul.addr %s148, 8
      %s150 = scalar_lea.vmem %s0, %s149
      %p151 = pneg %p35
      %p152 = pneg %p32
      %p153 = pneg %p56
      %p154 = pneg %p53
      %p155 = pneg %p77
      %p156 = pneg %p74
      %p157 = pneg %p103
      %p158 = pneg %p100
      %s159 = smul.u32 25, %s14
      %p160 = scmp.lt.s32.totalorder %s159, 99
      %s161 = scalar_select %p160, %s159, 99
      %s162 = smul.addr %s161, 8
      %s163 = scalar_lea.vmem %s3, %s162
      %s164 = smul.u32 25, %s14
      %p165 = scmp.lt.s32.totalorder %s164, 99
      %s166 = scalar_select %p165, %s164, 99
      %s167 = smul.addr %s166, 2
      %s168 = smul.addr %s167, 8
      %s169 = scalar_lea.vmem %s0, %s168
      %s170 = smul.u32 25, %s14
      %s171 = smul.u32 25, %s14
      %p172 = scmp.lt.s32.totalorder %s171, 99
      %s173 = scalar_select %p172, %s171, 99
      %s174 = smul.addr %s173, 8
      %s175 = scalar_lea.vmem %s3, %s174
      %s176 = smul.u32 25, %s14
      %v178 = vld [vmem:[%s169] sm:$0xff]
      %v179 = vld [vmem:[%s169 + $0x8] sm:$0xff]
      %v180 = vld [vmem:[%s169 + $0x10] sm:$0xff]
      %v181 = vld [vmem:[%s169 + $0x18] sm:$0xff]
      %v182 = vld [vmem:[%s169 + $0x20] sm:$0xff]
      %v183 = vld [vmem:[%s169 + $0x28] sm:$0xff]
      %v184 = vld [vmem:[%s169 + $0x30] sm:$0xff]
      %v185 = vld [vmem:[%s169 + $0x38] sm:$0xff]
      %v186 = vld [vmem:[%s169 + $0x40] sm:$0xff]
      %v187 = vld [vmem:[%s169 + $0x48] sm:$0xff]
      %v188 = vld [vmem:[%s169 + $0x50] sm:$0xff]
      %v189 = vld [vmem:[%s169 + $0x58] sm:$0xff]
      %v190 = vld [vmem:[%s169 + $0x60] sm:$0xff]
      %v191 = vld [vmem:[%s169 + $0x68] sm:$0xff]
      %v192 = vld [vmem:[%s169 + $0x70] sm:$0xff]
      %v193 = vld [vmem:[%s169 + $0x78] sm:$0xff]
      %v194 = vld [vmem:[%s169 + $0x80] sm:$0xff]
      %v195 = vld [vmem:[%s169 + $0x88] sm:$0xff]
      %v196 = vld [vmem:[%s169 + $0x90] sm:$0xff]
      %v197 = vld [vmem:[%s169 + $0x98] sm:$0xff]
      %v198 = vld [vmem:[%s169 + $0xa0] sm:$0xff]
      %v199 = vld [vmem:[%s169 + $0xa8] sm:$0xff]
      %v200 = vld [vmem:[%s169 + $0xb0] sm:$0xff]
      %v201 = vld [vmem:[%s169 + $0xb8] sm:$0xff]
      %v202 = vld [vmem:[%s169 + $0xc0] sm:$0xff]
      %v203 = vld [vmem:[%s169 + $0xc8] sm:$0xff]
      %v204 = vld [vmem:[%s169 + $0xd0] sm:$0xff]
      %v205 = vld [vmem:[%s169 + $0xd8] sm:$0xff]
      %v206 = vld [vmem:[%s169 + $0xe0] sm:$0xff]
      %v207 = vld [vmem:[%s169 + $0xe8] sm:$0xff]
      %v208 = vld [vmem:[%s169 + $0xf0] sm:$0xff]
      %v209 = vld [vmem:[%s169 + $0xf8] sm:$0xff]
      %v210 = vld [vmem:[%s169 + $0x100] sm:$0xff]
      %v211 = vld [vmem:[%s169 + $0x108] sm:$0xff]
      %v212 = vld [vmem:[%s169 + $0x110] sm:$0xff]
      %v213 = vld [vmem:[%s169 + $0x118] sm:$0xff]
      %v214 = vld [vmem:[%s169 + $0x120] sm:$0xff]
      %v215 = vld [vmem:[%s169 + $0x128] sm:$0xff]
      %v216 = vld [vmem:[%s169 + $0x130] sm:$0xff]
      %v217 = vld [vmem:[%s169 + $0x138] sm:$0xff]
      %v218 = vld [vmem:[%s169 + $0x140] sm:$0xff]
      %v219 = vld [vmem:[%s169 + $0x148] sm:$0xff]
      %v220 = vld [vmem:[%s169 + $0x150] sm:$0xff]
      %v221 = vld [vmem:[%s169 + $0x158] sm:$0xff]
      %v222 = vld [vmem:[%s169 + $0x160] sm:$0xff]
      %v223 = vld [vmem:[%s169 + $0x168] sm:$0xff]
      %v224 = vld [vmem:[%s169 + $0x170] sm:$0xff]
      %v225 = vld [vmem:[%s169 + $0x178] sm:$0xff]
      %v226 = vld [vmem:[%s169 + $0x180] sm:$0xff]
      %v227 = vld [vmem:[%s169 + $0x188] sm:$0xff]
      %v228 = vpack.c.bf16 %v180, %v178
      %v229 = vpack.c.bf16 %v181, %v179
      %v230 = vpack.c.bf16 %v184, %v182
      %v231 = vpack.c.bf16 %v185, %v183
      %v232 = vpack.c.bf16 %v188, %v186
      %v233 = vpack.c.bf16 %v189, %v187
      %v234 = vpack.c.bf16 %v192, %v190
      %v235 = vpack.c.bf16 %v193, %v191
      %v236 = vpack.c.bf16 %v196, %v194
      %v237 = vpack.c.bf16 %v197, %v195
      %v238 = vpack.c.bf16 %v200, %v198
      %v239 = vpack.c.bf16 %v201, %v199
      %v240 = vpack.c.bf16 %v204, %v202
      %v241 = vpack.c.bf16 %v205, %v203
      %v242 = vpack.c.bf16 %v208, %v206
      %v243 = vpack.c.bf16 %v209, %v207
      %v244 = vpack.c.bf16 %v212, %v210
      %v245 = vpack.c.bf16 %v213, %v211
      %v246 = vpack.c.bf16 %v216, %v214
      %v247 = vpack.c.bf16 %v217, %v215
      %v248 = vpack.c.bf16 %v220, %v218
      %v249 = vpack.c.bf16 %v221, %v219
      %v250 = vpack.c.bf16 %v224, %v222
      %v251 = vpack.c.bf16 %v225, %v223
      %v252 = vpack.c.bf16 %v226, %v226
      %v253 = vpack.c.bf16 %v227, %v227
      %v254 = vld [vmem:[%s1] sm:$0xf]
      %v255 = vld [vmem:[%s1 + $0x4] sm:$0xf]
      %v256 = vld [vmem:[%s1 + $0x8] sm:$0xf]
      %v257 = vld [vmem:[%s1 + $0xc] sm:$0xf]
      %v258 = vld [vmem:[%s1 + $0x10] sm:$0xf]
      %v259 = vld [vmem:[%s1 + $0x14] sm:$0xf]
      %v260 = vld [vmem:[%s1 + $0x18] sm:$0xf]
      %v261 = vld [vmem:[%s1 + $0x1c] sm:$0xf]
      %v262 = vld [vmem:[%s1 + $0x20] sm:$0xf]
      %v263 = vld [vmem:[%s1 + $0x24] sm:$0xf]
      %v264 = vld [vmem:[%s1 + $0x28] sm:$0xf]
      %v265 = vld [vmem:[%s1 + $0x2c] sm:$0xf]
      %v266 = vld [vmem:[%s1 + $0x30] sm:$0xf]
      %v267 = vld [vmem:[%s1 + $0x34] sm:$0xf]
      %v268 = vld [vmem:[%s1 + $0x38] sm:$0xf]
      %v269 = vld [vmem:[%s1 + $0x3c] sm:$0xf]
      %v270 = vld [vmem:[%s1 + $0x40] sm:$0xf]
      %v271 = vld [vmem:[%s1 + $0x44] sm:$0xf]
      %v272 = vld [vmem:[%s1 + $0x48] sm:$0xf]
      %v273 = vld [vmem:[%s1 + $0x4c] sm:$0xf]
      %v274 = vld [vmem:[%s1 + $0x50] sm:$0xf]
      %v275 = vld [vmem:[%s1 + $0x54] sm:$0xf]
      %v276 = vld [vmem:[%s1 + $0x58] sm:$0xf]
      %v277 = vld [vmem:[%s1 + $0x5c] sm:$0xf]
      %v278 = vld [vmem:[%s1 + $0x60] sm:$0xf]
      %v279 = vld [vmem:[%s1 + $0x64] sm:$0xf]
      %v280 = vld [vmem:[%s1 + $0x68] sm:$0xf]
      %v281 = vld [vmem:[%s1 + $0x6c] sm:$0xf]
      %v282 = vld [vmem:[%s1 + $0x70] sm:$0xf]
      %v283 = vld [vmem:[%s1 + $0x74] sm:$0xf]
      %v284 = vld [vmem:[%s1 + $0x78] sm:$0xf]
      %v285 = vld [vmem:[%s1 + $0x7c] sm:$0xf]
      %v286 = vld [vmem:[%s2] sm:$0x1]
      %v288 = vlaneseq
      %v289 = vshrl.u32 %v288, 7
      %v290 = vsub.s32 0, %v289
      %v291 = vrot.slane %v286, %v290
      %v325 = vunpack.c.l.b16 %v254
      %v326 = vunpack.c.l.b16 %v255
      %v327 = vunpack.c.l.b16 %v256
      %v328 = vunpack.c.l.b16 %v257
      %v329 = vunpack.c.l.b16 %v258
      %v330 = vunpack.c.l.b16 %v259
      %v331 = vunpack.c.l.b16 %v260
      %v332 = vunpack.c.l.b16 %v261
      %v333 = vunpack.c.l.b16 %v262
      %v334 = vunpack.c.l.b16 %v263
      %v335 = vunpack.c.l.b16 %v264
      %v336 = vunpack.c.l.b16 %v265
      %v337 = vunpack.c.l.b16 %v266
      %v338 = vunpack.c.l.b16 %v267
      %v339 = vunpack.c.l.b16 %v268
      %v340 = vunpack.c.l.b16 %v269
      %v341 = vunpack.c.l.b16 %v270
      %v342 = vunpack.c.l.b16 %v271
      %v343 = vunpack.c.l.b16 %v272
      %v344 = vunpack.c.l.b16 %v273
      %v345 = vunpack.c.l.b16 %v274
      %v346 = vunpack.c.l.b16 %v275
      %v347 = vunpack.c.l.b16 %v276
      %v348 = vunpack.c.l.b16 %v277
      %v349 = vunpack.c.l.b16 %v278
      %v350 = vunpack.c.l.b16 %v279
      %v351 = vunpack.c.l.b16 %v280
      %v352 = vunpack.c.l.b16 %v281
      %v353 = vunpack.c.l.b16 %v282
      %v354 = vunpack.c.l.b16 %v283
      %v355 = vunpack.c.l.b16 %v284
      %v356 = vunpack.c.l.b16 %v285
      %v357 = vpack.c.b16 %v326, %v325
      %v358 = vpack.c.b16 %v328, %v327
      %v359 = vpack.c.b16 %v330, %v329
      %v360 = vpack.c.b16 %v332, %v331
      %v361 = vpack.c.b16 %v334, %v333
      %v362 = vpack.c.b16 %v336, %v335
      %v363 = vpack.c.b16 %v338, %v337
      %v364 = vpack.c.b16 %v340, %v339
      %v365 = vpack.c.b16 %v342, %v341
      %v366 = vpack.c.b16 %v344, %v343
      %v367 = vpack.c.b16 %v346, %v345
      %v368 = vpack.c.b16 %v348, %v347
      %v369 = vpack.c.b16 %v350, %v349
      %v370 = vpack.c.b16 %v352, %v351
      %v371 = vpack.c.b16 %v354, %v353
      %v372 = vpack.c.b16 %v356, %v355
      %389 = vmatprep.subr.bf16.mxu0 0
      %390 = vmatpush1.bf16.msra.mxu0 %v364
      %391 = vmatprep.subr.bf16.mxu0 0
      %392 = vmatpush1.bf16.msra.mxu0 %v363
      %393 = vmatprep.subr.bf16.mxu0 0
      %394 = vmatpush1.bf16.msra.mxu0 %v362
      %395 = vmatprep.subr.bf16.mxu0 0
      %396 = vmatpush1.bf16.msra.mxu0 %v361
      %397 = vmatprep.subr.bf16.mxu0 0
      %398 = vmatpush1.bf16.msra.mxu0 %v360
      %399 = vmatprep.subr.bf16.mxu0 0
      %400 = vmatpush1.bf16.msra.mxu0 %v359
      %401 = vmatprep.subr.bf16.mxu0 0
      %402 = vmatpush1.bf16.msra.mxu0 %v358
      %403 = vmatprep.subr.bf16.mxu0 0
      %404 = vmatpush1.bf16.msra.mxu0 %v357
      %405 = vmatprep.subr.bf16.mxu0 0
      %406 = vmatpush2.bf16.msra.mxu0 %v372
      %407 = vmatprep.subr.bf16.mxu0 0
      %408 = vmatpush2.bf16.msra.mxu0 %v371
      %409 = vmatprep.subr.bf16.mxu0 0
      %410 = vmatpush2.bf16.msra.mxu0 %v370
      %411 = vmatprep.subr.bf16.mxu0 0
      %412 = vmatpush2.bf16.msra.mxu0 %v369
      %413 = vmatprep.subr.bf16.mxu0 0
      %414 = vmatpush2.bf16.msra.mxu0 %v368
      %415 = vmatprep.subr.bf16.mxu0 0
      %416 = vmatpush2.bf16.msra.mxu0 %v367
      %417 = vmatprep.subr.bf16.mxu0 0
      %418 = vmatpush2.bf16.msra.mxu0 %v366
      %419 = vmatprep.subr.bf16.mxu0 0
      %420 = vmatpush2.bf16.msra.mxu0 %v365
      %421 = vmatprep.mubr.bf16.mxu0 %v229
      %422 = vmatmul.mubr.bf16.gmra.mxu0 %v228
      %v423 = vpop.f32.mrf.mxu0
      %v424 = vadd.f32 %v291, %v423
      %v425 = vpop.f32.mrf.mxu0
      %v426 = vpop.f32.mrf.mxu0
      %v427 = vadd.f32 %v291, %v426
      %v428 = vpop.f32.mrf.mxu0
      %429 = vmatprep.mubr.bf16.mxu0 %v231
      %430 = vmatmul.mubr.bf16.gmra.mxu0 %v230
      %v431 = vpop.f32.mrf.mxu0
      %v432 = vadd.f32 %v291, %v431
      %v433 = vpop.f32.mrf.mxu0
      %v434 = vpop.f32.mrf.mxu0
      %v435 = vadd.f32 %v291, %v434
      %v436 = vpop.f32.mrf.mxu0
      %437 = vmatprep.mubr.bf16.mxu0 %v233
      %438 = vmatmul.mubr.bf16.gmra.mxu0 %v232
      %v439 = vpop.f32.mrf.mxu0
      %v440 = vadd.f32 %v291, %v439
      %v441 = vpop.f32.mrf.mxu0
      %v442 = vpop.f32.mrf.mxu0
      %v443 = vadd.f32 %v291, %v442
      %v444 = vpop.f32.mrf.mxu0
      %445 = vmatprep.mubr.bf16.mxu0 %v235
      %446 = vmatmul.mubr.bf16.gmra.mxu0 %v234
      %v447 = vpop.f32.mrf.mxu0
      %v448 = vadd.f32 %v291, %v447
      %v449 = vpop.f32.mrf.mxu0
      %v450 = vpop.f32.mrf.mxu0
      %v451 = vadd.f32 %v291, %v450
      %v452 = vpop.f32.mrf.mxu0
      %453 = vmatprep.mubr.bf16.mxu0 %v237
      %454 = vmatmul.mubr.bf16.gmra.mxu0 %v236
      %v455 = vpop.f32.mrf.mxu0
      %v456 = vadd.f32 %v291, %v455
      %v457 = vpop.f32.mrf.mxu0
      %v458 = vpop.f32.mrf.mxu0
      %v459 = vadd.f32 %v291, %v458
      %v460 = vpop.f32.mrf.mxu0
      %461 = vmatprep.mubr.bf16.mxu0 %v239
      %462 = vmatmul.mubr.bf16.gmra.mxu0 %v238
      %v463 = vpop.f32.mrf.mxu0
      %v464 = vadd.f32 %v291, %v463
      %v465 = vpop.f32.mrf.mxu0
      %v466 = vpop.f32.mrf.mxu0
      %v467 = vadd.f32 %v291, %v466
      %v468 = vpop.f32.mrf.mxu0
      %469 = vmatprep.mubr.bf16.mxu0 %v241
      %470 = vmatmul.mubr.bf16.gmra.mxu0 %v240
      %v471 = vpop.f32.mrf.mxu0
      %v472 = vadd.f32 %v291, %v471
      %v473 = vpop.f32.mrf.mxu0
      %v474 = vpop.f32.mrf.mxu0
      %v475 = vadd.f32 %v291, %v474
      %v476 = vpop.f32.mrf.mxu0
      %477 = vmatprep.mubr.bf16.mxu0 %v243
      %478 = vmatmul.mubr.bf16.gmra.mxu0 %v242
      %v479 = vpop.f32.mrf.mxu0
      %v480 = vadd.f32 %v291, %v479
      %v481 = vpop.f32.mrf.mxu0
      %v482 = vpop.f32.mrf.mxu0
      %v483 = vadd.f32 %v291, %v482
      %v484 = vpop.f32.mrf.mxu0
      %485 = vmatprep.mubr.bf16.mxu0 %v245
      %486 = vmatmul.mubr.bf16.gmra.mxu0 %v244
      %v487 = vpop.f32.mrf.mxu0
      %v488 = vadd.f32 %v291, %v487
      %v489 = vpop.f32.mrf.mxu0
      %v490 = vpop.f32.mrf.mxu0
      %v491 = vadd.f32 %v291, %v490
      %v492 = vpop.f32.mrf.mxu0
      %493 = vmatprep.mubr.bf16.mxu0 %v247
      %494 = vmatmul.mubr.bf16.gmra.mxu0 %v246
      %v495 = vpop.f32.mrf.mxu0
      %v496 = vadd.f32 %v291, %v495
      %v497 = vpop.f32.mrf.mxu0
      %v498 = vpop.f32.mrf.mxu0
      %v499 = vadd.f32 %v291, %v498
      %v500 = vpop.f32.mrf.mxu0
      %501 = vmatprep.mubr.bf16.mxu0 %v249
      %502 = vmatmul.mubr.bf16.gmra.mxu0 %v248
      %v503 = vpop.f32.mrf.mxu0
      %v504 = vadd.f32 %v291, %v503
      %v505 = vpop.f32.mrf.mxu0
      %v506 = vpop.f32.mrf.mxu0
      %v507 = vadd.f32 %v291, %v506
      %v508 = vpop.f32.mrf.mxu0
      %509 = vmatprep.mubr.bf16.mxu0 %v251
      %510 = vmatmul.mubr.bf16.gmra.mxu0 %v250
      %v511 = vpop.f32.mrf.mxu0
      %v512 = vadd.f32 %v291, %v511
      %v513 = vpop.f32.mrf.mxu0
      %v514 = vpop.f32.mrf.mxu0
      %v515 = vadd.f32 %v291, %v514
      %v516 = vpop.f32.mrf.mxu0
      %517 = vmatprep.mubr.bf16.mxu0 %v253
      %518 = vmatmul.mubr.bf16.gmra.mxu0 %v252
      %v519 = vpop.f32.mrf.mxu0
      %v520 = vadd.f32 %v291, %v519
      %v521 = vpop.f32.mrf.mxu0
      %v522 = vpop.f32.mrf.mxu0
      %v523 = vpop.f32.mrf.mxu0
      %524 = vdwg.mxu0
      %v525 = vmax.f32 %v424, 0.0
      %v526 = vmax.f32 %v427, 0.0
      %v527 = vmax.f32 %v432, 0.0
      %v528 = vmax.f32 %v435, 0.0
      %v529 = vmax.f32 %v440, 0.0
      %v530 = vmax.f32 %v443, 0.0
      %v531 = vmax.f32 %v448, 0.0
      %v532 = vmax.f32 %v451, 0.0
      %v533 = vmax.f32 %v456, 0.0
      %v534 = vmax.f32 %v459, 0.0
      %v535 = vmax.f32 %v464, 0.0
      %v536 = vmax.f32 %v467, 0.0
      %v537 = vmax.f32 %v472, 0.0
      %v538 = vmax.f32 %v475, 0.0
      %v539 = vmax.f32 %v480, 0.0
      %v540 = vmax.f32 %v483, 0.0
      %v541 = vmax.f32 %v488, 0.0
      %v542 = vmax.f32 %v491, 0.0
      %v543 = vmax.f32 %v496, 0.0
      %v544 = vmax.f32 %v499, 0.0
      %v545 = vmax.f32 %v504, 0.0
      %v546 = vmax.f32 %v507, 0.0
      %v547 = vmax.f32 %v512, 0.0
      %v548 = vmax.f32 %v515, 0.0
      %v549 = vmax.f32 %v520, 0.0
      %550 = vst [vmem:[%s175] sm:$0xff] %v525
      %551 = vst [vmem:[%s175 + $0x8] sm:$0xff] %v526
      %552 = vst [vmem:[%s175 + $0x10] sm:$0xff] %v527
      %553 = vst [vmem:[%s175 + $0x18] sm:$0xff] %v528
      %554 = vst [vmem:[%s175 + $0x20] sm:$0xff] %v529
      %555 = vst [vmem:[%s175 + $0x28] sm:$0xff] %v530
      %556 = vst [vmem:[%s175 + $0x30] sm:$0xff] %v531
      %557 = vst [vmem:[%s175 + $0x38] sm:$0xff] %v532
      %558 = vst [vmem:[%s175 + $0x40] sm:$0xff] %v533
      %559 = vst [vmem:[%s175 + $0x48] sm:$0xff] %v534
      %560 = vst [vmem:[%s175 + $0x50] sm:$0xff] %v535
      %561 = vst [vmem:[%s175 + $0x58] sm:$0xff] %v536
      %562 = vst [vmem:[%s175 + $0x60] sm:$0xff] %v537
      %563 = vst [vmem:[%s175 + $0x68] sm:$0xff] %v538
      %564 = vst [vmem:[%s175 + $0x70] sm:$0xff] %v539
      %565 = vst [vmem:[%s175 + $0x78] sm:$0xff] %v540
      %566 = vst [vmem:[%s175 + $0x80] sm:$0xff] %v541
      %567 = vst [vmem:[%s175 + $0x88] sm:$0xff] %v542
      %568 = vst [vmem:[%s175 + $0x90] sm:$0xff] %v543
      %569 = vst [vmem:[%s175 + $0x98] sm:$0xff] %v544
      %570 = vst [vmem:[%s175 + $0xa0] sm:$0xff] %v545
      %571 = vst [vmem:[%s175 + $0xa8] sm:$0xff] %v546
      %572 = vst [vmem:[%s175 + $0xb0] sm:$0xff] %v547
      %573 = vst [vmem:[%s175 + $0xb8] sm:$0xff] %v548
      %574 = vst [vmem:[%s175 + $0xc0] sm:$0xff] %v549
      %s575 = smul.u32 25, %s14
      %p576 = scmp.lt.s32.totalorder %s575, 99
      %s577 = scalar_select %p576, %s575, 99
      %s578 = smul.addr %s577, 8
      %s579 = scalar_lea.vmem %s3, %s578
      // Predicated region
      $region33: #{deepmind_forward.4} parent=31 // pred_check
        %p580 = pneg %p100
      $region34: #{deepmind_forward.4} parent=31 // pred_check_branch
        %582 = sbr.rel (%p580) target = $region36
      $region35: #{deepmind_forward.4} parent=31 // pred_region
        %s583 = smul.u32 25, %s14
      $region36: #{deepmind_forward.4} parent=31 // pred_fallthru
        _
    $region32: #{deepmind_forward.4} parent=5 // pred_fallthru
      _
    %p584 = scmp.le.s32.totalorder 2, %s9
    // Predicated region
    $region37: #{deepmind_forward.4} parent=5 // pred_check
      %p585 = pneg %p584
    $region38: #{deepmind_forward.4} parent=5 // pred_check_branch
      %587 = sbr.rel (%p585) target = $region40
    $region39: #{deepmind_forward.4} parent=5 // pred_region
      %s588 = ssub.s32 %s9, 2
      // Predicated region
      $region41: #{deepmind_forward.4} parent=39 // pred_check
        %p589 = pneg %p106
      $region42: #{deepmind_forward.4} parent=39 // pred_check_branch
        %591 = sbr.rel (%p589) target = $region44
      $region43: #{deepmind_forward.4} parent=39 // pred_region
        %s592 = smul.u32 25, %s15
        %p593 = scmp.lt.s32.totalorder %s592, 99
        %s594 = scalar_select %p593, %s592, 99
        %s595 = smul.addr %s594, 8
        %s596 = scalar_lea.vmem %s3, %s595
      $region44: #{deepmind_forward.4} parent=39 // pred_fallthru
        _
    $region40: #{deepmind_forward.4} parent=5 // pred_fallthru
      _
  $region6: #{deepmind_forward.4} parent=0 // loop_footer
    %s13 = sadd.s32 1, %s9
  $region7: #{deepmind_forward.4} parent=0 // loop_footer_branch
    %8 = sbr.rel target = $region3
  $region8: #{deepmind_forward.4} parent=0 // loop_exit
    _

// kernel: deepmind_forward.5
$region0: #{deepmind_forward.5}
  #allocation0 [shape = 'u32[]', space=smem, size = 0x4, offset = 0x4, fixed_abs, tag = 'smem constant byte address 0x4 - core index']
  #allocation1 [shape = 'u32[144,128]{1,0:T(1,128)}', space=vmem, size = 0x12000, scoped, tag = 'internal scratch']
  %s0 = inlined_call_operand.vmem [shape: f32[176,512], index: 0, kind: input, shape index: {}]
  %s1 = inlined_call_operand.vmem [shape: bf16[512,128], index: 1, kind: input, shape index: {}]
  %s2 = inlined_call_operand.vmem [shape: f32[1,128], index: 2, kind: input, shape index: {}]
  %s3 = inlined_call_operand.vmem [shape: f32[176,128], index: 3, kind: output, shape index: {}]
  %s4 = sld [smem:[#allocation0]]
  $region45: #{deepmind_forward.5} parent=0
    _
  %s6 = ssub.s32 1, %s4
  %s7 = scalar_select 0, %s6, %s4
  loop: start=0, step=1, limit=4
  $region2: #{deepmind_forward.5} parent=0 // loop_pre_header
    _
  $region3: #{deepmind_forward.5} parent=0 // loop_header
    %s9 = sphi 0, %s13
    %p10 = scmp.ge.s32.totalorder %s9, 4
    %s19 = sphi 0, %s21
    %s22 = sphi 0, %s19
    %s23 = sphi 0, %s22
    %s39 = sphi 0, %s23
    %s43 = sphi 0, %s43
    %s45 = sphi 0, %s43
    %s46 = sphi 0, %s45
    %s60 = sphi 0, %s46
    %s64 = sphi 0, %s64
    %s66 = sphi 0, %s64
    %s67 = sphi 0, %s66
    %s81 = sphi 0, %s67
    %s87 = sphi 0, %s89
    %s90 = sphi 0, %s87
    %s91 = sphi 0, %s90
    %s107 = sphi 0, %s91
  $region4: #{deepmind_forward.5} parent=0 // loop_header_branch
    %12 = sbr.rel (%p10) target = $region8
  $region5: #{deepmind_forward.5} parent=0 // loop_body
    %s14 = ssub.s32 %s9, 1
    %s15 = ssub.s32 %s9, 2
    %s16 = sadd.s32 %s9, 1
    %s17 = ssub.s32 %s9, %s16
    %p18 = scmp.eq.s32.totalorder %s17, 0
    %s20 = sadd.s32 %s19, 1
    %s21 = scalar_select %p18, %s19, %s20
    %p24 = pneg %p18
    %p25 = scmp.eq.s32.totalorder %s9, 1
    %p26 = por %p24, %p25
    %p27 = scmp.ne.s32.totalorder %s19, %s22
    %p28 = scmp.eq.s32.totalorder %s9, 0
    %p29 = por %p27, %p28
    %p30 = scmp.ne.s32.totalorder %s19, %s22
    %p31 = scmp.eq.s32.totalorder %s14, 1
    %p32 = por %p30, %p31
    %p33 = scmp.ne.s32.totalorder %s22, %s23
    %p34 = scmp.eq.s32.totalorder %s14, 0
    %p35 = por %p33, %p34
    %p36 = scmp.ne.s32.totalorder %s22, %s23
    %p37 = scmp.eq.s32.totalorder %s15, 1
    %p38 = por %p36, %p37
    %p40 = scmp.ne.s32.totalorder %s23, %s39
    %p41 = scmp.eq.s32.totalorder %s15, 0
    %p42 = por %p40, %p41
    %s44 = sadd.s32 %s43, 1
    %p47 = scmp.eq.s32.totalorder %s9, 1
    %p48 = scmp.ne.s32.totalorder %s43, %s45
    %p49 = scmp.eq.s32.totalorder %s9, 0
    %p50 = por %p48, %p49
    %p51 = scmp.ne.s32.totalorder %s43, %s45
    %p52 = scmp.eq.s32.totalorder %s14, 1
    %p53 = por %p51, %p52
    %p54 = scmp.ne.s32.totalorder %s45, %s46
    %p55 = scmp.eq.s32.totalorder %s14, 0
    %p56 = por %p54, %p55
    %p57 = scmp.ne.s32.totalorder %s45, %s46
    %p58 = scmp.eq.s32.totalorder %s15, 1
    %p59 = por %p57, %p58
    %p61 = scmp.ne.s32.totalorder %s46, %s60
    %p62 = scmp.eq.s32.totalorder %s15, 0
    %p63 = por %p61, %p62
    %s65 = sadd.s32 %s64, 1
    %p68 = scmp.eq.s32.totalorder %s9, 1
    %p69 = scmp.ne.s32.totalorder %s64, %s66
    %p70 = scmp.eq.s32.totalorder %s9, 0
    %p71 = por %p69, %p70
    %p72 = scmp.ne.s32.totalorder %s64, %s66
    %p73 = scmp.eq.s32.totalorder %s14, 1
    %p74 = por %p72, %p73
    %p75 = scmp.ne.s32.totalorder %s66, %s67
    %p76 = scmp.eq.s32.totalorder %s14, 0
    %p77 = por %p75, %p76
    %p78 = scmp.ne.s32.totalorder %s66, %s67
    %p79 = scmp.eq.s32.totalorder %s15, 1
    %p80 = por %p78, %p79
    %p82 = scmp.ne.s32.totalorder %s67, %s81
    %p83 = scmp.eq.s32.totalorder %s15, 0
    %p84 = por %p82, %p83
    %s85 = ssub.s32 %s9, %s16
    %p86 = scmp.eq.s32.totalorder %s85, 0
    %s88 = sadd.s32 %s87, 1
    %s89 = scalar_select %p86, %s87, %s88
    %p92 = pneg %p86
    %p93 = scmp.eq.s32.totalorder %s9, 1
    %p94 = por %p92, %p93
    %p95 = scmp.ne.s32.totalorder %s87, %s90
    %p96 = scmp.eq.s32.totalorder %s9, 0
    %p97 = por %p95, %p96
    %p98 = scmp.ne.s32.totalorder %s87, %s90
    %p99 = scmp.eq.s32.totalorder %s14, 1
    %p100 = por %p98, %p99
    %p101 = scmp.ne.s32.totalorder %s90, %s91
    %p102 = scmp.eq.s32.totalorder %s14, 0
    %p103 = por %p101, %p102
    %p104 = scmp.ne.s32.totalorder %s90, %s91
    %p105 = scmp.eq.s32.totalorder %s15, 1
    %p106 = por %p104, %p105
    %p108 = scmp.ne.s32.totalorder %s91, %s107
    %p109 = scmp.eq.s32.totalorder %s15, 0
    %p110 = por %p108, %p109
    %p111 = scmp.le.s32.totalorder 1, %s9
    %p112 = scmp.lt.s32.totalorder %s9, 3
    %p113 = pnand %p111, %p112
    %p114 = pneg %p113
    // Predicated region
    $region9: #{deepmind_forward.5} parent=5 // pred_check
      _
    $region10: #{deepmind_forward.5} parent=5 // pred_check_branch
      %116 = sbr.rel (%p113) target = $region12
    $region11: #{deepmind_forward.5} parent=5 // pred_region
      %s117 = ssub.s32 %s9, 1
      // Predicated region
      $region13: #{deepmind_forward.5} parent=11 // pred_check
        %p118 = pneg %p56
      $region14: #{deepmind_forward.5} parent=11 // pred_check_branch
        %120 = sbr.rel (%p118) target = $region16
      $region15: #{deepmind_forward.5} parent=11 // pred_region
        _
      $region16: #{deepmind_forward.5} parent=11 // pred_fallthru
        _
      // Predicated region
      $region17: #{deepmind_forward.5} parent=11 // pred_check
        %p121 = pneg %p77
      $region18: #{deepmind_forward.5} parent=11 // pred_check_branch
        %123 = sbr.rel (%p121) target = $region20
      $region19: #{deepmind_forward.5} parent=11 // pred_region
        _
      $region20: #{deepmind_forward.5} parent=11 // pred_fallthru
        _
    $region12: #{deepmind_forward.5} parent=5 // pred_fallthru
      _
    %p124 = scmp.lt.s32.totalorder %s9, 2
    // Predicated region
    $region21: #{deepmind_forward.5} parent=5 // pred_check
      %p125 = pneg %p124
    $region22: #{deepmind_forward.5} parent=5 // pred_check_branch
      %127 = sbr.rel (%p125) target = $region24
    $region23: #{deepmind_forward.5} parent=5 // pred_region
      // Predicated region
      $region25: #{deepmind_forward.5} parent=23 // pred_check
        %p128 = pneg %p29
      $region26: #{deepmind_forward.5} parent=23 // pred_check_branch
        %130 = sbr.rel (%p128) target = $region28
      $region27: #{deepmind_forward.5} parent=23 // pred_region
        %s131 = smul.u32 11, %s9
        %p132 = scmp.lt.s32.totalorder %s131, 21
        %s133 = scalar_select %p132, %s131, 21
        %s134 = smul.addr %s133, 4
        %s135 = smul.addr %s134, 8
        %s136 = scalar_lea.vmem %s0, %s135
        %s137 = smul.u32 11, %s9
      $region28: #{deepmind_forward.5} parent=23 // pred_fallthru
        _
    $region24: #{deepmind_forward.5} parent=5 // pred_fallthru
      _
    %p138 = scmp.le.s32.totalorder 1, %s9
    %p139 = scmp.lt.s32.totalorder %s9, 3
    %p140 = pnand %p138, %p139
    %p141 = pneg %p140
    // Predicated region
    $region29: #{deepmind_forward.5} parent=5 // pred_check
      _
    $region30: #{deepmind_forward.5} parent=5 // pred_check_branch
      %143 = sbr.rel (%p140) target = $region32
    $region31: #{deepmind_forward.5} parent=5 // pred_region
      %s144 = ssub.s32 %s9, 1
      %s145 = smul.u32 11, %s14
      %p146 = scmp.lt.s32.totalorder %s145, 21
      %s147 = scalar_select %p146, %s145, 21
      %s148 = smul.addr %s147, 4
      %s149 = smul.addr %s148, 8
      %s150 = scalar_lea.vmem %s0, %s149
      %p151 = pneg %p35
      %p152 = pneg %p32
      %p153 = pneg %p56
      %p154 = pneg %p53
      %p155 = pneg %p77
      %p156 = pneg %p74
      %p157 = pneg %p103
      %p158 = pneg %p100
      %s159 = smul.u32 11, %s14
      %p160 = scmp.lt.s32.totalorder %s159, 21
      %s161 = scalar_select %p160, %s159, 21
      %s162 = smul.addr %s161, 8
      %s163 = scalar_lea.vmem %s3, %s162
      %s164 = smul.u32 11, %s14
      %p165 = scmp.lt.s32.totalorder %s164, 21
      %s166 = scalar_select %p165, %s164, 21
      %s167 = smul.addr %s166, 4
      %s168 = smul.addr %s167, 8
      %s169 = scalar_lea.vmem %s0, %s168
      %s170 = smul.u32 11, %s14
      %s171 = smul.u32 11, %s14
      %p172 = scmp.lt.s32.totalorder %s171, 21
      %s173 = scalar_select %p172, %s171, 21
      %s174 = smul.addr %s173, 8
      %s175 = scalar_lea.vmem %s3, %s174
      %s176 = smul.u32 11, %s14
      %v178 = vld [vmem:[%s169] sm:$0xff]
      %v179 = vld [vmem:[%s169 + $0x8] sm:$0xff]
      %v180 = vld [vmem:[%s169 + $0x10] sm:$0xff]
      %v181 = vld [vmem:[%s169 + $0x18] sm:$0xff]
      %v182 = vld [vmem:[%s169 + $0x20] sm:$0xff]
      %v183 = vld [vmem:[%s169 + $0x28] sm:$0xff]
      %v184 = vld [vmem:[%s169 + $0x30] sm:$0xff]
      %v185 = vld [vmem:[%s169 + $0x38] sm:$0xff]
      %v186 = vld [vmem:[%s169 + $0x40] sm:$0xff]
      %v187 = vld [vmem:[%s169 + $0x48] sm:$0xff]
      %v188 = vld [vmem:[%s169 + $0x50] sm:$0xff]
      %v189 = vld [vmem:[%s169 + $0x58] sm:$0xff]
      %v190 = vld [vmem:[%s169 + $0x60] sm:$0xff]
      %v191 = vld [vmem:[%s169 + $0x68] sm:$0xff]
      %v192 = vld [vmem:[%s169 + $0x70] sm:$0xff]
      %v193 = vld [vmem:[%s169 + $0x78] sm:$0xff]
      %v194 = vld [vmem:[%s169 + $0x80] sm:$0xff]
      %v195 = vld [vmem:[%s169 + $0x88] sm:$0xff]
      %v196 = vld [vmem:[%s169 + $0x90] sm:$0xff]
      %v197 = vld [vmem:[%s169 + $0x98] sm:$0xff]
      %v198 = vld [vmem:[%s169 + $0xa0] sm:$0xff]
      %v199 = vld [vmem:[%s169 + $0xa8] sm:$0xff]
      %v200 = vld [vmem:[%s169 + $0xb0] sm:$0xff]
      %v201 = vld [vmem:[%s169 + $0xb8] sm:$0xff]
      %v202 = vld [vmem:[%s169 + $0xc0] sm:$0xff]
      %v203 = vld [vmem:[%s169 + $0xc8] sm:$0xff]
      %v204 = vld [vmem:[%s169 + $0xd0] sm:$0xff]
      %v205 = vld [vmem:[%s169 + $0xd8] sm:$0xff]
      %v206 = vld [vmem:[%s169 + $0xe0] sm:$0xff]
      %v207 = vld [vmem:[%s169 + $0xe8] sm:$0xff]
      %v208 = vld [vmem:[%s169 + $0xf0] sm:$0xff]
      %v209 = vld [vmem:[%s169 + $0xf8] sm:$0xff]
      %v210 = vld [vmem:[%s169 + $0x100] sm:$0xff]
      %v211 = vld [vmem:[%s169 + $0x108] sm:$0xff]
      %v212 = vld [vmem:[%s169 + $0x110] sm:$0xff]
      %v213 = vld [vmem:[%s169 + $0x118] sm:$0xff]
      %v214 = vld [vmem:[%s169 + $0x120] sm:$0xff]
      %v215 = vld [vmem:[%s169 + $0x128] sm:$0xff]
      %v216 = vld [vmem:[%s169 + $0x130] sm:$0xff]
      %v217 = vld [vmem:[%s169 + $0x138] sm:$0xff]
      %v218 = vld [vmem:[%s169 + $0x140] sm:$0xff]
      %v219 = vld [vmem:[%s169 + $0x148] sm:$0xff]
      %v220 = vld [vmem:[%s169 + $0x150] sm:$0xff]
      %v221 = vld [vmem:[%s169 + $0x158] sm:$0xff]
      %v222 = vpack.c.bf16 %v182, %v178
      %v223 = vpack.c.bf16 %v183, %v179
      %v224 = vpack.c.bf16 %v184, %v180
      %v225 = vpack.c.bf16 %v185, %v181
      %v226 = vpack.c.bf16 %v190, %v186
      %v227 = vpack.c.bf16 %v191, %v187
      %v228 = vpack.c.bf16 %v192, %v188
      %v229 = vpack.c.bf16 %v193, %v189
      %v230 = vpack.c.bf16 %v198, %v194
      %v231 = vpack.c.bf16 %v199, %v195
      %v232 = vpack.c.bf16 %v200, %v196
      %v233 = vpack.c.bf16 %v201, %v197
      %v234 = vpack.c.bf16 %v206, %v202
      %v235 = vpack.c.bf16 %v207, %v203
      %v236 = vpack.c.bf16 %v208, %v204
      %v237 = vpack.c.bf16 %v209, %v205
      %v238 = vpack.c.bf16 %v214, %v210
      %v239 = vpack.c.bf16 %v215, %v211
      %v240 = vpack.c.bf16 %v216, %v212
      %v241 = vpack.c.bf16 %v217, %v213
      %v242 = vpack.c.bf16 %v218, %v218
      %v243 = vpack.c.bf16 %v219, %v219
      %v244 = vpack.c.bf16 %v220, %v220
      %v245 = vpack.c.bf16 %v221, %v221
      %v246 = vld [vmem:[%s1] sm:$0xf]
      %v247 = vld [vmem:[%s1 + $0x4] sm:$0xf]
      %v248 = vld [vmem:[%s1 + $0x8] sm:$0xf]
      %v249 = vld [vmem:[%s1 + $0xc] sm:$0xf]
      %v250 = vld [vmem:[%s1 + $0x10] sm:$0xf]
      %v251 = vld [vmem:[%s1 + $0x14] sm:$0xf]
      %v252 = vld [vmem:[%s1 + $0x18] sm:$0xf]
      %v253 = vld [vmem:[%s1 + $0x1c] sm:$0xf]
      %v254 = vld [vmem:[%s1 + $0x20] sm:$0xf]
      %v255 = vld [vmem:[%s1 + $0x24] sm:$0xf]
      %v256 = vld [vmem:[%s1 + $0x28] sm:$0xf]
      %v257 = vld [vmem:[%s1 + $0x2c] sm:$0xf]
      %v258 = vld [vmem:[%s1 + $0x30] sm:$0xf]
      %v259 = vld [vmem:[%s1 + $0x34] sm:$0xf]
      %v260 = vld [vmem:[%s1 + $0x38] sm:$0xf]
      %v261 = vld [vmem:[%s1 + $0x3c] sm:$0xf]
      %v262 = vld [vmem:[%s1 + $0x40] sm:$0xf]
      %v263 = vld [vmem:[%s1 + $0x44] sm:$0xf]
      %v264 = vld [vmem:[%s1 + $0x48] sm:$0xf]
      %v265 = vld [vmem:[%s1 + $0x4c] sm:$0xf]
      %v266 = vld [vmem:[%s1 + $0x50] sm:$0xf]
      %v267 = vld [vmem:[%s1 + $0x54] sm:$0xf]
      %v268 = vld [vmem:[%s1 + $0x58] sm:$0xf]
      %v269 = vld [vmem:[%s1 + $0x5c] sm:$0xf]
      %v270 = vld [vmem:[%s1 + $0x60] sm:$0xf]
      %v271 = vld [vmem:[%s1 + $0x64] sm:$0xf]
      %v272 = vld [vmem:[%s1 + $0x68] sm:$0xf]
      %v273 = vld [vmem:[%s1 + $0x6c] sm:$0xf]
      %v274 = vld [vmem:[%s1 + $0x70] sm:$0xf]
      %v275 = vld [vmem:[%s1 + $0x74] sm:$0xf]
      %v276 = vld [vmem:[%s1 + $0x78] sm:$0xf]
      %v277 = vld [vmem:[%s1 + $0x7c] sm:$0xf]
      %v278 = vld [vmem:[%s1 + $0x80] sm:$0xf]
      %v279 = vld [vmem:[%s1 + $0x84] sm:$0xf]
      %v280 = vld [vmem:[%s1 + $0x88] sm:$0xf]
      %v281 = vld [vmem:[%s1 + $0x8c] sm:$0xf]
      %v282 = vld [vmem:[%s1 + $0x90] sm:$0xf]
      %v283 = vld [vmem:[%s1 + $0x94] sm:$0xf]
      %v284 = vld [vmem:[%s1 + $0x98] sm:$0xf]
      %v285 = vld [vmem:[%s1 + $0x9c] sm:$0xf]
      %v286 = vld [vmem:[%s1 + $0xa0] sm:$0xf]
      %v287 = vld [vmem:[%s1 + $0xa4] sm:$0xf]
      %v288 = vld [vmem:[%s1 + $0xa8] sm:$0xf]
      %v289 = vld [vmem:[%s1 + $0xac] sm:$0xf]
      %v290 = vld [vmem:[%s1 + $0xb0] sm:$0xf]
      %v291 = vld [vmem:[%s1 + $0xb4] sm:$0xf]
      %v292 = vld [vmem:[%s1 + $0xb8] sm:$0xf]
      %v293 = vld [vmem:[%s1 + $0xbc] sm:$0xf]
      %v294 = vld [vmem:[%s1 + $0xc0] sm:$0xf]
      %v295 = vld [vmem:[%s1 + $0xc4] sm:$0xf]
      %v296 = vld [vmem:[%s1 + $0xc8] sm:$0xf]
      %v297 = vld [vmem:[%s1 + $0xcc] sm:$0xf]
      %v298 = vld [vmem:[%s1 + $0xd0] sm:$0xf]
      %v299 = vld [vmem:[%s1 + $0xd4] sm:$0xf]
      %v300 = vld [vmem:[%s1 + $0xd8] sm:$0xf]
      %v301 = vld [vmem:[%s1 + $0xdc] sm:$0xf]
      %v302 = vld [vmem:[%s1 + $0xe0] sm:$0xf]
      %v303 = vld [vmem:[%s1 + $0xe4] sm:$0xf]
      %v304 = vld [vmem:[%s1 + $0xe8] sm:$0xf]
      %v305 = vld [vmem:[%s1 + $0xec] sm:$0xf]
      %v306 = vld [vmem:[%s1 + $0xf0] sm:$0xf]
      %v307 = vld [vmem:[%s1 + $0xf4] sm:$0xf]
      %v308 = vld [vmem:[%s1 + $0xf8] sm:$0xf]
      %v309 = vld [vmem:[%s1 + $0xfc] sm:$0xf]
      %v310 = vld [vmem:[%s2] sm:$0x1]
      %v312 = vlaneseq
      %v313 = vshrl.u32 %v312, 7
      %v314 = vsub.s32 0, %v313
      %v315 = vrot.slane %v310, %v314
      %v381 = vunpack.c.l.b16 %v246
      %v382 = vunpack.c.l.b16 %v247
      %v383 = vunpack.c.l.b16 %v248
      %v384 = vunpack.c.l.b16 %v249
      %v385 = vunpack.c.l.b16 %v250
      %v386 = vunpack.c.l.b16 %v251
      %v387 = vunpack.c.l.b16 %v252
      %v388 = vunpack.c.l.b16 %v253
      %v389 = vunpack.c.l.b16 %v254
      %v390 = vunpack.c.l.b16 %v255
      %v391 = vunpack.c.l.b16 %v256
      %v392 = vunpack.c.l.b16 %v257
      %v393 = vunpack.c.l.b16 %v258
      %v394 = vunpack.c.l.b16 %v259
      %v395 = vunpack.c.l.b16 %v260
      %v396 = vunpack.c.l.b16 %v261
      %v397 = vunpack.c.l.b16 %v262
      %v398 = vunpack.c.l.b16 %v263
      %v399 = vunpack.c.l.b16 %v264
      %v400 = vunpack.c.l.b16 %v265
      %v401 = vunpack.c.l.b16 %v266
      %v402 = vunpack.c.l.b16 %v267
      %v403 = vunpack.c.l.b16 %v268
      %v404 = vunpack.c.l.b16 %v269
      %v405 = vunpack.c.l.b16 %v270
      %v406 = vunpack.c.l.b16 %v271
      %v407 = vunpack.c.l.b16 %v272
      %v408 = vunpack.c.l.b16 %v273
      %v409 = vunpack.c.l.b16 %v274
      %v410 = vunpack.c.l.b16 %v275
      %v411 = vunpack.c.l.b16 %v276
      %v412 = vunpack.c.l.b16 %v277
      %v413 = vunpack.c.l.b16 %v278
      %v414 = vunpack.c.l.b16 %v279
      %v415 = vunpack.c.l.b16 %v280
      %v416 = vunpack.c.l.b16 %v281
      %v417 = vunpack.c.l.b16 %v282
      %v418 = vunpack.c.l.b16 %v283
      %v419 = vunpack.c.l.b16 %v284
      %v420 = vunpack.c.l.b16 %v285
      %v421 = vunpack.c.l.b16 %v286
      %v422 = vunpack.c.l.b16 %v287
      %v423 = vunpack.c.l.b16 %v288
      %v424 = vunpack.c.l.b16 %v289
      %v425 = vunpack.c.l.b16 %v290
      %v426 = vunpack.c.l.b16 %v291
      %v427 = vunpack.c.l.b16 %v292
      %v428 = vunpack.c.l.b16 %v293
      %v429 = vunpack.c.l.b16 %v294
      %v430 = vunpack.c.l.b16 %v295
      %v431 = vunpack.c.l.b16 %v296
      %v432 = vunpack.c.l.b16 %v297
      %v433 = vunpack.c.l.b16 %v298
      %v434 = vunpack.c.l.b16 %v299
      %v435 = vunpack.c.l.b16 %v300
      %v436 = vunpack.c.l.b16 %v301
      %v437 = vunpack.c.l.b16 %v302
      %v438 = vunpack.c.l.b16 %v303
      %v439 = vunpack.c.l.b16 %v304
      %v440 = vunpack.c.l.b16 %v305
      %v441 = vunpack.c.l.b16 %v306
      %v442 = vunpack.c.l.b16 %v307
      %v443 = vunpack.c.l.b16 %v308
      %v444 = vunpack.c.l.b16 %v309
      %v445 = vpack.c.b16 %v382, %v381
      %v446 = vpack.c.b16 %v384, %v383
      %v447 = vpack.c.b16 %v386, %v385
      %v448 = vpack.c.b16 %v388, %v387
      %v449 = vpack.c.b16 %v390, %v389
      %v450 = vpack.c.b16 %v392, %v391
      %v451 = vpack.c.b16 %v394, %v393
      %v452 = vpack.c.b16 %v396, %v395
      %v453 = vpack.c.b16 %v398, %v397
      %v454 = vpack.c.b16 %v400, %v399
      %v455 = vpack.c.b16 %v402, %v401
      %v456 = vpack.c.b16 %v404, %v403
      %v457 = vpack.c.b16 %v406, %v405
      %v458 = vpack.c.b16 %v408, %v407
      %v459 = vpack.c.b16 %v410, %v409
      %v460 = vpack.c.b16 %v412, %v411
      %v461 = vpack.c.b16 %v414, %v413
      %v462 = vpack.c.b16 %v416, %v415
      %v463 = vpack.c.b16 %v418, %v417
      %v464 = vpack.c.b16 %v420, %v419
      %v465 = vpack.c.b16 %v422, %v421
      %v466 = vpack.c.b16 %v424, %v423
      %v467 = vpack.c.b16 %v426, %v425
      %v468 = vpack.c.b16 %v428, %v427
      %v469 = vpack.c.b16 %v430, %v429
      %v470 = vpack.c.b16 %v432, %v431
      %v471 = vpack.c.b16 %v434, %v433
      %v472 = vpack.c.b16 %v436, %v435
      %v473 = vpack.c.b16 %v438, %v437
      %v474 = vpack.c.b16 %v440, %v439
      %v475 = vpack.c.b16 %v442, %v441
      %v476 = vpack.c.b16 %v444, %v443
      %509 = vmatprep.subr.bf16.mxu0 0
      %510 = vmatpush1.bf16.msra.mxu0 %v452
      %511 = vmatprep.subr.bf16.mxu0 0
      %512 = vmatpush1.bf16.msra.mxu0 %v451
      %513 = vmatprep.subr.bf16.mxu0 0
      %514 = vmatpush1.bf16.msra.mxu0 %v450
      %515 = vmatprep.subr.bf16.mxu0 0
      %516 = vmatpush1.bf16.msra.mxu0 %v449
      %517 = vmatprep.subr.bf16.mxu0 0
      %518 = vmatpush1.bf16.msra.mxu0 %v448
      %519 = vmatprep.subr.bf16.mxu0 0
      %520 = vmatpush1.bf16.msra.mxu0 %v447
      %521 = vmatprep.subr.bf16.mxu0 0
      %522 = vmatpush1.bf16.msra.mxu0 %v446
      %523 = vmatprep.subr.bf16.mxu0 0
      %524 = vmatpush1.bf16.msra.mxu0 %v445
      %525 = vmatprep.subr.bf16.mxu0 0
      %526 = vmatpush2.bf16.msra.mxu0 %v460
      %527 = vmatprep.subr.bf16.mxu0 0
      %528 = vmatpush2.bf16.msra.mxu0 %v459
      %529 = vmatprep.subr.bf16.mxu0 0
      %530 = vmatpush2.bf16.msra.mxu0 %v458
      %531 = vmatprep.subr.bf16.mxu0 0
      %532 = vmatpush2.bf16.msra.mxu0 %v457
      %533 = vmatprep.subr.bf16.mxu0 0
      %534 = vmatpush2.bf16.msra.mxu0 %v456
      %535 = vmatprep.subr.bf16.mxu0 0
      %536 = vmatpush2.bf16.msra.mxu0 %v455
      %537 = vmatprep.subr.bf16.mxu0 0
      %538 = vmatpush2.bf16.msra.mxu0 %v454
      %539 = vmatprep.subr.bf16.mxu0 0
      %540 = vmatpush2.bf16.msra.mxu0 %v453
      %541 = vmatprep.mubr.bf16.mxu0 %v223
      %542 = vmatmul.mubr.bf16.gmra.mxu0 %v222
      %v543 = vpop.f32.mrf.mxu0
      %v544 = vadd.f32 %v315, %v543
      %v545 = vpop.f32.mrf.mxu0
      %v546 = vpop.f32.mrf.mxu0
      %v547 = vadd.f32 %v315, %v546
      %v548 = vpop.f32.mrf.mxu0
      %549 = vmatprep.mubr.bf16.mxu0 %v227
      %550 = vmatmul.mubr.bf16.gmra.mxu0 %v226
      %v551 = vpop.f32.mrf.mxu0
      %v552 = vadd.f32 %v315, %v551
      %v553 = vpop.f32.mrf.mxu0
      %v554 = vpop.f32.mrf.mxu0
      %v555 = vadd.f32 %v315, %v554
      %v556 = vpop.f32.mrf.mxu0
      %557 = vmatprep.mubr.bf16.mxu0 %v231
      %558 = vmatmul.mubr.bf16.gmra.mxu0 %v230
      %v559 = vpop.f32.mrf.mxu0
      %v560 = vadd.f32 %v315, %v559
      %v561 = vpop.f32.mrf.mxu0
      %v562 = vpop.f32.mrf.mxu0
      %v563 = vadd.f32 %v315, %v562
      %v564 = vpop.f32.mrf.mxu0
      %565 = vmatprep.mubr.bf16.mxu0 %v235
      %566 = vmatmul.mubr.bf16.gmra.mxu0 %v234
      %v567 = vpop.f32.mrf.mxu0
      %v568 = vadd.f32 %v315, %v567
      %v569 = vpop.f32.mrf.mxu0
      %v570 = vpop.f32.mrf.mxu0
      %v571 = vadd.f32 %v315, %v570
      %v572 = vpop.f32.mrf.mxu0
      %573 = vmatprep.mubr.bf16.mxu0 %v239
      %574 = vmatmul.mubr.bf16.gmra.mxu0 %v238
      %v575 = vpop.f32.mrf.mxu0
      %v576 = vadd.f32 %v315, %v575
      %v577 = vpop.f32.mrf.mxu0
      %v578 = vpop.f32.mrf.mxu0
      %v579 = vadd.f32 %v315, %v578
      %v580 = vpop.f32.mrf.mxu0
      %581 = vmatprep.mubr.bf16.mxu0 %v243
      %582 = vmatmul.mubr.bf16.gmra.mxu0 %v242
      %v583 = vpop.f32.mrf.mxu0
      %v584 = vadd.f32 %v315, %v583
      %v585 = vpop.f32.mrf.mxu0
      %v586 = vpop.f32.mrf.mxu0
      %v587 = vpop.f32.mrf.mxu0
      %588 = vdwg.mxu0
      %589 = vmatprep.subr.bf16.mxu0 0
      %590 = vmatpush1.bf16.msra.mxu0 %v468
      %591 = vmatprep.subr.bf16.mxu0 0
      %592 = vmatpush1.bf16.msra.mxu0 %v467
      %593 = vmatprep.subr.bf16.mxu0 0
      %594 = vmatpush1.bf16.msra.mxu0 %v466
      %595 = vmatprep.subr.bf16.mxu0 0
      %596 = vmatpush1.bf16.msra.mxu0 %v465
      %597 = vmatprep.subr.bf16.mxu0 0
      %598 = vmatpush1.bf16.msra.mxu0 %v464
      %599 = vmatprep.subr.bf16.mxu0 0
      %600 = vmatpush1.bf16.msra.mxu0 %v463
      %601 = vmatprep.subr.bf16.mxu0 0
      %602 = vmatpush1.bf16.msra.mxu0 %v462
      %603 = vmatprep.subr.bf16.mxu0 0
      %604 = vmatpush1.bf16.msra.mxu0 %v461
      %605 = vmatprep.subr.bf16.mxu0 0
      %606 = vmatpush2.bf16.msra.mxu0 %v476
      %607 = vmatprep.subr.bf16.mxu0 0
      %608 = vmatpush2.bf16.msra.mxu0 %v475
      %609 = vmatprep.subr.bf16.mxu0 0
      %610 = vmatpush2.bf16.msra.mxu0 %v474
      %611 = vmatprep.subr.bf16.mxu0 0
      %612 = vmatpush2.bf16.msra.mxu0 %v473
      %613 = vmatprep.subr.bf16.mxu0 0
      %614 = vmatpush2.bf16.msra.mxu0 %v472
      %615 = vmatprep.subr.bf16.mxu0 0
      %616 = vmatpush2.bf16.msra.mxu0 %v471
      %617 = vmatprep.subr.bf16.mxu0 0
      %618 = vmatpush2.bf16.msra.mxu0 %v470
      %619 = vmatprep.subr.bf16.mxu0 0
      %620 = vmatpush2.bf16.msra.mxu0 %v469
      %621 = vmatprep.mubr.bf16.mxu0 %v225
      %622 = vmatmul.mubr.bf16.gmra.mxu0 %v224
      %v623 = vpop.f32.mrf.mxu0
      %v624 = vadd.f32 %v544, %v623
      %v625 = vpop.f32.mrf.mxu0
      %v626 = vpop.f32.mrf.mxu0
      %v627 = vadd.f32 %v547, %v626
      %v628 = vpop.f32.mrf.mxu0
      %629 = vmatprep.mubr.bf16.mxu0 %v229
      %630 = vmatmul.mubr.bf16.gmra.mxu0 %v228
      %v631 = vpop.f32.mrf.mxu0
      %v632 = vadd.f32 %v552, %v631
      %v633 = vpop.f32.mrf.mxu0
      %v634 = vpop.f32.mrf.mxu0
      %v635 = vadd.f32 %v555, %v634
      %v636 = vpop.f32.mrf.mxu0
      %637 = vmatprep.mubr.bf16.mxu0 %v233
      %638 = vmatmul.mubr.bf16.gmra.mxu0 %v232
      %v639 = vpop.f32.mrf.mxu0
      %v640 = vadd.f32 %v560, %v639
      %v641 = vpop.f32.mrf.mxu0
      %v642 = vpop.f32.mrf.mxu0
      %v643 = vadd.f32 %v563, %v642
      %v644 = vpop.f32.mrf.mxu0
      %645 = vmatprep.mubr.bf16.mxu0 %v237
      %646 = vmatmul.mubr.bf16.gmra.mxu0 %v236
      %v647 = vpop.f32.mrf.mxu0
      %v648 = vadd.f32 %v568, %v647
      %v649 = vpop.f32.mrf.mxu0
      %v650 = vpop.f32.mrf.mxu0
      %v651 = vadd.f32 %v571, %v650
      %v652 = vpop.f32.mrf.mxu0
      %653 = vmatprep.mubr.bf16.mxu0 %v241
      %654 = vmatmul.mubr.bf16.gmra.mxu0 %v240
      %v655 = vpop.f32.mrf.mxu0
      %v656 = vadd.f32 %v576, %v655
      %v657 = vpop.f32.mrf.mxu0
      %v658 = vpop.f32.mrf.mxu0
      %v659 = vadd.f32 %v579, %v658
      %v660 = vpop.f32.mrf.mxu0
      %661 = vmatprep.mubr.bf16.mxu0 %v245
      %662 = vmatmul.mubr.bf16.gmra.mxu0 %v244
      %v663 = vpop.f32.mrf.mxu0
      %v664 = vadd.f32 %v584, %v663
      %v665 = vpop.f32.mrf.mxu0
      %v666 = vpop.f32.mrf.mxu0
      %v667 = vpop.f32.mrf.mxu0
      %668 = vdwg.mxu0
      %v669 = vmax.f32 %v624, 0.0
      %v670 = vmax.f32 %v627, 0.0
      %v671 = vmax.f32 %v632, 0.0
      %v672 = vmax.f32 %v635, 0.0
      %v673 = vmax.f32 %v640, 0.0
      %v674 = vmax.f32 %v643, 0.0
      %v675 = vmax.f32 %v648, 0.0
      %v676 = vmax.f32 %v651, 0.0
      %v677 = vmax.f32 %v656, 0.0
      %v678 = vmax.f32 %v659, 0.0
      %v679 = vmax.f32 %v664, 0.0
      %680 = vst [vmem:[%s175] sm:$0xff] %v669
      %681 = vst [vmem:[%s175 + $0x8] sm:$0xff] %v670
      %682 = vst [vmem:[%s175 + $0x10] sm:$0xff] %v671
      %683 = vst [vmem:[%s175 + $0x18] sm:$0xff] %v672
      %684 = vst [vmem:[%s175 + $0x20] sm:$0xff] %v673
      %685 = vst [vmem:[%s175 + $0x28] sm:$0xff] %v674
      %686 = vst [vmem:[%s175 + $0x30] sm:$0xff] %v675
      %687 = vst [vmem:[%s175 + $0x38] sm:$0xff] %v676
      %688 = vst [vmem:[%s175 + $0x40] sm:$0xff] %v677
      %689 = vst [vmem:[%s175 + $0x48] sm:$0xff] %v678
      %690 = vst [vmem:[%s175 + $0x50] sm:$0xff] %v679
      %s691 = smul.u32 11, %s14
      %p692 = scmp.lt.s32.totalorder %s691, 21
      %s693 = scalar_select %p692, %s691, 21
      %s694 = smul.addr %s693, 8
      %s695 = scalar_lea.vmem %s3, %s694
      // Predicated region
      $region33: #{deepmind_forward.5} parent=31 // pred_check
        %p696 = pneg %p100
      $region34: #{deepmind_forward.5} parent=31 // pred_check_branch
        %698 = sbr.rel (%p696) target = $region36
      $region35: #{deepmind_forward.5} parent=31 // pred_region
        %s699 = smul.u32 11, %s14
      $region36: #{deepmind_forward.5} parent=31 // pred_fallthru
        _
    $region32: #{deepmind_forward.5} parent=5 // pred_fallthru
      _
    %p700 = scmp.le.s32.totalorder 2, %s9
    // Predicated region
    $region37: #{deepmind_forward.5} parent=5 // pred_check
      %p701 = pneg %p700
    $region38: #{deepmind_forward.5} parent=5 // pred_check_branch
      %703 = sbr.rel (%p701) target = $region40
    $region39: #{deepmind_forward.5} parent=5 // pred_region
      %s704 = ssub.s32 %s9, 2
      // Predicated region
      $region41: #{deepmind_forward.5} parent=39 // pred_check
        %p705 = pneg %p106
      $region42: #{deepmind_forward.5} parent=39 // pred_check_branch
        %707 = sbr.rel (%p705) target = $region44
      $region43: #{deepmind_forward.5} parent=39 // pred_region
        %s708 = smul.u32 11, %s15
        %p709 = scmp.lt.s32.totalorder %s708, 21
        %s710 = scalar_select %p709, %s708, 21
        %s711 = smul.addr %s710, 8
        %s712 = scalar_lea.vmem %s3, %s711
      $region44: #{deepmind_forward.5} parent=39 // pred_fallthru
        _
    $region40: #{deepmind_forward.5} parent=5 // pred_fallthru
      _
  $region6: #{deepmind_forward.5} parent=0 // loop_footer
    %s13 = sadd.s32 1, %s9
  $region7: #{deepmind_forward.5} parent=0 // loop_footer_branch
    %8 = sbr.rel target = $region3
  $region8: #{deepmind_forward.5} parent=0 // loop_exit
    _

// kernel: deepmind_forward.6
$region0: #{deepmind_forward.6}
  #allocation0 [shape = 'u32[]', space=smem, size = 0x4, offset = 0x4, fixed_abs, tag = 'smem constant byte address 0x4 - core index']
  #allocation1 [shape = 'u32[144,128]{1,0:T(1,128)}', space=vmem, size = 0x12000, scoped, tag = 'internal scratch']
  %s0 = inlined_call_operand.vmem [shape: f32[112,576], index: 0, kind: input, shape index: {}]
  %s1 = inlined_call_operand.vmem [shape: bf16[576,128], index: 1, kind: input, shape index: {}]
  %s2 = inlined_call_operand.vmem [shape: f32[1,128], index: 2, kind: input, shape index: {}]
  %s3 = inlined_call_operand.vmem [shape: f32[112,128], index: 3, kind: output, shape index: {}]
  %s4 = sld [smem:[#allocation0]]
  $region45: #{deepmind_forward.6} parent=0
    _
  %s6 = ssub.s32 1, %s4
  %s7 = scalar_select 0, %s6, %s4
  loop: start=0, step=1, limit=4
  $region2: #{deepmind_forward.6} parent=0 // loop_pre_header
    _
  $region3: #{deepmind_forward.6} parent=0 // loop_header
    %s9 = sphi 0, %s13
    %p10 = scmp.ge.s32.totalorder %s9, 4
    %s19 = sphi 0, %s21
    %s22 = sphi 0, %s19
    %s23 = sphi 0, %s22
    %s39 = sphi 0, %s23
    %s43 = sphi 0, %s43
    %s45 = sphi 0, %s43
    %s46 = sphi 0, %s45
    %s60 = sphi 0, %s46
    %s64 = sphi 0, %s64
    %s66 = sphi 0, %s64
    %s67 = sphi 0, %s66
    %s81 = sphi 0, %s67
    %s87 = sphi 0, %s89
    %s90 = sphi 0, %s87
    %s91 = sphi 0, %s90
    %s107 = sphi 0, %s91
  $region4: #{deepmind_forward.6} parent=0 // loop_header_branch
    %12 = sbr.rel (%p10) target = $region8
  $region5: #{deepmind_forward.6} parent=0 // loop_body
    %s14 = ssub.s32 %s9, 1
    %s15 = ssub.s32 %s9, 2
    %s16 = sadd.s32 %s9, 1
    %s17 = ssub.s32 %s9, %s16
    %p18 = scmp.eq.s32.totalorder %s17, 0
    %s20 = sadd.s32 %s19, 1
    %s21 = scalar_select %p18, %s19, %s20
    %p24 = pneg %p18
    %p25 = scmp.eq.s32.totalorder %s9, 1
    %p26 = por %p24, %p25
    %p27 = scmp.ne.s32.totalorder %s19, %s22
    %p28 = scmp.eq.s32.totalorder %s9, 0
    %p29 = por %p27, %p28
    %p30 = scmp.ne.s32.totalorder %s19, %s22
    %p31 = scmp.eq.s32.totalorder %s14, 1
    %p32 = por %p30, %p31
    %p33 = scmp.ne.s32.totalorder %s22, %s23
    %p34 = scmp.eq.s32.totalorder %s14, 0
    %p35 = por %p33, %p34
    %p36 = scmp.ne.s32.totalorder %s22, %s23
    %p37 = scmp.eq.s32.totalorder %s15, 1
    %p38 = por %p36, %p37
    %p40 = scmp.ne.s32.totalorder %s23, %s39
    %p41 = scmp.eq.s32.totalorder %s15, 0
    %p42 = por %p40, %p41
    %s44 = sadd.s32 %s43, 1
    %p47 = scmp.eq.s32.totalorder %s9, 1
    %p48 = scmp.ne.s32.totalorder %s43, %s45
    %p49 = scmp.eq.s32.totalorder %s9, 0
    %p50 = por %p48, %p49
    %p51 = scmp.ne.s32.totalorder %s43, %s45
    %p52 = scmp.eq.s32.totalorder %s14, 1
    %p53 = por %p51, %p52
    %p54 = scmp.ne.s32.totalorder %s45, %s46
    %p55 = scmp.eq.s32.totalorder %s14, 0
    %p56 = por %p54, %p55
    %p57 = scmp.ne.s32.totalorder %s45, %s46
    %p58 = scmp.eq.s32.totalorder %s15, 1
    %p59 = por %p57, %p58
    %p61 = scmp.ne.s32.totalorder %s46, %s60
    %p62 = scmp.eq.s32.totalorder %s15, 0
    %p63 = por %p61, %p62
    %s65 = sadd.s32 %s64, 1
    %p68 = scmp.eq.s32.totalorder %s9, 1
    %p69 = scmp.ne.s32.totalorder %s64, %s66
    %p70 = scmp.eq.s32.totalorder %s9, 0
    %p71 = por %p69, %p70
    %p72 = scmp.ne.s32.totalorder %s64, %s66
    %p73 = scmp.eq.s32.totalorder %s14, 1
    %p74 = por %p72, %p73
    %p75 = scmp.ne.s32.totalorder %s66, %s67
    %p76 = scmp.eq.s32.totalorder %s14, 0
    %p77 = por %p75, %p76
    %p78 = scmp.ne.s32.totalorder %s66, %s67
    %p79 = scmp.eq.s32.totalorder %s15, 1
    %p80 = por %p78, %p79
    %p82 = scmp.ne.s32.totalorder %s67, %s81
    %p83 = scmp.eq.s32.totalorder %s15, 0
    %p84 = por %p82, %p83
    %s85 = ssub.s32 %s9, %s16
    %p86 = scmp.eq.s32.totalorder %s85, 0
    %s88 = sadd.s32 %s87, 1
    %s89 = scalar_select %p86, %s87, %s88
    %p92 = pneg %p86
    %p93 = scmp.eq.s32.totalorder %s9, 1
    %p94 = por %p92, %p93
    %p95 = scmp.ne.s32.totalorder %s87, %s90
    %p96 = scmp.eq.s32.totalorder %s9, 0
    %p97 = por %p95, %p96
    %p98 = scmp.ne.s32.totalorder %s87, %s90
    %p99 = scmp.eq.s32.totalorder %s14, 1
    %p100 = por %p98, %p99
    %p101 = scmp.ne.s32.totalorder %s90, %s91
    %p102 = scmp.eq.s32.totalorder %s14, 0
    %p103 = por %p101, %p102
    %p104 = scmp.ne.s32.totalorder %s90, %s91
    %p105 = scmp.eq.s32.totalorder %s15, 1
    %p106 = por %p104, %p105
    %p108 = scmp.ne.s32.totalorder %s91, %s107
    %p109 = scmp.eq.s32.totalorder %s15, 0
    %p110 = por %p108, %p109
    %p111 = scmp.le.s32.totalorder 1, %s9
    %p112 = scmp.lt.s32.totalorder %s9, 3
    %p113 = pnand %p111, %p112
    %p114 = pneg %p113
    // Predicated region
    $region9: #{deepmind_forward.6} parent=5 // pred_check
      _
    $region10: #{deepmind_forward.6} parent=5 // pred_check_branch
      %116 = sbr.rel (%p113) target = $region12
    $region11: #{deepmind_forward.6} parent=5 // pred_region
      %s117 = ssub.s32 %s9, 1
      // Predicated region
      $region13: #{deepmind_forward.6} parent=11 // pred_check
        %p118 = pneg %p56
      $region14: #{deepmind_forward.6} parent=11 // pred_check_branch
        %120 = sbr.rel (%p118) target = $region16
      $region15: #{deepmind_forward.6} parent=11 // pred_region
        _
      $region16: #{deepmind_forward.6} parent=11 // pred_fallthru
        _
      // Predicated region
      $region17: #{deepmind_forward.6} parent=11 // pred_check
        %p121 = pneg %p77
      $region18: #{deepmind_forward.6} parent=11 // pred_check_branch
        %123 = sbr.rel (%p121) target = $region20
      $region19: #{deepmind_forward.6} parent=11 // pred_region
        _
      $region20: #{deepmind_forward.6} parent=11 // pred_fallthru
        _
    $region12: #{deepmind_forward.6} parent=5 // pred_fallthru
      _
    %p124 = scmp.lt.s32.totalorder %s9, 2
    // Predicated region
    $region21: #{deepmind_forward.6} parent=5 // pred_check
      %p125 = pneg %p124
    $region22: #{deepmind_forward.6} parent=5 // pred_check_branch
      %127 = sbr.rel (%p125) target = $region24
    $region23: #{deepmind_forward.6} parent=5 // pred_region
      // Predicated region
      $region25: #{deepmind_forward.6} parent=23 // pred_check
        %p128 = pneg %p29
      $region26: #{deepmind_forward.6} parent=23 // pred_check_branch
        %130 = sbr.rel (%p128) target = $region28
      $region27: #{deepmind_forward.6} parent=23 // pred_region
        %s131 = smul.u32 7, %s9
        %p132 = scmp.lt.s32.totalorder %s131, 13
        %s133 = scalar_select %p132, %s131, 13
        %s134 = smul.addr %s133, 5
        %s135 = smul.addr %s134, 8
        %s136 = scalar_lea.vmem %s0, %s135
        %s137 = smul.u32 7, %s9
      $region28: #{deepmind_forward.6} parent=23 // pred_fallthru
        _
    $region24: #{deepmind_forward.6} parent=5 // pred_fallthru
      _
    %p138 = scmp.le.s32.totalorder 1, %s9
    %p139 = scmp.lt.s32.totalorder %s9, 3
    %p140 = pnand %p138, %p139
    %p141 = pneg %p140
    // Predicated region
    $region29: #{deepmind_forward.6} parent=5 // pred_check
      _
    $region30: #{deepmind_forward.6} parent=5 // pred_check_branch
      %143 = sbr.rel (%p140) target = $region32
    $region31: #{deepmind_forward.6} parent=5 // pred_region
      %s144 = ssub.s32 %s9, 1
      %s145 = smul.u32 7, %s14
      %p146 = scmp.lt.s32.totalorder %s145, 13
      %s147 = scalar_select %p146, %s145, 13
      %s148 = smul.addr %s147, 5
      %s149 = smul.addr %s148, 8
      %s150 = scalar_lea.vmem %s0, %s149
      %p151 = pneg %p35
      %p152 = pneg %p32
      %p153 = pneg %p56
      %p154 = pneg %p53
      %p155 = pneg %p77
      %p156 = pneg %p74
      %p157 = pneg %p103
      %p158 = pneg %p100
      %s159 = smul.u32 7, %s14
      %p160 = scmp.lt.s32.totalorder %s159, 13
      %s161 = scalar_select %p160, %s159, 13
      %s162 = smul.addr %s161, 8
      %s163 = scalar_lea.vmem %s3, %s162
      %s164 = smul.u32 7, %s14
      %p165 = scmp.lt.s32.totalorder %s164, 13
      %s166 = scalar_select %p165, %s164, 13
      %s167 = smul.addr %s166, 5
      %s168 = smul.addr %s167, 8
      %s169 = scalar_lea.vmem %s0, %s168
      %s170 = smul.u32 7, %s14
      %s171 = smul.u32 7, %s14
      %p172 = scmp.lt.s32.totalorder %s171, 13
      %s173 = scalar_select %p172, %s171, 13
      %s174 = smul.addr %s173, 8
      %s175 = scalar_lea.vmem %s3, %s174
      %s176 = smul.u32 7, %s14
      %v178 = vld [vmem:[%s169] sm:$0xff]
      %v179 = vld [vmem:[%s169 + $0x8] sm:$0xff]
      %v180 = vld [vmem:[%s169 + $0x10] sm:$0xff]
      %v181 = vld [vmem:[%s169 + $0x18] sm:$0xff]
      %v182 = vld [vmem:[%s169 + $0x20] sm:$0xff]
      %v183 = vld [vmem:[%s169 + $0x28] sm:$0xff]
      %v184 = vld [vmem:[%s169 + $0x30] sm:$0xff]
      %v185 = vld [vmem:[%s169 + $0x38] sm:$0xff]
      %v186 = vld [vmem:[%s169 + $0x40] sm:$0xff]
      %v187 = vld [vmem:[%s169 + $0x48] sm:$0xff]
      %v188 = vld [vmem:[%s169 + $0x50] sm:$0xff]
      %v189 = vld [vmem:[%s169 + $0x58] sm:$0xff]
      %v190 = vld [vmem:[%s169 + $0x60] sm:$0xff]
      %v191 = vld [vmem:[%s169 + $0x68] sm:$0xff]
      %v192 = vld [vmem:[%s169 + $0x70] sm:$0xff]
      %v193 = vld [vmem:[%s169 + $0x78] sm:$0xff]
      %v194 = vld [vmem:[%s169 + $0x80] sm:$0xff]
      %v195 = vld [vmem:[%s169 + $0x88] sm:$0xff]
      %v196 = vld [vmem:[%s169 + $0x90] sm:$0xff]
      %v197 = vld [vmem:[%s169 + $0x98] sm:$0xff]
      %v198 = vld [vmem:[%s169 + $0xa0] sm:$0xff]
      %v199 = vld [vmem:[%s169 + $0xa8] sm:$0xff]
      %v200 = vld [vmem:[%s169 + $0xb0] sm:$0xff]
      %v201 = vld [vmem:[%s169 + $0xb8] sm:$0xff]
      %v202 = vld [vmem:[%s169 + $0xc0] sm:$0xff]
      %v203 = vld [vmem:[%s169 + $0xc8] sm:$0xff]
      %v204 = vld [vmem:[%s169 + $0xd0] sm:$0xff]
      %v205 = vld [vmem:[%s169 + $0xd8] sm:$0xff]
      %v206 = vld [vmem:[%s169 + $0xe0] sm:$0xff]
      %v207 = vld [vmem:[%s169 + $0xe8] sm:$0xff]
      %v208 = vld [vmem:[%s169 + $0xf0] sm:$0xff]
      %v209 = vld [vmem:[%s169 + $0xf8] sm:$0xff]
      %v210 = vld [vmem:[%s169 + $0x100] sm:$0xff]
      %v211 = vld [vmem:[%s169 + $0x108] sm:$0xff]
      %v212 = vld [vmem:[%s169 + $0x110] sm:$0xff]
      %v213 = vpack.c.bf16 %v183, %v178
      %v214 = vpack.c.bf16 %v184, %v179
      %v215 = vpack.c.bf16 %v185, %v180
      %v216 = vpack.c.bf16 %v186, %v181
      %v217 = vpack.c.bf16 %v187, %v182
      %v218 = vpack.c.bf16 %v193, %v188
      %v219 = vpack.c.bf16 %v194, %v189
      %v220 = vpack.c.bf16 %v195, %v190
      %v221 = vpack.c.bf16 %v196, %v191
      %v222 = vpack.c.bf16 %v197, %v192
      %v223 = vpack.c.bf16 %v203, %v198
      %v224 = vpack.c.bf16 %v204, %v199
      %v225 = vpack.c.bf16 %v205, %v200
      %v226 = vpack.c.bf16 %v206, %v201
      %v227 = vpack.c.bf16 %v207, %v202
      %v228 = vpack.c.bf16 %v208, %v208
      %v229 = vpack.c.bf16 %v209, %v209
      %v230 = vpack.c.bf16 %v210, %v210
      %v231 = vpack.c.bf16 %v211, %v211
      %v232 = vpack.c.bf16 %v212, %v212
      %v233 = vld [vmem:[%s1] sm:$0xf]
      %v234 = vld [vmem:[%s1 + $0x4] sm:$0xf]
      %v235 = vld [vmem:[%s1 + $0x8] sm:$0xf]
      %v236 = vld [vmem:[%s1 + $0xc] sm:$0xf]
      %v237 = vld [vmem:[%s1 + $0x10] sm:$0xf]
      %v238 = vld [vmem:[%s1 + $0x14] sm:$0xf]
      %v239 = vld [vmem:[%s1 + $0x18] sm:$0xf]
      %v240 = vld [vmem:[%s1 + $0x1c] sm:$0xf]
      %v241 = vld [vmem:[%s1 + $0x20] sm:$0xf]
      %v242 = vld [vmem:[%s1 + $0x24] sm:$0xf]
      %v243 = vld [vmem:[%s1 + $0x28] sm:$0xf]
      %v244 = vld [vmem:[%s1 + $0x2c] sm:$0xf]
      %v245 = vld [vmem:[%s1 + $0x30] sm:$0xf]
      %v246 = vld [vmem:[%s1 + $0x34] sm:$0xf]
      %v247 = vld [vmem:[%s1 + $0x38] sm:$0xf]
      %v248 = vld [vmem:[%s1 + $0x3c] sm:$0xf]
      %v249 = vld [vmem:[%s1 + $0x40] sm:$0xf]
      %v250 = vld [vmem:[%s1 + $0x44] sm:$0xf]
      %v251 = vld [vmem:[%s1 + $0x48] sm:$0xf]
      %v252 = vld [vmem:[%s1 + $0x4c] sm:$0xf]
      %v253 = vld [vmem:[%s1 + $0x50] sm:$0xf]
      %v254 = vld [vmem:[%s1 + $0x54] sm:$0xf]
      %v255 = vld [vmem:[%s1 + $0x58] sm:$0xf]
      %v256 = vld [vmem:[%s1 + $0x5c] sm:$0xf]
      %v257 = vld [vmem:[%s1 + $0x60] sm:$0xf]
      %v258 = vld [vmem:[%s1 + $0x64] sm:$0xf]
      %v259 = vld [vmem:[%s1 + $0x68] sm:$0xf]
      %v260 = vld [vmem:[%s1 + $0x6c] sm:$0xf]
      %v261 = vld [vmem:[%s1 + $0x70] sm:$0xf]
      %v262 = vld [vmem:[%s1 + $0x74] sm:$0xf]
      %v263 = vld [vmem:[%s1 + $0x78] sm:$0xf]
      %v264 = vld [vmem:[%s1 + $0x7c] sm:$0xf]
      %v265 = vld [vmem:[%s1 + $0x80] sm:$0xf]
      %v266 = vld [vmem:[%s1 + $0x84] sm:$0xf]
      %v267 = vld [vmem:[%s1 + $0x88] sm:$0xf]
      %v268 = vld [vmem:[%s1 + $0x8c] sm:$0xf]
      %v269 = vld [vmem:[%s1 + $0x90] sm:$0xf]
      %v270 = vld [vmem:[%s1 + $0x94] sm:$0xf]
      %v271 = vld [vmem:[%s1 + $0x98] sm:$0xf]
      %v272 = vld [vmem:[%s1 + $0x9c] sm:$0xf]
      %v273 = vld [vmem:[%s1 + $0xa0] sm:$0xf]
      %v274 = vld [vmem:[%s1 + $0xa4] sm:$0xf]
      %v275 = vld [vmem:[%s1 + $0xa8] sm:$0xf]
      %v276 = vld [vmem:[%s1 + $0xac] sm:$0xf]
      %v277 = vld [vmem:[%s1 + $0xb0] sm:$0xf]
      %v278 = vld [vmem:[%s1 + $0xb4] sm:$0xf]
      %v279 = vld [vmem:[%s1 + $0xb8] sm:$0xf]
      %v280 = vld [vmem:[%s1 + $0xbc] sm:$0xf]
      %v281 = vld [vmem:[%s1 + $0xc0] sm:$0xf]
      %v282 = vld [vmem:[%s1 + $0xc4] sm:$0xf]
      %v283 = vld [vmem:[%s1 + $0xc8] sm:$0xf]
      %v284 = vld [vmem:[%s1 + $0xcc] sm:$0xf]
      %v285 = vld [vmem:[%s1 + $0xd0] sm:$0xf]
      %v286 = vld [vmem:[%s1 + $0xd4] sm:$0xf]
      %v287 = vld [vmem:[%s1 + $0xd8] sm:$0xf]
      %v288 = vld [vmem:[%s1 + $0xdc] sm:$0xf]
      %v289 = vld [vmem:[%s1 + $0xe0] sm:$0xf]
      %v290 = vld [vmem:[%s1 + $0xe4] sm:$0xf]
      %v291 = vld [vmem:[%s1 + $0xe8] sm:$0xf]
      %v292 = vld [vmem:[%s1 + $0xec] sm:$0xf]
      %v293 = vld [vmem:[%s1 + $0xf0] sm:$0xf]
      %v294 = vld [vmem:[%s1 + $0xf4] sm:$0xf]
      %v295 = vld [vmem:[%s1 + $0xf8] sm:$0xf]
      %v296 = vld [vmem:[%s1 + $0xfc] sm:$0xf]
      %v297 = vld [vmem:[%s1 + $0x100] sm:$0xf]
      %v298 = vld [vmem:[%s1 + $0x104] sm:$0xf]
      %v299 = vld [vmem:[%s1 + $0x108] sm:$0xf]
      %v300 = vld [vmem:[%s1 + $0x10c] sm:$0xf]
      %v301 = vld [vmem:[%s1 + $0x110] sm:$0xf]
      %v302 = vld [vmem:[%s1 + $0x114] sm:$0xf]
      %v303 = vld [vmem:[%s1 + $0x118] sm:$0xf]
      %v304 = vld [vmem:[%s1 + $0x11c] sm:$0xf]
      %v305 = vld [vmem:[%s2] sm:$0x1]
      %v307 = vlaneseq
      %v308 = vshrl.u32 %v307, 7
      %v309 = vsub.s32 0, %v308
      %v310 = vrot.slane %v305, %v309
      %v384 = vunpack.c.l.b16 %v233
      %v385 = vunpack.c.l.b16 %v234
      %v386 = vunpack.c.l.b16 %v235
      %v387 = vunpack.c.l.b16 %v236
      %v388 = vunpack.c.l.b16 %v237
      %v389 = vunpack.c.l.b16 %v238
      %v390 = vunpack.c.l.b16 %v239
      %v391 = vunpack.c.l.b16 %v240
      %v392 = vunpack.c.l.b16 %v241
      %v393 = vunpack.c.l.b16 %v242
      %v394 = vunpack.c.l.b16 %v243
      %v395 = vunpack.c.l.b16 %v244
      %v396 = vunpack.c.l.b16 %v245
      %v397 = vunpack.c.l.b16 %v246
      %v398 = vunpack.c.l.b16 %v247
      %v399 = vunpack.c.l.b16 %v248
      %v400 = vunpack.c.l.b16 %v249
      %v401 = vunpack.c.l.b16 %v250
      %v402 = vunpack.c.l.b16 %v251
      %v403 = vunpack.c.l.b16 %v252
      %v404 = vunpack.c.l.b16 %v253
      %v405 = vunpack.c.l.b16 %v254
      %v406 = vunpack.c.l.b16 %v255
      %v407 = vunpack.c.l.b16 %v256
      %v408 = vunpack.c.l.b16 %v257
      %v409 = vunpack.c.l.b16 %v258
      %v410 = vunpack.c.l.b16 %v259
      %v411 = vunpack.c.l.b16 %v260
      %v412 = vunpack.c.l.b16 %v261
      %v413 = vunpack.c.l.b16 %v262
      %v414 = vunpack.c.l.b16 %v263
      %v415 = vunpack.c.l.b16 %v264
      %v416 = vunpack.c.l.b16 %v265
      %v417 = vunpack.c.l.b16 %v266
      %v418 = vunpack.c.l.b16 %v267
      %v419 = vunpack.c.l.b16 %v268
      %v420 = vunpack.c.l.b16 %v269
      %v421 = vunpack.c.l.b16 %v270
      %v422 = vunpack.c.l.b16 %v271
      %v423 = vunpack.c.l.b16 %v272
      %v424 = vunpack.c.l.b16 %v273
      %v425 = vunpack.c.l.b16 %v274
      %v426 = vunpack.c.l.b16 %v275
      %v427 = vunpack.c.l.b16 %v276
      %v428 = vunpack.c.l.b16 %v277
      %v429 = vunpack.c.l.b16 %v278
      %v430 = vunpack.c.l.b16 %v279
      %v431 = vunpack.c.l.b16 %v280
      %v432 = vunpack.c.l.b16 %v281
      %v433 = vunpack.c.l.b16 %v282
      %v434 = vunpack.c.l.b16 %v283
      %v435 = vunpack.c.l.b16 %v284
      %v436 = vunpack.c.l.b16 %v285
      %v437 = vunpack.c.l.b16 %v286
      %v438 = vunpack.c.l.b16 %v287
      %v439 = vunpack.c.l.b16 %v288
      %v440 = vunpack.c.l.b16 %v289
      %v441 = vunpack.c.l.b16 %v290
      %v442 = vunpack.c.l.b16 %v291
      %v443 = vunpack.c.l.b16 %v292
      %v444 = vunpack.c.l.b16 %v293
      %v445 = vunpack.c.l.b16 %v294
      %v446 = vunpack.c.l.b16 %v295
      %v447 = vunpack.c.l.b16 %v296
      %v448 = vunpack.c.l.b16 %v297
      %v449 = vunpack.c.l.b16 %v298
      %v450 = vunpack.c.l.b16 %v299
      %v451 = vunpack.c.l.b16 %v300
      %v452 = vunpack.c.l.b16 %v301
      %v453 = vunpack.c.l.b16 %v302
      %v454 = vunpack.c.l.b16 %v303
      %v455 = vunpack.c.l.b16 %v304
      %v456 = vpack.c.b16 %v385, %v384
      %v457 = vpack.c.b16 %v387, %v386
      %v458 = vpack.c.b16 %v389, %v388
      %v459 = vpack.c.b16 %v391, %v390
      %v460 = vpack.c.b16 %v393, %v392
      %v461 = vpack.c.b16 %v395, %v394
      %v462 = vpack.c.b16 %v397, %v396
      %v463 = vpack.c.b16 %v399, %v398
      %v464 = vpack.c.b16 %v401, %v400
      %v465 = vpack.c.b16 %v403, %v402
      %v466 = vpack.c.b16 %v405, %v404
      %v467 = vpack.c.b16 %v407, %v406
      %v468 = vpack.c.b16 %v409, %v408
      %v469 = vpack.c.b16 %v411, %v410
      %v470 = vpack.c.b16 %v413, %v412
      %v471 = vpack.c.b16 %v415, %v414
      %v472 = vpack.c.b16 %v417, %v416
      %v473 = vpack.c.b16 %v419, %v418
      %v474 = vpack.c.b16 %v421, %v420
      %v475 = vpack.c.b16 %v423, %v422
      %v476 = vpack.c.b16 %v425, %v424
      %v477 = vpack.c.b16 %v427, %v426
      %v478 = vpack.c.b16 %v429, %v428
      %v479 = vpack.c.b16 %v431, %v430
      %v480 = vpack.c.b16 %v433, %v432
      %v481 = vpack.c.b16 %v435, %v434
      %v482 = vpack.c.b16 %v437, %v436
      %v483 = vpack.c.b16 %v439, %v438
      %v484 = vpack.c.b16 %v441, %v440
      %v485 = vpack.c.b16 %v443, %v442
      %v486 = vpack.c.b16 %v445, %v444
      %v487 = vpack.c.b16 %v447, %v446
      %v488 = vpack.c.b16 %v449, %v448
      %v489 = vpack.c.b16 %v451, %v450
      %v490 = vpack.c.b16 %v453, %v452
      %v491 = vpack.c.b16 %v455, %v454
      %vm528 = vcmask 523264
      %v530 = vsel %vm528, %v217, 0
      %v533 = vsel %vm528, %v222, 0
      %v536 = vsel %vm528, %v227, 0
      %v539 = vsel %vm528, %v232, 0
      %541 = vmatprep.subr.bf16.mxu0 0
      %542 = vmatpush1.bf16.msra.mxu0 %v463
      %543 = vmatprep.subr.bf16.mxu0 0
      %544 = vmatpush1.bf16.msra.mxu0 %v462
      %545 = vmatprep.subr.bf16.mxu0 0
      %546 = vmatpush1.bf16.msra.mxu0 %v461
      %547 = vmatprep.subr.bf16.mxu0 0
      %548 = vmatpush1.bf16.msra.mxu0 %v460
      %549 = vmatprep.subr.bf16.mxu0 0
      %550 = vmatpush1.bf16.msra.mxu0 %v459
      %551 = vmatprep.subr.bf16.mxu0 0
      %552 = vmatpush1.bf16.msra.mxu0 %v458
      %553 = vmatprep.subr.bf16.mxu0 0
      %554 = vmatpush1.bf16.msra.mxu0 %v457
      %555 = vmatprep.subr.bf16.mxu0 0
      %556 = vmatpush1.bf16.msra.mxu0 %v456
      %557 = vmatprep.subr.bf16.mxu0 0
      %558 = vmatpush2.bf16.msra.mxu0 %v471
      %559 = vmatprep.subr.bf16.mxu0 0
      %560 = vmatpush2.bf16.msra.mxu0 %v470
      %561 = vmatprep.subr.bf16.mxu0 0
      %562 = vmatpush2.bf16.msra.mxu0 %v469
      %563 = vmatprep.subr.bf16.mxu0 0
      %564 = vmatpush2.bf16.msra.mxu0 %v468
      %565 = vmatprep.subr.bf16.mxu0 0
      %566 = vmatpush2.bf16.msra.mxu0 %v467
      %567 = vmatprep.subr.bf16.mxu0 0
      %568 = vmatpush2.bf16.msra.mxu0 %v466
      %569 = vmatprep.subr.bf16.mxu0 0
      %570 = vmatpush2.bf16.msra.mxu0 %v465
      %571 = vmatprep.subr.bf16.mxu0 0
      %572 = vmatpush2.bf16.msra.mxu0 %v464
      %573 = vmatprep.mubr.bf16.mxu0 %v214
      %574 = vmatmul.mubr.bf16.gmra.mxu0 %v213
      %v575 = vpop.f32.mrf.mxu0
      %v576 = vadd.f32 %v310, %v575
      %v577 = vpop.f32.mrf.mxu0
      %v578 = vpop.f32.mrf.mxu0
      %v579 = vadd.f32 %v310, %v578
      %v580 = vpop.f32.mrf.mxu0
      %581 = vmatprep.mubr.bf16.mxu0 %v219
      %582 = vmatmul.mubr.bf16.gmra.mxu0 %v218
      %v583 = vpop.f32.mrf.mxu0
      %v584 = vadd.f32 %v310, %v583
      %v585 = vpop.f32.mrf.mxu0
      %v586 = vpop.f32.mrf.mxu0
      %v587 = vadd.f32 %v310, %v586
      %v588 = vpop.f32.mrf.mxu0
      %589 = vmatprep.mubr.bf16.mxu0 %v224
      %590 = vmatmul.mubr.bf16.gmra.mxu0 %v223
      %v591 = vpop.f32.mrf.mxu0
      %v592 = vadd.f32 %v310, %v591
      %v593 = vpop.f32.mrf.mxu0
      %v594 = vpop.f32.mrf.mxu0
      %v595 = vadd.f32 %v310, %v594
      %v596 = vpop.f32.mrf.mxu0
      %597 = vmatprep.mubr.bf16.mxu0 %v229
      %598 = vmatmul.mubr.bf16.gmra.mxu0 %v228
      %v599 = vpop.f32.mrf.mxu0
      %v600 = vadd.f32 %v310, %v599
      %v601 = vpop.f32.mrf.mxu0
      %v602 = vpop.f32.mrf.mxu0
      %v603 = vpop.f32.mrf.mxu0
      %604 = vdwg.mxu0
      %605 = vmatprep.subr.bf16.mxu0 0
      %606 = vmatpush1.bf16.msra.mxu0 %v479
      %607 = vmatprep.subr.bf16.mxu0 0
      %608 = vmatpush1.bf16.msra.mxu0 %v478
      %609 = vmatprep.subr.bf16.mxu0 0
      %610 = vmatpush1.bf16.msra.mxu0 %v477
      %611 = vmatprep.subr.bf16.mxu0 0
      %612 = vmatpush1.bf16.msra.mxu0 %v476
      %613 = vmatprep.subr.bf16.mxu0 0
      %614 = vmatpush1.bf16.msra.mxu0 %v475
      %615 = vmatprep.subr.bf16.mxu0 0
      %616 = vmatpush1.bf16.msra.mxu0 %v474
      %617 = vmatprep.subr.bf16.mxu0 0
      %618 = vmatpush1.bf16.msra.mxu0 %v473
      %619 = vmatprep.subr.bf16.mxu0 0
      %620 = vmatpush1.bf16.msra.mxu0 %v472
      %621 = vmatprep.subr.bf16.mxu0 0
      %622 = vmatpush2.bf16.msra.mxu0 %v487
      %623 = vmatprep.subr.bf16.mxu0 0
      %624 = vmatpush2.bf16.msra.mxu0 %v486
      %625 = vmatprep.subr.bf16.mxu0 0
      %626 = vmatpush2.bf16.msra.mxu0 %v485
      %627 = vmatprep.subr.bf16.mxu0 0
      %628 = vmatpush2.bf16.msra.mxu0 %v484
      %629 = vmatprep.subr.bf16.mxu0 0
      %630 = vmatpush2.bf16.msra.mxu0 %v483
      %631 = vmatprep.subr.bf16.mxu0 0
      %632 = vmatpush2.bf16.msra.mxu0 %v482
      %633 = vmatprep.subr.bf16.mxu0 0
      %634 = vmatpush2.bf16.msra.mxu0 %v481
      %635 = vmatprep.subr.bf16.mxu0 0
      %636 = vmatpush2.bf16.msra.mxu0 %v480
      %637 = vmatprep.mubr.bf16.mxu0 %v216
      %638 = vmatmul.mubr.bf16.gmra.mxu0 %v215
      %v639 = vpop.f32.mrf.mxu0
      %v640 = vadd.f32 %v576, %v639
      %v641 = vpop.f32.mrf.mxu0
      %v642 = vpop.f32.mrf.mxu0
      %v643 = vadd.f32 %v579, %v642
      %v644 = vpop.f32.mrf.mxu0
      %645 = vmatprep.mubr.bf16.mxu0 %v221
      %646 = vmatmul.mubr.bf16.gmra.mxu0 %v220
      %v647 = vpop.f32.mrf.mxu0
      %v648 = vadd.f32 %v584, %v647
      %v649 = vpop.f32.mrf.mxu0
      %v650 = vpop.f32.mrf.mxu0
      %v651 = vadd.f32 %v587, %v650
      %v652 = vpop.f32.mrf.mxu0
      %653 = vmatprep.mubr.bf16.mxu0 %v226
      %654 = vmatmul.mubr.bf16.gmra.mxu0 %v225
      %v655 = vpop.f32.mrf.mxu0
      %v656 = vadd.f32 %v592, %v655
      %v657 = vpop.f32.mrf.mxu0
      %v658 = vpop.f32.mrf.mxu0
      %v659 = vadd.f32 %v595, %v658
      %v660 = vpop.f32.mrf.mxu0
      %661 = vmatprep.mubr.bf16.mxu0 %v231
      %662 = vmatmul.mubr.bf16.gmra.mxu0 %v230
      %v663 = vpop.f32.mrf.mxu0
      %v664 = vadd.f32 %v600, %v663
      %v665 = vpop.f32.mrf.mxu0
      %v666 = vpop.f32.mrf.mxu0
      %v667 = vpop.f32.mrf.mxu0
      %668 = vdwg.mxu0
      %669 = vmatprep.subr.bf16.mxu0 0
      %670 = vmatpush1.bf16.msra.mxu0 0
      %671 = vmatprep.subr.bf16.mxu0 0
      %672 = vmatpush1.bf16.msra.mxu0 0
      %673 = vmatprep.subr.bf16.mxu0 0
      %674 = vmatpush1.bf16.msra.mxu0 0
      %675 = vmatprep.subr.bf16.mxu0 0
      %676 = vmatpush1.bf16.msra.mxu0 0
      %677 = vmatprep.subr.bf16.mxu0 0
      %678 = vmatpush1.bf16.msra.mxu0 %v491
      %679 = vmatprep.subr.bf16.mxu0 0
      %680 = vmatpush1.bf16.msra.mxu0 %v490
      %681 = vmatprep.subr.bf16.mxu0 0
      %682 = vmatpush1.bf16.msra.mxu0 %v489
      %683 = vmatprep.subr.bf16.mxu0 0
      %684 = vmatpush1.bf16.msra.mxu0 %v488
      %685 = vmatprep.subr.bf16.mxu0 0
      %686 = vmatpush2.bf16.msra.mxu0 0
      %687 = vmatprep.subr.bf16.mxu0 0
      %688 = vmatpush2.bf16.msra.mxu0 0
      %689 = vmatprep.subr.bf16.mxu0 0
      %690 = vmatpush2.bf16.msra.mxu0 0
      %691 = vmatprep.subr.bf16.mxu0 0
      %692 = vmatpush2.bf16.msra.mxu0 0
      %693 = vmatprep.subr.bf16.mxu0 0
      %694 = vmatpush2.bf16.msra.mxu0 0
      %695 = vmatprep.subr.bf16.mxu0 0
      %696 = vmatpush2.bf16.msra.mxu0 0
      %697 = vmatprep.subr.bf16.mxu0 0
      %698 = vmatpush2.bf16.msra.mxu0 0
      %699 = vmatprep.subr.bf16.mxu0 0
      %700 = vmatpush2.bf16.msra.mxu0 0
      %701 = vmatprep.mubr.bf16.mxu0 0
      %702 = vmatmul.mubr.bf16.gmra.mxu0 %v530
      %v703 = vpop.f32.mrf.mxu0
      %v704 = vadd.f32 %v640, %v703
      %v705 = vpop.f32.mrf.mxu0
      %v706 = vpop.f32.mrf.mxu0
      %v707 = vadd.f32 %v643, %v706
      %v708 = vpop.f32.mrf.mxu0
      %709 = vmatprep.mubr.bf16.mxu0 0
      %710 = vmatmul.mubr.bf16.gmra.mxu0 %v533
      %v711 = vpop.f32.mrf.mxu0
      %v712 = vadd.f32 %v648, %v711
      %v713 = vpop.f32.mrf.mxu0
      %v714 = vpop.f32.mrf.mxu0
      %v715 = vadd.f32 %v651, %v714
      %v716 = vpop.f32.mrf.mxu0
      %717 = vmatprep.mubr.bf16.mxu0 0
      %718 = vmatmul.mubr.bf16.gmra.mxu0 %v536
      %v719 = vpop.f32.mrf.mxu0
      %v720 = vadd.f32 %v656, %v719
      %v721 = vpop.f32.mrf.mxu0
      %v722 = vpop.f32.mrf.mxu0
      %v723 = vadd.f32 %v659, %v722
      %v724 = vpop.f32.mrf.mxu0
      %725 = vmatprep.mubr.bf16.mxu0 0
      %726 = vmatmul.mubr.bf16.gmra.mxu0 %v539
      %v727 = vpop.f32.mrf.mxu0
      %v728 = vadd.f32 %v664, %v727
      %v729 = vpop.f32.mrf.mxu0
      %v730 = vpop.f32.mrf.mxu0
      %v731 = vpop.f32.mrf.mxu0
      %732 = vdwg.mxu0
      %v733 = vmax.f32 %v704, 0.0
      %v734 = vmax.f32 %v707, 0.0
      %v735 = vmax.f32 %v712, 0.0
      %v736 = vmax.f32 %v715, 0.0
      %v737 = vmax.f32 %v720, 0.0
      %v738 = vmax.f32 %v723, 0.0
      %v739 = vmax.f32 %v728, 0.0
      %740 = vst [vmem:[%s175] sm:$0xff] %v733
      %741 = vst [vmem:[%s175 + $0x8] sm:$0xff] %v734
      %742 = vst [vmem:[%s175 + $0x10] sm:$0xff] %v735
      %743 = vst [vmem:[%s175 + $0x18] sm:$0xff] %v736
      %744 = vst [vmem:[%s175 + $0x20] sm:$0xff] %v737
      %745 = vst [vmem:[%s175 + $0x28] sm:$0xff] %v738
      %746 = vst [vmem:[%s175 + $0x30] sm:$0xff] %v739
      %s747 = smul.u32 7, %s14
      %p748 = scmp.lt.s32.totalorder %s747, 13
      %s749 = scalar_select %p748, %s747, 13
      %s750 = smul.addr %s749, 8
      %s751 = scalar_lea.vmem %s3, %s750
      // Predicated region
      $region33: #{deepmind_forward.6} parent=31 // pred_check
        %p752 = pneg %p100
      $region34: #{deepmind_forward.6} parent=31 // pred_check_branch
        %754 = sbr.rel (%p752) target = $region36
      $region35: #{deepmind_forward.6} parent=31 // pred_region
        %s755 = smul.u32 7, %s14
      $region36: #{deepmind_forward.6} parent=31 // pred_fallthru
        _
    $region32: #{deepmind_forward.6} parent=5 // pred_fallthru
      _
    %p756 = scmp.le.s32.totalorder 2, %s9
    // Predicated region
    $region37: #{deepmind_forward.6} parent=5 // pred_check
      %p757 = pneg %p756
    $region38: #{deepmind_forward.6} parent=5 // pred_check_branch
      %759 = sbr.rel (%p757) target = $region40
    $region39: #{deepmind_forward.6} parent=5 // pred_region
      %s760 = ssub.s32 %s9, 2
      // Predicated region
      $region41: #{deepmind_forward.6} parent=39 // pred_check
        %p761 = pneg %p106
      $region42: #{deepmind_forward.6} parent=39 // pred_check_branch
        %763 = sbr.rel (%p761) target = $region44
      $region43: #{deepmind_forward.6} parent=39 // pred_region
        %s764 = smul.u32 7, %s15
        %p765 = scmp.lt.s32.totalorder %s764, 13
        %s766 = scalar_select %p765, %s764, 13
        %s767 = smul.addr %s766, 8
        %s768 = scalar_lea.vmem %s3, %s767
      $region44: #{deepmind_forward.6} parent=39 // pred_fallthru
        _
    $region40: #{deepmind_forward.6} parent=5 // pred_fallthru
      _
  $region6: #{deepmind_forward.6} parent=0 // loop_footer
    %s13 = sadd.s32 1, %s9
  $region7: #{deepmind_forward.6} parent=0 // loop_footer_branch
    %8 = sbr.rel target = $region3
  $region8: #{deepmind_forward.6} parent=0 // loop_exit
    _

// kernel: deepmind_forward.7
$region0: #{deepmind_forward.7}
  #allocation0 [shape = 'u32[]', space=smem, size = 0x4, offset = 0x4, fixed_abs, tag = 'smem constant byte address 0x4 - core index']
  #allocation1 [shape = 'u32[144,128]{1,0:T(1,128)}', space=vmem, size = 0x12000, scoped, tag = 'internal scratch']
  %s0 = inlined_call_operand.vmem [shape: f32[2,1568], index: 0, kind: input, shape index: {}]
  %s1 = inlined_call_operand.vmem [shape: bf16[1568,512], index: 1, kind: input, shape index: {}]
  %s2 = inlined_call_operand.vmem [shape: f32[1,512], index: 2, kind: input, shape index: {}]
  %s3 = inlined_call_operand.hbm [shape: f32[2,512], index: 3, kind: output, shape index: {}]
  %s4 = sld [smem:[#allocation0]]
  $region22: #{deepmind_forward.7} parent=0
    _
  %s6 = ssub.s32 1, %s4
  %s7 = scalar_select 0, %s6, %s4
  $region1: #{deepmind_forward.7} parent=0
    #allocation2 [shape = 'u8[4096]{0}', space=vmem, size = 0x1000, scoped, tag = 'output window, operand 0, single buffered']
    #allocation3 [shape = 's32[1]{0}', space=sflag, size = 0x4, scoped, tag = 'scoped memory for deepmind_forward.7']
    %8 = vsyncpa [#allocation3], 0
    // Predicated region
    $region2: #{deepmind_forward.7} parent=1 // pred_check
      _
    $region3: #{deepmind_forward.7} parent=1 // pred_check_branch
      %10 = sbr.rel (0) target = $region5
    $region4: #{deepmind_forward.7} parent=1 // pred_region
      _
    $region5: #{deepmind_forward.7} parent=1 // pred_fallthru
      _
    // Predicated region
    $region6: #{deepmind_forward.7} parent=1 // pred_check
      _
    $region7: #{deepmind_forward.7} parent=1 // pred_check_branch
      %12 = sbr.rel (0) target = $region9
    $region8: #{deepmind_forward.7} parent=1 // pred_region
      _
    $region9: #{deepmind_forward.7} parent=1 // pred_fallthru
      _
    // Predicated region
    $region10: #{deepmind_forward.7} parent=1 // pred_check
      _
    $region11: #{deepmind_forward.7} parent=1 // pred_check_branch
      %14 = sbr.rel (0) target = $region13
    $region12: #{deepmind_forward.7} parent=1 // pred_region
      _
    $region13: #{deepmind_forward.7} parent=1 // pred_fallthru
      _
    %v16 = vld [vmem:[%s0] sm:$0xff]
    %v17 = vld [vmem:[%s0 + $0x8] sm:$0xff]
    %v18 = vld [vmem:[%s0 + $0x10] sm:$0xff]
    %v19 = vld [vmem:[%s0 + $0x18] sm:$0x3]
    %v24 = vcombine.high %v16, %v16
    %v26 = vunpack.c.l.s4 1983009808
    %v27 = vunpack.c.0.s8 %v26
    %v28 = vlaneseq
    %v29 = vshrl.u32 %v28, 7
    %v30 = vsub.s32 %v27, %v29
    %v31 = vrot.slane %v16, %v30
    %v33 = vunpack.c.l.s4 1983009808
    %v34 = vunpack.c.0.s8 %v33
    %v35 = vlaneseq
    %v36 = vshrl.u32 %v35, 7
    %v37 = vsub.s32 %v34, %v36
    %v38 = vrot.slane %v24, %v37
    %v39 = vcombine.high %v31, %v31
    %v40 = vcombine.high %v38, %v38
    %v41 = vcombine.high %v17, %v17
    %v43 = vunpack.c.l.s4 1983009808
    %v44 = vunpack.c.0.s8 %v43
    %v45 = vlaneseq
    %v46 = vshrl.u32 %v45, 7
    %v47 = vsub.s32 %v44, %v46
    %v48 = vrot.slane %v17, %v47
    %v50 = vunpack.c.l.s4 1983009808
    %v51 = vunpack.c.0.s8 %v50
    %v52 = vlaneseq
    %v53 = vshrl.u32 %v52, 7
    %v54 = vsub.s32 %v51, %v53
    %v55 = vrot.slane %v41, %v54
    %v56 = vcombine.high %v48, %v48
    %v57 = vcombine.high %v55, %v55
    %v58 = vcombine.high %v18, %v18
    %v60 = vunpack.c.l.s4 1983009808
    %v61 = vunpack.c.0.s8 %v60
    %v62 = vlaneseq
    %v63 = vshrl.u32 %v62, 7
    %v64 = vsub.s32 %v61, %v63
    %v65 = vrot.slane %v18, %v64
    %v67 = vunpack.c.l.s4 1983009808
    %v68 = vunpack.c.0.s8 %v67
    %v69 = vlaneseq
    %v70 = vshrl.u32 %v69, 7
    %v71 = vsub.s32 %v68, %v70
    %v72 = vrot.slane %v58, %v71
    %v73 = vcombine.high %v65, %v65
    %v74 = vcombine.high %v72, %v72
    %v76 = vunpack.c.l.s4 1983009808
    %v77 = vunpack.c.0.s8 %v76
    %v78 = vlaneseq
    %v79 = vshrl.u32 %v78, 7
    %v80 = vsub.s32 %v77, %v79
    %v81 = vrot.slane %v19, %v80
    %v95 = vpack.c.bf16 %v31, %v31
    %v96 = vpack.c.bf16 %v39, %v39
    %v97 = vpack.c.bf16 %v38, %v38
    %v98 = vpack.c.bf16 %v40, %v40
    %v99 = vpack.c.bf16 %v48, %v48
    %v100 = vpack.c.bf16 %v56, %v56
    %v101 = vpack.c.bf16 %v55, %v55
    %v102 = vpack.c.bf16 %v57, %v57
    %v103 = vpack.c.bf16 %v65, %v65
    %v104 = vpack.c.bf16 %v73, %v73
    %v105 = vpack.c.bf16 %v72, %v72
    %v106 = vpack.c.bf16 %v74, %v74
    %v107 = vpack.c.bf16 %v81, %v81
    %v108 = vld [vmem:[%s1] sm:$0xff]
    %v109 = vld [vmem:[%s1 + $0x8] sm:$0xff]
    %v110 = vld [vmem:[%s1 + $0x10] sm:$0xff]
    %v111 = vld [vmem:[%s1 + $0x18] sm:$0xff]
    %v112 = vld [vmem:[%s1 + $0x20] sm:$0xff]
    %v113 = vld [vmem:[%s1 + $0x28] sm:$0xff]
    %v114 = vld [vmem:[%s1 + $0x30] sm:$0xff]
    %v115 = vld [vmem:[%s1 + $0x38] sm:$0xff]
    %v116 = vld [vmem:[%s1 + $0x40] sm:$0xff]
    %v117 = vld [vmem:[%s1 + $0x48] sm:$0xff]
    %v118 = vld [vmem:[%s1 + $0x50] sm:$0xff]
    %v119 = vld [vmem:[%s1 + $0x58] sm:$0xff]
    %v120 = vld [vmem:[%s1 + $0x60] sm:$0xff]
    %v121 = vld [vmem:[%s1 + $0x68] sm:$0xff]
    %v122 = vld [vmem:[%s1 + $0x70] sm:$0xff]
    %v123 = vld [vmem:[%s1 + $0x78] sm:$0xff]
    %v124 = vld [vmem:[%s1 + $0x80] sm:$0xff]
    %v125 = vld [vmem:[%s1 + $0x88] sm:$0xff]
    %v126 = vld [vmem:[%s1 + $0x90] sm:$0xff]
    %v127 = vld [vmem:[%s1 + $0x98] sm:$0xff]
    %v128 = vld [vmem:[%s1 + $0xa0] sm:$0xff]
    %v129 = vld [vmem:[%s1 + $0xa8] sm:$0xff]
    %v130 = vld [vmem:[%s1 + $0xb0] sm:$0xff]
    %v131 = vld [vmem:[%s1 + $0xb8] sm:$0xff]
    %v132 = vld [vmem:[%s1 + $0xc0] sm:$0xff]
    %v133 = vld [vmem:[%s1 + $0xc8] sm:$0xff]
    %v134 = vld [vmem:[%s1 + $0xd0] sm:$0xff]
    %v135 = vld [vmem:[%s1 + $0xd8] sm:$0xff]
    %v136 = vld [vmem:[%s1 + $0xe0] sm:$0xff]
    %v137 = vld [vmem:[%s1 + $0xe8] sm:$0xff]
    %v138 = vld [vmem:[%s1 + $0xf0] sm:$0xff]
    %v139 = vld [vmem:[%s1 + $0xf8] sm:$0xff]
    %v140 = vld [vmem:[%s1 + $0x100] sm:$0xff]
    %v141 = vld [vmem:[%s1 + $0x108] sm:$0xff]
    %v142 = vld [vmem:[%s1 + $0x110] sm:$0xff]
    %v143 = vld [vmem:[%s1 + $0x118] sm:$0xff]
    %v144 = vld [vmem:[%s1 + $0x120] sm:$0xff]
    %v145 = vld [vmem:[%s1 + $0x128] sm:$0xff]
    %v146 = vld [vmem:[%s1 + $0x130] sm:$0xff]
    %v147 = vld [vmem:[%s1 + $0x138] sm:$0xff]
    %v148 = vld [vmem:[%s1 + $0x140] sm:$0xff]
    %v149 = vld [vmem:[%s1 + $0x148] sm:$0xff]
    %v150 = vld [vmem:[%s1 + $0x150] sm:$0xff]
    %v151 = vld [vmem:[%s1 + $0x158] sm:$0xff]
    %v152 = vld [vmem:[%s1 + $0x160] sm:$0xff]
    %v153 = vld [vmem:[%s1 + $0x168] sm:$0xff]
    %v154 = vld [vmem:[%s1 + $0x170] sm:$0xff]
    %v155 = vld [vmem:[%s1 + $0x178] sm:$0xff]
    %v156 = vld [vmem:[%s1 + $0x180] sm:$0xff]
    %v157 = vld [vmem:[%s1 + $0x188] sm:$0xff]
    %v158 = vld [vmem:[%s1 + $0x190] sm:$0xff]
    %v159 = vld [vmem:[%s1 + $0x198] sm:$0xff]
    %v160 = vld [vmem:[%s1 + $0x1a0] sm:$0xff]
    %v161 = vld [vmem:[%s1 + $0x1a8] sm:$0xff]
    %v162 = vld [vmem:[%s1 + $0x1b0] sm:$0xff]
    %v163 = vld [vmem:[%s1 + $0x1b8] sm:$0xff]
    %v164 = vld [vmem:[%s1 + $0x1c0] sm:$0xff]
    %v165 = vld [vmem:[%s1 + $0x1c8] sm:$0xff]
    %v166 = vld [vmem:[%s1 + $0x1d0] sm:$0xff]
    %v167 = vld [vmem:[%s1 + $0x1d8] sm:$0xff]
    %v168 = vld [vmem:[%s1 + $0x1e0] sm:$0xff]
    %v169 = vld [vmem:[%s1 + $0x1e8] sm:$0xff]
    %v170 = vld [vmem:[%s1 + $0x1f0] sm:$0xff]
    %v171 = vld [vmem:[%s1 + $0x1f8] sm:$0xff]
    %v172 = vld [vmem:[%s1 + $0x200] sm:$0xff]
    %v173 = vld [vmem:[%s1 + $0x208] sm:$0xff]
    %v174 = vld [vmem:[%s1 + $0x210] sm:$0xff]
    %v175 = vld [vmem:[%s1 + $0x218] sm:$0xff]
    %v176 = vld [vmem:[%s1 + $0x220] sm:$0xff]
    %v177 = vld [vmem:[%s1 + $0x228] sm:$0xff]
    %v178 = vld [vmem:[%s1 + $0x230] sm:$0xff]
    %v179 = vld [vmem:[%s1 + $0x238] sm:$0xff]
    %v180 = vld [vmem:[%s1 + $0x240] sm:$0xff]
    %v181 = vld [vmem:[%s1 + $0x248] sm:$0xff]
    %v182 = vld [vmem:[%s1 + $0x250] sm:$0xff]
    %v183 = vld [vmem:[%s1 + $0x258] sm:$0xff]
    %v184 = vld [vmem:[%s1 + $0x260] sm:$0xff]
    %v185 = vld [vmem:[%s1 + $0x268] sm:$0xff]
    %v186 = vld [vmem:[%s1 + $0x270] sm:$0xff]
    %v187 = vld [vmem:[%s1 + $0x278] sm:$0xff]
    %v188 = vld [vmem:[%s1 + $0x280] sm:$0xff]
    %v189 = vld [vmem:[%s1 + $0x288] sm:$0xff]
    %v190 = vld [vmem:[%s1 + $0x290] sm:$0xff]
    %v191 = vld [vmem:[%s1 + $0x298] sm:$0xff]
    %v192 = vld [vmem:[%s1 + $0x2a0] sm:$0xff]
    %v193 = vld [vmem:[%s1 + $0x2a8] sm:$0xff]
    %v194 = vld [vmem:[%s1 + $0x2b0] sm:$0xff]
    %v195 = vld [vmem:[%s1 + $0x2b8] sm:$0xff]
    %v196 = vld [vmem:[%s1 + $0x2c0] sm:$0xff]
    %v197 = vld [vmem:[%s1 + $0x2c8] sm:$0xff]
    %v198 = vld [vmem:[%s1 + $0x2d0] sm:$0xff]
    %v199 = vld [vmem:[%s1 + $0x2d8] sm:$0xff]
    %v200 = vld [vmem:[%s1 + $0x2e0] sm:$0xff]
    %v201 = vld [vmem:[%s1 + $0x2e8] sm:$0xff]
    %v202 = vld [vmem:[%s1 + $0x2f0] sm:$0xff]
    %v203 = vld [vmem:[%s1 + $0x2f8] sm:$0xff]
    %v204 = vld [vmem:[%s1 + $0x300] sm:$0xff]
    %v205 = vld [vmem:[%s1 + $0x308] sm:$0xff]
    %v206 = vld [vmem:[%s1 + $0x310] sm:$0xff]
    %v207 = vld [vmem:[%s1 + $0x318] sm:$0xff]
    %v208 = vld [vmem:[%s1 + $0x320] sm:$0xff]
    %v209 = vld [vmem:[%s1 + $0x328] sm:$0xff]
    %v210 = vld [vmem:[%s1 + $0x330] sm:$0xff]
    %v211 = vld [vmem:[%s1 + $0x338] sm:$0xff]
    %v212 = vld [vmem:[%s1 + $0x340] sm:$0xff]
    %v213 = vld [vmem:[%s1 + $0x348] sm:$0xff]
    %v214 = vld [vmem:[%s1 + $0x350] sm:$0xff]
    %v215 = vld [vmem:[%s1 + $0x358] sm:$0xff]
    %v216 = vld [vmem:[%s1 + $0x360] sm:$0xff]
    %v217 = vld [vmem:[%s1 + $0x368] sm:$0xff]
    %v218 = vld [vmem:[%s1 + $0x370] sm:$0xff]
    %v219 = vld [vmem:[%s1 + $0x378] sm:$0xff]
    %v220 = vld [vmem:[%s1 + $0x380] sm:$0xff]
    %v221 = vld [vmem:[%s1 + $0x388] sm:$0xff]
    %v222 = vld [vmem:[%s1 + $0x390] sm:$0xff]
    %v223 = vld [vmem:[%s1 + $0x398] sm:$0xff]
    %v224 = vld [vmem:[%s1 + $0x3a0] sm:$0xff]
    %v225 = vld [vmem:[%s1 + $0x3a8] sm:$0xff]
    %v226 = vld [vmem:[%s1 + $0x3b0] sm:$0xff]
    %v227 = vld [vmem:[%s1 + $0x3b8] sm:$0xff]
    %v228 = vld [vmem:[%s1 + $0x3c0] sm:$0xff]
    %v229 = vld [vmem:[%s1 + $0x3c8] sm:$0xff]
    %v230 = vld [vmem:[%s1 + $0x3d0] sm:$0xff]
    %v231 = vld [vmem:[%s1 + $0x3d8] sm:$0xff]
    %v232 = vld [vmem:[%s1 + $0x3e0] sm:$0xff]
    %v233 = vld [vmem:[%s1 + $0x3e8] sm:$0xff]
    %v234 = vld [vmem:[%s1 + $0x3f0] sm:$0xff]
    %v235 = vld [vmem:[%s1 + $0x3f8] sm:$0xff]
    %v236 = vld [vmem:[%s1 + $0x400] sm:$0xff]
    %v237 = vld [vmem:[%s1 + $0x408] sm:$0xff]
    %v238 = vld [vmem:[%s1 + $0x410] sm:$0xff]
    %v239 = vld [vmem:[%s1 + $0x418] sm:$0xff]
    %v240 = vld [vmem:[%s1 + $0x420] sm:$0xff]
    %v241 = vld [vmem:[%s1 + $0x428] sm:$0xff]
    %v242 = vld [vmem:[%s1 + $0x430] sm:$0xff]
    %v243 = vld [vmem:[%s1 + $0x438] sm:$0xff]
    %v244 = vld [vmem:[%s1 + $0x440] sm:$0xff]
    %v245 = vld [vmem:[%s1 + $0x448] sm:$0xff]
    %v246 = vld [vmem:[%s1 + $0x450] sm:$0xff]
    %v247 = vld [vmem:[%s1 + $0x458] sm:$0xff]
    %v248 = vld [vmem:[%s1 + $0x460] sm:$0xff]
    %v249 = vld [vmem:[%s1 + $0x468] sm:$0xff]
    %v250 = vld [vmem:[%s1 + $0x470] sm:$0xff]
    %v251 = vld [vmem:[%s1 + $0x478] sm:$0xff]
    %v252 = vld [vmem:[%s1 + $0x480] sm:$0xff]
    %v253 = vld [vmem:[%s1 + $0x488] sm:$0xff]
    %v254 = vld [vmem:[%s1 + $0x490] sm:$0xff]
    %v255 = vld [vmem:[%s1 + $0x498] sm:$0xff]
    %v256 = vld [vmem:[%s1 + $0x4a0] sm:$0xff]
    %v257 = vld [vmem:[%s1 + $0x4a8] sm:$0xff]
    %v258 = vld [vmem:[%s1 + $0x4b0] sm:$0xff]
    %v259 = vld [vmem:[%s1 + $0x4b8] sm:$0xff]
    %v260 = vld [vmem:[%s1 + $0x4c0] sm:$0xff]
    %v261 = vld [vmem:[%s1 + $0x4c8] sm:$0xff]
    %v262 = vld [vmem:[%s1 + $0x4d0] sm:$0xff]
    %v263 = vld [vmem:[%s1 + $0x4d8] sm:$0xff]
    %v264 = vld [vmem:[%s1 + $0x4e0] sm:$0xff]
    %v265 = vld [vmem:[%s1 + $0x4e8] sm:$0xff]
    %v266 = vld [vmem:[%s1 + $0x4f0] sm:$0xff]
    %v267 = vld [vmem:[%s1 + $0x4f8] sm:$0xff]
    %v268 = vld [vmem:[%s1 + $0x500] sm:$0xff]
    %v269 = vld [vmem:[%s1 + $0x508] sm:$0xff]
    %v270 = vld [vmem:[%s1 + $0x510] sm:$0xff]
    %v271 = vld [vmem:[%s1 + $0x518] sm:$0xff]
    %v272 = vld [vmem:[%s1 + $0x520] sm:$0xff]
    %v273 = vld [vmem:[%s1 + $0x528] sm:$0xff]
    %v274 = vld [vmem:[%s1 + $0x530] sm:$0xff]
    %v275 = vld [vmem:[%s1 + $0x538] sm:$0xff]
    %v276 = vld [vmem:[%s1 + $0x540] sm:$0xff]
    %v277 = vld [vmem:[%s1 + $0x548] sm:$0xff]
    %v278 = vld [vmem:[%s1 + $0x550] sm:$0xff]
    %v279 = vld [vmem:[%s1 + $0x558] sm:$0xff]
    %v280 = vld [vmem:[%s1 + $0x560] sm:$0xff]
    %v281 = vld [vmem:[%s1 + $0x568] sm:$0xff]
    %v282 = vld [vmem:[%s1 + $0x570] sm:$0xff]
    %v283 = vld [vmem:[%s1 + $0x578] sm:$0xff]
    %v284 = vld [vmem:[%s1 + $0x580] sm:$0xff]
    %v285 = vld [vmem:[%s1 + $0x588] sm:$0xff]
    %v286 = vld [vmem:[%s1 + $0x590] sm:$0xff]
    %v287 = vld [vmem:[%s1 + $0x598] sm:$0xff]
    %v288 = vld [vmem:[%s1 + $0x5a0] sm:$0xff]
    %v289 = vld [vmem:[%s1 + $0x5a8] sm:$0xff]
    %v290 = vld [vmem:[%s1 + $0x5b0] sm:$0xff]
    %v291 = vld [vmem:[%s1 + $0x5b8] sm:$0xff]
    %v292 = vld [vmem:[%s1 + $0x5c0] sm:$0xff]
    %v293 = vld [vmem:[%s1 + $0x5c8] sm:$0xff]
    %v294 = vld [vmem:[%s1 + $0x5d0] sm:$0xff]
    %v295 = vld [vmem:[%s1 + $0x5d8] sm:$0xff]
    %v296 = vld [vmem:[%s1 + $0x5e0] sm:$0xff]
    %v297 = vld [vmem:[%s1 + $0x5e8] sm:$0xff]
    %v298 = vld [vmem:[%s1 + $0x5f0] sm:$0xff]
    %v299 = vld [vmem:[%s1 + $0x5f8] sm:$0xff]
    %v300 = vld [vmem:[%s1 + $0x600] sm:$0xff]
    %v301 = vld [vmem:[%s1 + $0x608] sm:$0xff]
    %v302 = vld [vmem:[%s1 + $0x610] sm:$0xff]
    %v303 = vld [vmem:[%s1 + $0x618] sm:$0xff]
    %v304 = vld [vmem:[%s1 + $0x620] sm:$0xff]
    %v305 = vld [vmem:[%s1 + $0x628] sm:$0xff]
    %v306 = vld [vmem:[%s1 + $0x630] sm:$0xff]
    %v307 = vld [vmem:[%s1 + $0x638] sm:$0xff]
    %v308 = vld [vmem:[%s1 + $0x640] sm:$0xff]
    %v309 = vld [vmem:[%s1 + $0x648] sm:$0xff]
    %v310 = vld [vmem:[%s1 + $0x650] sm:$0xff]
    %v311 = vld [vmem:[%s1 + $0x658] sm:$0xff]
    %v312 = vld [vmem:[%s1 + $0x660] sm:$0xff]
    %v313 = vld [vmem:[%s1 + $0x668] sm:$0xff]
    %v314 = vld [vmem:[%s1 + $0x670] sm:$0xff]
    %v315 = vld [vmem:[%s1 + $0x678] sm:$0xff]
    %v316 = vld [vmem:[%s1 + $0x680] sm:$0xff]
    %v317 = vld [vmem:[%s1 + $0x688] sm:$0xff]
    %v318 = vld [vmem:[%s1 + $0x690] sm:$0xff]
    %v319 = vld [vmem:[%s1 + $0x698] sm:$0xff]
    %v320 = vld [vmem:[%s1 + $0x6a0] sm:$0xff]
    %v321 = vld [vmem:[%s1 + $0x6a8] sm:$0xff]
    %v322 = vld [vmem:[%s1 + $0x6b0] sm:$0xff]
    %v323 = vld [vmem:[%s1 + $0x6b8] sm:$0xff]
    %v324 = vld [vmem:[%s1 + $0x6c0] sm:$0xff]
    %v325 = vld [vmem:[%s1 + $0x6c8] sm:$0xff]
    %v326 = vld [vmem:[%s1 + $0x6d0] sm:$0xff]
    %v327 = vld [vmem:[%s1 + $0x6d8] sm:$0xff]
    %v328 = vld [vmem:[%s1 + $0x6e0] sm:$0xff]
    %v329 = vld [vmem:[%s1 + $0x6e8] sm:$0xff]
    %v330 = vld [vmem:[%s1 + $0x6f0] sm:$0xff]
    %v331 = vld [vmem:[%s1 + $0x6f8] sm:$0xff]
    %v332 = vld [vmem:[%s1 + $0x700] sm:$0xff]
    %v333 = vld [vmem:[%s1 + $0x708] sm:$0xff]
    %v334 = vld [vmem:[%s1 + $0x710] sm:$0xff]
    %v335 = vld [vmem:[%s1 + $0x718] sm:$0xff]
    %v336 = vld [vmem:[%s1 + $0x720] sm:$0xff]
    %v337 = vld [vmem:[%s1 + $0x728] sm:$0xff]
    %v338 = vld [vmem:[%s1 + $0x730] sm:$0xff]
    %v339 = vld [vmem:[%s1 + $0x738] sm:$0xff]
    %v340 = vld [vmem:[%s1 + $0x740] sm:$0xff]
    %v341 = vld [vmem:[%s1 + $0x748] sm:$0xff]
    %v342 = vld [vmem:[%s1 + $0x750] sm:$0xff]
    %v343 = vld [vmem:[%s1 + $0x758] sm:$0xff]
    %v344 = vld [vmem:[%s1 + $0x760] sm:$0xff]
    %v345 = vld [vmem:[%s1 + $0x768] sm:$0xff]
    %v346 = vld [vmem:[%s1 + $0x770] sm:$0xff]
    %v347 = vld [vmem:[%s1 + $0x778] sm:$0xff]
    %v348 = vld [vmem:[%s1 + $0x780] sm:$0xff]
    %v349 = vld [vmem:[%s1 + $0x788] sm:$0xff]
    %v350 = vld [vmem:[%s1 + $0x790] sm:$0xff]
    %v351 = vld [vmem:[%s1 + $0x798] sm:$0xff]
    %v352 = vld [vmem:[%s1 + $0x7a0] sm:$0xff]
    %v353 = vld [vmem:[%s1 + $0x7a8] sm:$0xff]
    %v354 = vld [vmem:[%s1 + $0x7b0] sm:$0xff]
    %v355 = vld [vmem:[%s1 + $0x7b8] sm:$0xff]
    %v356 = vld [vmem:[%s1 + $0x7c0] sm:$0xff]
    %v357 = vld [vmem:[%s1 + $0x7c8] sm:$0xff]
    %v358 = vld [vmem:[%s1 + $0x7d0] sm:$0xff]
    %v359 = vld [vmem:[%s1 + $0x7d8] sm:$0xff]
    %v360 = vld [vmem:[%s1 + $0x7e0] sm:$0xff]
    %v361 = vld [vmem:[%s1 + $0x7e8] sm:$0xff]
    %v362 = vld [vmem:[%s1 + $0x7f0] sm:$0xff]
    %v363 = vld [vmem:[%s1 + $0x7f8] sm:$0xff]
    %v364 = vld [vmem:[%s1 + $0x800] sm:$0xff]
    %v365 = vld [vmem:[%s1 + $0x808] sm:$0xff]
    %v366 = vld [vmem:[%s1 + $0x810] sm:$0xff]
    %v367 = vld [vmem:[%s1 + $0x818] sm:$0xff]
    %v368 = vld [vmem:[%s1 + $0x820] sm:$0xff]
    %v369 = vld [vmem:[%s1 + $0x828] sm:$0xff]
    %v370 = vld [vmem:[%s1 + $0x830] sm:$0xff]
    %v371 = vld [vmem:[%s1 + $0x838] sm:$0xff]
    %v372 = vld [vmem:[%s1 + $0x840] sm:$0xff]
    %v373 = vld [vmem:[%s1 + $0x848] sm:$0xff]
    %v374 = vld [vmem:[%s1 + $0x850] sm:$0xff]
    %v375 = vld [vmem:[%s1 + $0x858] sm:$0xff]
    %v376 = vld [vmem:[%s1 + $0x860] sm:$0xff]
    %v377 = vld [vmem:[%s1 + $0x868] sm:$0xff]
    %v378 = vld [vmem:[%s1 + $0x870] sm:$0xff]
    %v379 = vld [vmem:[%s1 + $0x878] sm:$0xff]
    %v380 = vld [vmem:[%s1 + $0x880] sm:$0xff]
    %v381 = vld [vmem:[%s1 + $0x888] sm:$0xff]
    %v382 = vld [vmem:[%s1 + $0x890] sm:$0xff]
    %v383 = vld [vmem:[%s1 + $0x898] sm:$0xff]
    %v384 = vld [vmem:[%s1 + $0x8a0] sm:$0xff]
    %v385 = vld [vmem:[%s1 + $0x8a8] sm:$0xff]
    %v386 = vld [vmem:[%s1 + $0x8b0] sm:$0xff]
    %v387 = vld [vmem:[%s1 + $0x8b8] sm:$0xff]
    %v388 = vld [vmem:[%s1 + $0x8c0] sm:$0xff]
    %v389 = vld [vmem:[%s1 + $0x8c8] sm:$0xff]
    %v390 = vld [vmem:[%s1 + $0x8d0] sm:$0xff]
    %v391 = vld [vmem:[%s1 + $0x8d8] sm:$0xff]
    %v392 = vld [vmem:[%s1 + $0x8e0] sm:$0xff]
    %v393 = vld [vmem:[%s1 + $0x8e8] sm:$0xff]
    %v394 = vld [vmem:[%s1 + $0x8f0] sm:$0xff]
    %v395 = vld [vmem:[%s1 + $0x8f8] sm:$0xff]
    %v396 = vld [vmem:[%s1 + $0x900] sm:$0xff]
    %v397 = vld [vmem:[%s1 + $0x908] sm:$0xff]
    %v398 = vld [vmem:[%s1 + $0x910] sm:$0xff]
    %v399 = vld [vmem:[%s1 + $0x918] sm:$0xff]
    %v400 = vld [vmem:[%s1 + $0x920] sm:$0xff]
    %v401 = vld [vmem:[%s1 + $0x928] sm:$0xff]
    %v402 = vld [vmem:[%s1 + $0x930] sm:$0xff]
    %v403 = vld [vmem:[%s1 + $0x938] sm:$0xff]
    %v404 = vld [vmem:[%s1 + $0x940] sm:$0xff]
    %v405 = vld [vmem:[%s1 + $0x948] sm:$0xff]
    %v406 = vld [vmem:[%s1 + $0x950] sm:$0xff]
    %v407 = vld [vmem:[%s1 + $0x958] sm:$0xff]
    %v408 = vld [vmem:[%s1 + $0x960] sm:$0xff]
    %v409 = vld [vmem:[%s1 + $0x968] sm:$0xff]
    %v410 = vld [vmem:[%s1 + $0x970] sm:$0xff]
    %v411 = vld [vmem:[%s1 + $0x978] sm:$0xff]
    %v412 = vld [vmem:[%s1 + $0x980] sm:$0xff]
    %v413 = vld [vmem:[%s1 + $0x988] sm:$0xff]
    %v414 = vld [vmem:[%s1 + $0x990] sm:$0xff]
    %v415 = vld [vmem:[%s1 + $0x998] sm:$0xff]
    %v416 = vld [vmem:[%s1 + $0x9a0] sm:$0xff]
    %v417 = vld [vmem:[%s1 + $0x9a8] sm:$0xff]
    %v418 = vld [vmem:[%s1 + $0x9b0] sm:$0xff]
    %v419 = vld [vmem:[%s1 + $0x9b8] sm:$0xff]
    %v420 = vld [vmem:[%s1 + $0x9c0] sm:$0xff]
    %v421 = vld [vmem:[%s1 + $0x9c8] sm:$0xff]
    %v422 = vld [vmem:[%s1 + $0x9d0] sm:$0xff]
    %v423 = vld [vmem:[%s1 + $0x9d8] sm:$0xff]
    %v424 = vld [vmem:[%s1 + $0x9e0] sm:$0xff]
    %v425 = vld [vmem:[%s1 + $0x9e8] sm:$0xff]
    %v426 = vld [vmem:[%s1 + $0x9f0] sm:$0xff]
    %v427 = vld [vmem:[%s1 + $0x9f8] sm:$0xff]
    %v428 = vld [vmem:[%s1 + $0xa00] sm:$0xff]
    %v429 = vld [vmem:[%s1 + $0xa08] sm:$0xff]
    %v430 = vld [vmem:[%s1 + $0xa10] sm:$0xff]
    %v431 = vld [vmem:[%s1 + $0xa18] sm:$0xff]
    %v432 = vld [vmem:[%s1 + $0xa20] sm:$0xff]
    %v433 = vld [vmem:[%s1 + $0xa28] sm:$0xff]
    %v434 = vld [vmem:[%s1 + $0xa30] sm:$0xff]
    %v435 = vld [vmem:[%s1 + $0xa38] sm:$0xff]
    %v436 = vld [vmem:[%s1 + $0xa40] sm:$0xff]
    %v437 = vld [vmem:[%s1 + $0xa48] sm:$0xff]
    %v438 = vld [vmem:[%s1 + $0xa50] sm:$0xff]
    %v439 = vld [vmem:[%s1 + $0xa58] sm:$0xff]
    %v440 = vld [vmem:[%s1 + $0xa60] sm:$0xff]
    %v441 = vld [vmem:[%s1 + $0xa68] sm:$0xff]
    %v442 = vld [vmem:[%s1 + $0xa70] sm:$0xff]
    %v443 = vld [vmem:[%s1 + $0xa78] sm:$0xff]
    %v444 = vld [vmem:[%s1 + $0xa80] sm:$0xff]
    %v445 = vld [vmem:[%s1 + $0xa88] sm:$0xff]
    %v446 = vld [vmem:[%s1 + $0xa90] sm:$0xff]
    %v447 = vld [vmem:[%s1 + $0xa98] sm:$0xff]
    %v448 = vld [vmem:[%s1 + $0xaa0] sm:$0xff]
    %v449 = vld [vmem:[%s1 + $0xaa8] sm:$0xff]
    %v450 = vld [vmem:[%s1 + $0xab0] sm:$0xff]
    %v451 = vld [vmem:[%s1 + $0xab8] sm:$0xff]
    %v452 = vld [vmem:[%s1 + $0xac0] sm:$0xff]
    %v453 = vld [vmem:[%s1 + $0xac8] sm:$0xff]
    %v454 = vld [vmem:[%s1 + $0xad0] sm:$0xff]
    %v455 = vld [vmem:[%s1 + $0xad8] sm:$0xff]
    %v456 = vld [vmem:[%s1 + $0xae0] sm:$0xff]
    %v457 = vld [vmem:[%s1 + $0xae8] sm:$0xff]
    %v458 = vld [vmem:[%s1 + $0xaf0] sm:$0xff]
    %v459 = vld [vmem:[%s1 + $0xaf8] sm:$0xff]
    %v460 = vld [vmem:[%s1 + $0xb00] sm:$0xff]
    %v461 = vld [vmem:[%s1 + $0xb08] sm:$0xff]
    %v462 = vld [vmem:[%s1 + $0xb10] sm:$0xff]
    %v463 = vld [vmem:[%s1 + $0xb18] sm:$0xff]
    %v464 = vld [vmem:[%s1 + $0xb20] sm:$0xff]
    %v465 = vld [vmem:[%s1 + $0xb28] sm:$0xff]
    %v466 = vld [vmem:[%s1 + $0xb30] sm:$0xff]
    %v467 = vld [vmem:[%s1 + $0xb38] sm:$0xff]
    %v468 = vld [vmem:[%s1 + $0xb40] sm:$0xff]
    %v469 = vld [vmem:[%s1 + $0xb48] sm:$0xff]
    %v470 = vld [vmem:[%s1 + $0xb50] sm:$0xff]
    %v471 = vld [vmem:[%s1 + $0xb58] sm:$0xff]
    %v472 = vld [vmem:[%s1 + $0xb60] sm:$0xff]
    %v473 = vld [vmem:[%s1 + $0xb68] sm:$0xff]
    %v474 = vld [vmem:[%s1 + $0xb70] sm:$0xff]
    %v475 = vld [vmem:[%s1 + $0xb78] sm:$0xff]
    %v476 = vld [vmem:[%s1 + $0xb80] sm:$0xff]
    %v477 = vld [vmem:[%s1 + $0xb88] sm:$0xff]
    %v478 = vld [vmem:[%s1 + $0xb90] sm:$0xff]
    %v479 = vld [vmem:[%s1 + $0xb98] sm:$0xff]
    %v480 = vld [vmem:[%s1 + $0xba0] sm:$0xff]
    %v481 = vld [vmem:[%s1 + $0xba8] sm:$0xff]
    %v482 = vld [vmem:[%s1 + $0xbb0] sm:$0xff]
    %v483 = vld [vmem:[%s1 + $0xbb8] sm:$0xff]
    %v484 = vld [vmem:[%s1 + $0xbc0] sm:$0xff]
    %v485 = vld [vmem:[%s1 + $0xbc8] sm:$0xff]
    %v486 = vld [vmem:[%s1 + $0xbd0] sm:$0xff]
    %v487 = vld [vmem:[%s1 + $0xbd8] sm:$0xff]
    %v488 = vld [vmem:[%s1 + $0xbe0] sm:$0xff]
    %v489 = vld [vmem:[%s1 + $0xbe8] sm:$0xff]
    %v490 = vld [vmem:[%s1 + $0xbf0] sm:$0xff]
    %v491 = vld [vmem:[%s1 + $0xbf8] sm:$0xff]
    %v492 = vld [vmem:[%s1 + $0xc00] sm:$0xff]
    %v493 = vld [vmem:[%s1 + $0xc08] sm:$0xff]
    %v494 = vld [vmem:[%s1 + $0xc10] sm:$0xff]
    %v495 = vld [vmem:[%s1 + $0xc18] sm:$0xff]
    %v496 = vld [vmem:[%s1 + $0xc20] sm:$0xff]
    %v497 = vld [vmem:[%s1 + $0xc28] sm:$0xff]
    %v498 = vld [vmem:[%s1 + $0xc30] sm:$0xff]
    %v499 = vld [vmem:[%s1 + $0xc38] sm:$0xff]
    %v500 = vld [vmem:[%s2] sm:$0xf]
    %v502 = vlaneseq
    %v503 = vshrl.u32 %v502, 7
    %v504 = vsub.s32 0, %v503
    %v505 = vrot.slane %v500, %v504
    %v506 = vlaneseq
    %v507 = vshrl.u32 %v506, 7
    %v508 = vsub.s32 1, %v507
    %v509 = vrot.slane %v500, %v508
    %v510 = vlaneseq
    %v511 = vshrl.u32 %v510, 7
    %v512 = vsub.s32 2, %v511
    %v513 = vrot.slane %v500, %v512
    %v514 = vlaneseq
    %v515 = vshrl.u32 %v514, 7
    %v516 = vsub.s32 3, %v515
    %v517 = vrot.slane %v500, %v516
    %v914 = vunpack.c.l.b16 %v108
    %v915 = vunpack.c.h.b16 %v108
    %v916 = vunpack.c.l.b16 %v109
    %v917 = vunpack.c.h.b16 %v109
    %v918 = vunpack.c.l.b16 %v110
    %v919 = vunpack.c.h.b16 %v110
    %v920 = vunpack.c.l.b16 %v111
    %v921 = vunpack.c.h.b16 %v111
    %v922 = vunpack.c.l.b16 %v112
    %v923 = vunpack.c.h.b16 %v112
    %v924 = vunpack.c.l.b16 %v113
    %v925 = vunpack.c.h.b16 %v113
    %v926 = vunpack.c.l.b16 %v114
    %v927 = vunpack.c.h.b16 %v114
    %v928 = vunpack.c.l.b16 %v115
    %v929 = vunpack.c.h.b16 %v115
    %v930 = vunpack.c.l.b16 %v116
    %v931 = vunpack.c.h.b16 %v116
    %v932 = vunpack.c.l.b16 %v117
    %v933 = vunpack.c.h.b16 %v117
    %v934 = vunpack.c.l.b16 %v118
    %v935 = vunpack.c.h.b16 %v118
    %v936 = vunpack.c.l.b16 %v119
    %v937 = vunpack.c.h.b16 %v119
    %v938 = vunpack.c.l.b16 %v120
    %v939 = vunpack.c.h.b16 %v120
    %v940 = vunpack.c.l.b16 %v121
    %v941 = vunpack.c.h.b16 %v121
    %v942 = vunpack.c.l.b16 %v122
    %v943 = vunpack.c.h.b16 %v122
    %v944 = vunpack.c.l.b16 %v123
    %v945 = vunpack.c.h.b16 %v123
    %v946 = vunpack.c.l.b16 %v124
    %v947 = vunpack.c.h.b16 %v124
    %v948 = vunpack.c.l.b16 %v125
    %v949 = vunpack.c.h.b16 %v125
    %v950 = vunpack.c.l.b16 %v126
    %v951 = vunpack.c.h.b16 %v126
    %v952 = vunpack.c.l.b16 %v127
    %v953 = vunpack.c.h.b16 %v127
    %v954 = vunpack.c.l.b16 %v128
    %v955 = vunpack.c.h.b16 %v128
    %v956 = vunpack.c.l.b16 %v129
    %v957 = vunpack.c.h.b16 %v129
    %v958 = vunpack.c.l.b16 %v130
    %v959 = vunpack.c.h.b16 %v130
    %v960 = vunpack.c.l.b16 %v131
    %v961 = vunpack.c.h.b16 %v131
    %v962 = vunpack.c.l.b16 %v132
    %v963 = vunpack.c.h.b16 %v132
    %v964 = vunpack.c.l.b16 %v133
    %v965 = vunpack.c.h.b16 %v133
    %v966 = vunpack.c.l.b16 %v134
    %v967 = vunpack.c.h.b16 %v134
    %v968 = vunpack.c.l.b16 %v135
    %v969 = vunpack.c.h.b16 %v135
    %v970 = vunpack.c.l.b16 %v136
    %v971 = vunpack.c.h.b16 %v136
    %v972 = vunpack.c.l.b16 %v137
    %v973 = vunpack.c.h.b16 %v137
    %v974 = vunpack.c.l.b16 %v138
    %v975 = vunpack.c.h.b16 %v138
    %v976 = vunpack.c.l.b16 %v139
    %v977 = vunpack.c.h.b16 %v139
    %v978 = vunpack.c.l.b16 %v140
    %v979 = vunpack.c.h.b16 %v140
    %v980 = vunpack.c.l.b16 %v141
    %v981 = vunpack.c.h.b16 %v141
    %v982 = vunpack.c.l.b16 %v142
    %v983 = vunpack.c.h.b16 %v142
    %v984 = vunpack.c.l.b16 %v143
    %v985 = vunpack.c.h.b16 %v143
    %v986 = vunpack.c.l.b16 %v144
    %v987 = vunpack.c.h.b16 %v144
    %v988 = vunpack.c.l.b16 %v145
    %v989 = vunpack.c.h.b16 %v145
    %v990 = vunpack.c.l.b16 %v146
    %v991 = vunpack.c.h.b16 %v146
    %v992 = vunpack.c.l.b16 %v147
    %v993 = vunpack.c.h.b16 %v147
    %v994 = vunpack.c.l.b16 %v148
    %v995 = vunpack.c.h.b16 %v148
    %v996 = vunpack.c.l.b16 %v149
    %v997 = vunpack.c.h.b16 %v149
    %v998 = vunpack.c.l.b16 %v150
    %v999 = vunpack.c.h.b16 %v150
    %v1000 = vunpack.c.l.b16 %v151
    %v1001 = vunpack.c.h.b16 %v151
    %v1002 = vunpack.c.l.b16 %v152
    %v1003 = vunpack.c.h.b16 %v152
    %v1004 = vunpack.c.l.b16 %v153
    %v1005 = vunpack.c.h.b16 %v153
    %v1006 = vunpack.c.l.b16 %v154
    %v1007 = vunpack.c.h.b16 %v154
    %v1008 = vunpack.c.l.b16 %v155
    %v1009 = vunpack.c.h.b16 %v155
    %v1010 = vunpack.c.l.b16 %v156
    %v1011 = vunpack.c.h.b16 %v156
    %v1012 = vunpack.c.l.b16 %v157
    %v1013 = vunpack.c.h.b16 %v157
    %v1014 = vunpack.c.l.b16 %v158
    %v1015 = vunpack.c.h.b16 %v158
    %v1016 = vunpack.c.l.b16 %v159
    %v1017 = vunpack.c.h.b16 %v159
    %v1018 = vunpack.c.l.b16 %v160
    %v1019 = vunpack.c.h.b16 %v160
    %v1020 = vunpack.c.l.b16 %v161
    %v1021 = vunpack.c.h.b16 %v161
    %v1022 = vunpack.c.l.b16 %v162
    %v1023 = vunpack.c.h.b16 %v162
    %v1024 = vunpack.c.l.b16 %v163
    %v1025 = vunpack.c.h.b16 %v163
    %v1026 = vunpack.c.l.b16 %v164
    %v1027 = vunpack.c.h.b16 %v164
    %v1028 = vunpack.c.l.b16 %v165
    %v1029 = vunpack.c.h.b16 %v165
    %v1030 = vunpack.c.l.b16 %v166
    %v1031 = vunpack.c.h.b16 %v166
    %v1032 = vunpack.c.l.b16 %v167
    %v1033 = vunpack.c.h.b16 %v167
    %v1034 = vunpack.c.l.b16 %v168
    %v1035 = vunpack.c.h.b16 %v168
    %v1036 = vunpack.c.l.b16 %v169
    %v1037 = vunpack.c.h.b16 %v169
    %v1038 = vunpack.c.l.b16 %v170
    %v1039 = vunpack.c.h.b16 %v170
    %v1040 = vunpack.c.l.b16 %v171
    %v1041 = vunpack.c.h.b16 %v171
    %v1042 = vunpack.c.l.b16 %v172
    %v1043 = vunpack.c.h.b16 %v172
    %v1044 = vunpack.c.l.b16 %v173
    %v1045 = vunpack.c.h.b16 %v173
    %v1046 = vunpack.c.l.b16 %v174
    %v1047 = vunpack.c.h.b16 %v174
    %v1048 = vunpack.c.l.b16 %v175
    %v1049 = vunpack.c.h.b16 %v175
    %v1050 = vunpack.c.l.b16 %v176
    %v1051 = vunpack.c.h.b16 %v176
    %v1052 = vunpack.c.l.b16 %v177
    %v1053 = vunpack.c.h.b16 %v177
    %v1054 = vunpack.c.l.b16 %v178
    %v1055 = vunpack.c.h.b16 %v178
    %v1056 = vunpack.c.l.b16 %v179
    %v1057 = vunpack.c.h.b16 %v179
    %v1058 = vunpack.c.l.b16 %v180
    %v1059 = vunpack.c.h.b16 %v180
    %v1060 = vunpack.c.l.b16 %v181
    %v1061 = vunpack.c.h.b16 %v181
    %v1062 = vunpack.c.l.b16 %v182
    %v1063 = vunpack.c.h.b16 %v182
    %v1064 = vunpack.c.l.b16 %v183
    %v1065 = vunpack.c.h.b16 %v183
    %v1066 = vunpack.c.l.b16 %v184
    %v1067 = vunpack.c.h.b16 %v184
    %v1068 = vunpack.c.l.b16 %v185
    %v1069 = vunpack.c.h.b16 %v185
    %v1070 = vunpack.c.l.b16 %v186
    %v1071 = vunpack.c.h.b16 %v186
    %v1072 = vunpack.c.l.b16 %v187
    %v1073 = vunpack.c.h.b16 %v187
    %v1074 = vunpack.c.l.b16 %v188
    %v1075 = vunpack.c.h.b16 %v188
    %v1076 = vunpack.c.l.b16 %v189
    %v1077 = vunpack.c.h.b16 %v189
    %v1078 = vunpack.c.l.b16 %v190
    %v1079 = vunpack.c.h.b16 %v190
    %v1080 = vunpack.c.l.b16 %v191
    %v1081 = vunpack.c.h.b16 %v191
    %v1082 = vunpack.c.l.b16 %v192
    %v1083 = vunpack.c.h.b16 %v192
    %v1084 = vunpack.c.l.b16 %v193
    %v1085 = vunpack.c.h.b16 %v193
    %v1086 = vunpack.c.l.b16 %v194
    %v1087 = vunpack.c.h.b16 %v194
    %v1088 = vunpack.c.l.b16 %v195
    %v1089 = vunpack.c.h.b16 %v195
    %v1090 = vunpack.c.l.b16 %v196
    %v1091 = vunpack.c.h.b16 %v196
    %v1092 = vunpack.c.l.b16 %v197
    %v1093 = vunpack.c.h.b16 %v197
    %v1094 = vunpack.c.l.b16 %v198
    %v1095 = vunpack.c.h.b16 %v198
    %v1096 = vunpack.c.l.b16 %v199
    %v1097 = vunpack.c.h.b16 %v199
    %v1098 = vunpack.c.l.b16 %v200
    %v1099 = vunpack.c.h.b16 %v200
    %v1100 = vunpack.c.l.b16 %v201
    %v1101 = vunpack.c.h.b16 %v201
    %v1102 = vunpack.c.l.b16 %v202
    %v1103 = vunpack.c.h.b16 %v202
    %v1104 = vunpack.c.l.b16 %v203
    %v1105 = vunpack.c.h.b16 %v203
    %v1106 = vunpack.c.l.b16 %v204
    %v1107 = vunpack.c.h.b16 %v204
    %v1108 = vunpack.c.l.b16 %v205
    %v1109 = vunpack.c.h.b16 %v205
    %v1110 = vunpack.c.l.b16 %v206
    %v1111 = vunpack.c.h.b16 %v206
    %v1112 = vunpack.c.l.b16 %v207
    %v1113 = vunpack.c.h.b16 %v207
    %v1114 = vunpack.c.l.b16 %v208
    %v1115 = vunpack.c.h.b16 %v208
    %v1116 = vunpack.c.l.b16 %v209
    %v1117 = vunpack.c.h.b16 %v209
    %v1118 = vunpack.c.l.b16 %v210
    %v1119 = vunpack.c.h.b16 %v210
    %v1120 = vunpack.c.l.b16 %v211
    %v1121 = vunpack.c.h.b16 %v211
    %v1122 = vunpack.c.l.b16 %v212
    %v1123 = vunpack.c.h.b16 %v212
    %v1124 = vunpack.c.l.b16 %v213
    %v1125 = vunpack.c.h.b16 %v213
    %v1126 = vunpack.c.l.b16 %v214
    %v1127 = vunpack.c.h.b16 %v214
    %v1128 = vunpack.c.l.b16 %v215
    %v1129 = vunpack.c.h.b16 %v215
    %v1130 = vunpack.c.l.b16 %v216
    %v1131 = vunpack.c.h.b16 %v216
    %v1132 = vunpack.c.l.b16 %v217
    %v1133 = vunpack.c.h.b16 %v217
    %v1134 = vunpack.c.l.b16 %v218
    %v1135 = vunpack.c.h.b16 %v218
    %v1136 = vunpack.c.l.b16 %v219
    %v1137 = vunpack.c.h.b16 %v219
    %v1138 = vunpack.c.l.b16 %v220
    %v1139 = vunpack.c.h.b16 %v220
    %v1140 = vunpack.c.l.b16 %v221
    %v1141 = vunpack.c.h.b16 %v221
    %v1142 = vunpack.c.l.b16 %v222
    %v1143 = vunpack.c.h.b16 %v222
    %v1144 = vunpack.c.l.b16 %v223
    %v1145 = vunpack.c.h.b16 %v223
    %v1146 = vunpack.c.l.b16 %v224
    %v1147 = vunpack.c.h.b16 %v224
    %v1148 = vunpack.c.l.b16 %v225
    %v1149 = vunpack.c.h.b16 %v225
    %v1150 = vunpack.c.l.b16 %v226
    %v1151 = vunpack.c.h.b16 %v226
    %v1152 = vunpack.c.l.b16 %v227
    %v1153 = vunpack.c.h.b16 %v227
    %v1154 = vunpack.c.l.b16 %v228
    %v1155 = vunpack.c.h.b16 %v228
    %v1156 = vunpack.c.l.b16 %v229
    %v1157 = vunpack.c.h.b16 %v229
    %v1158 = vunpack.c.l.b16 %v230
    %v1159 = vunpack.c.h.b16 %v230
    %v1160 = vunpack.c.l.b16 %v231
    %v1161 = vunpack.c.h.b16 %v231
    %v1162 = vunpack.c.l.b16 %v232
    %v1163 = vunpack.c.h.b16 %v232
    %v1164 = vunpack.c.l.b16 %v233
    %v1165 = vunpack.c.h.b16 %v233
    %v1166 = vunpack.c.l.b16 %v234
    %v1167 = vunpack.c.h.b16 %v234
    %v1168 = vunpack.c.l.b16 %v235
    %v1169 = vunpack.c.h.b16 %v235
    %v1170 = vunpack.c.l.b16 %v236
    %v1171 = vunpack.c.h.b16 %v236
    %v1172 = vunpack.c.l.b16 %v237
    %v1173 = vunpack.c.h.b16 %v237
    %v1174 = vunpack.c.l.b16 %v238
    %v1175 = vunpack.c.h.b16 %v238
    %v1176 = vunpack.c.l.b16 %v239
    %v1177 = vunpack.c.h.b16 %v239
    %v1178 = vunpack.c.l.b16 %v240
    %v1179 = vunpack.c.h.b16 %v240
    %v1180 = vunpack.c.l.b16 %v241
    %v1181 = vunpack.c.h.b16 %v241
    %v1182 = vunpack.c.l.b16 %v242
    %v1183 = vunpack.c.h.b16 %v242
    %v1184 = vunpack.c.l.b16 %v243
    %v1185 = vunpack.c.h.b16 %v243
    %v1186 = vunpack.c.l.b16 %v244
    %v1187 = vunpack.c.h.b16 %v244
    %v1188 = vunpack.c.l.b16 %v245
    %v1189 = vunpack.c.h.b16 %v245
    %v1190 = vunpack.c.l.b16 %v246
    %v1191 = vunpack.c.h.b16 %v246
    %v1192 = vunpack.c.l.b16 %v247
    %v1193 = vunpack.c.h.b16 %v247
    %v1194 = vunpack.c.l.b16 %v248
    %v1195 = vunpack.c.h.b16 %v248
    %v1196 = vunpack.c.l.b16 %v249
    %v1197 = vunpack.c.h.b16 %v249
    %v1198 = vunpack.c.l.b16 %v250
    %v1199 = vunpack.c.h.b16 %v250
    %v1200 = vunpack.c.l.b16 %v251
    %v1201 = vunpack.c.h.b16 %v251
    %v1202 = vunpack.c.l.b16 %v252
    %v1203 = vunpack.c.h.b16 %v252
    %v1204 = vunpack.c.l.b16 %v253
    %v1205 = vunpack.c.h.b16 %v253
    %v1206 = vunpack.c.l.b16 %v254
    %v1207 = vunpack.c.h.b16 %v254
    %v1208 = vunpack.c.l.b16 %v255
    %v1209 = vunpack.c.h.b16 %v255
    %v1210 = vunpack.c.l.b16 %v256
    %v1211 = vunpack.c.h.b16 %v256
    %v1212 = vunpack.c.l.b16 %v257
    %v1213 = vunpack.c.h.b16 %v257
    %v1214 = vunpack.c.l.b16 %v258
    %v1215 = vunpack.c.h.b16 %v258
    %v1216 = vunpack.c.l.b16 %v259
    %v1217 = vunpack.c.h.b16 %v259
    %v1218 = vunpack.c.l.b16 %v260
    %v1219 = vunpack.c.h.b16 %v260
    %v1220 = vunpack.c.l.b16 %v261
    %v1221 = vunpack.c.h.b16 %v261
    %v1222 = vunpack.c.l.b16 %v262
    %v1223 = vunpack.c.h.b16 %v262
    %v1224 = vunpack.c.l.b16 %v263
    %v1225 = vunpack.c.h.b16 %v263
    %v1226 = vunpack.c.l.b16 %v264
    %v1227 = vunpack.c.h.b16 %v264
    %v1228 = vunpack.c.l.b16 %v265
    %v1229 = vunpack.c.h.b16 %v265
    %v1230 = vunpack.c.l.b16 %v266
    %v1231 = vunpack.c.h.b16 %v266
    %v1232 = vunpack.c.l.b16 %v267
    %v1233 = vunpack.c.h.b16 %v267
    %v1234 = vunpack.c.l.b16 %v268
    %v1235 = vunpack.c.h.b16 %v268
    %v1236 = vunpack.c.l.b16 %v269
    %v1237 = vunpack.c.h.b16 %v269
    %v1238 = vunpack.c.l.b16 %v270
    %v1239 = vunpack.c.h.b16 %v270
    %v1240 = vunpack.c.l.b16 %v271
    %v1241 = vunpack.c.h.b16 %v271
    %v1242 = vunpack.c.l.b16 %v272
    %v1243 = vunpack.c.h.b16 %v272
    %v1244 = vunpack.c.l.b16 %v273
    %v1245 = vunpack.c.h.b16 %v273
    %v1246 = vunpack.c.l.b16 %v274
    %v1247 = vunpack.c.h.b16 %v274
    %v1248 = vunpack.c.l.b16 %v275
    %v1249 = vunpack.c.h.b16 %v275
    %v1250 = vunpack.c.l.b16 %v276
    %v1251 = vunpack.c.h.b16 %v276
    %v1252 = vunpack.c.l.b16 %v277
    %v1253 = vunpack.c.h.b16 %v277
    %v1254 = vunpack.c.l.b16 %v278
    %v1255 = vunpack.c.h.b16 %v278
    %v1256 = vunpack.c.l.b16 %v279
    %v1257 = vunpack.c.h.b16 %v279
    %v1258 = vunpack.c.l.b16 %v280
    %v1259 = vunpack.c.h.b16 %v280
    %v1260 = vunpack.c.l.b16 %v281
    %v1261 = vunpack.c.h.b16 %v281
    %v1262 = vunpack.c.l.b16 %v282
    %v1263 = vunpack.c.h.b16 %v282
    %v1264 = vunpack.c.l.b16 %v283
    %v1265 = vunpack.c.h.b16 %v283
    %v1266 = vunpack.c.l.b16 %v284
    %v1267 = vunpack.c.h.b16 %v284
    %v1268 = vunpack.c.l.b16 %v285
    %v1269 = vunpack.c.h.b16 %v285
    %v1270 = vunpack.c.l.b16 %v286
    %v1271 = vunpack.c.h.b16 %v286
    %v1272 = vunpack.c.l.b16 %v287
    %v1273 = vunpack.c.h.b16 %v287
    %v1274 = vunpack.c.l.b16 %v288
    %v1275 = vunpack.c.h.b16 %v288
    %v1276 = vunpack.c.l.b16 %v289
    %v1277 = vunpack.c.h.b16 %v289
    %v1278 = vunpack.c.l.b16 %v290
    %v1279 = vunpack.c.h.b16 %v290
    %v1280 = vunpack.c.l.b16 %v291
    %v1281 = vunpack.c.h.b16 %v291
    %v1282 = vunpack.c.l.b16 %v292
    %v1283 = vunpack.c.h.b16 %v292
    %v1284 = vunpack.c.l.b16 %v293
    %v1285 = vunpack.c.h.b16 %v293
    %v1286 = vunpack.c.l.b16 %v294
    %v1287 = vunpack.c.h.b16 %v294
    %v1288 = vunpack.c.l.b16 %v295
    %v1289 = vunpack.c.h.b16 %v295
    %v1290 = vunpack.c.l.b16 %v296
    %v1291 = vunpack.c.h.b16 %v296
    %v1292 = vunpack.c.l.b16 %v297
    %v1293 = vunpack.c.h.b16 %v297
    %v1294 = vunpack.c.l.b16 %v298
    %v1295 = vunpack.c.h.b16 %v298
    %v1296 = vunpack.c.l.b16 %v299
    %v1297 = vunpack.c.h.b16 %v299
    %v1298 = vunpack.c.l.b16 %v300
    %v1299 = vunpack.c.h.b16 %v300
    %v1300 = vunpack.c.l.b16 %v301
    %v1301 = vunpack.c.h.b16 %v301
    %v1302 = vunpack.c.l.b16 %v302
    %v1303 = vunpack.c.h.b16 %v302
    %v1304 = vunpack.c.l.b16 %v303
    %v1305 = vunpack.c.h.b16 %v303
    %v1306 = vunpack.c.l.b16 %v304
    %v1307 = vunpack.c.h.b16 %v304
    %v1308 = vunpack.c.l.b16 %v305
    %v1309 = vunpack.c.h.b16 %v305
    %v1310 = vunpack.c.l.b16 %v306
    %v1311 = vunpack.c.h.b16 %v306
    %v1312 = vunpack.c.l.b16 %v307
    %v1313 = vunpack.c.h.b16 %v307
    %v1314 = vunpack.c.l.b16 %v308
    %v1315 = vunpack.c.h.b16 %v308
    %v1316 = vunpack.c.l.b16 %v309
    %v1317 = vunpack.c.h.b16 %v309
    %v1318 = vunpack.c.l.b16 %v310
    %v1319 = vunpack.c.h.b16 %v310
    %v1320 = vunpack.c.l.b16 %v311
    %v1321 = vunpack.c.h.b16 %v311
    %v1322 = vunpack.c.l.b16 %v312
    %v1323 = vunpack.c.h.b16 %v312
    %v1324 = vunpack.c.l.b16 %v313
    %v1325 = vunpack.c.h.b16 %v313
    %v1326 = vunpack.c.l.b16 %v314
    %v1327 = vunpack.c.h.b16 %v314
    %v1328 = vunpack.c.l.b16 %v315
    %v1329 = vunpack.c.h.b16 %v315
    %v1330 = vunpack.c.l.b16 %v316
    %v1331 = vunpack.c.h.b16 %v316
    %v1332 = vunpack.c.l.b16 %v317
    %v1333 = vunpack.c.h.b16 %v317
    %v1334 = vunpack.c.l.b16 %v318
    %v1335 = vunpack.c.h.b16 %v318
    %v1336 = vunpack.c.l.b16 %v319
    %v1337 = vunpack.c.h.b16 %v319
    %v1338 = vunpack.c.l.b16 %v320
    %v1339 = vunpack.c.h.b16 %v320
    %v1340 = vunpack.c.l.b16 %v321
    %v1341 = vunpack.c.h.b16 %v321
    %v1342 = vunpack.c.l.b16 %v322
    %v1343 = vunpack.c.h.b16 %v322
    %v1344 = vunpack.c.l.b16 %v323
    %v1345 = vunpack.c.h.b16 %v323
    %v1346 = vunpack.c.l.b16 %v324
    %v1347 = vunpack.c.h.b16 %v324
    %v1348 = vunpack.c.l.b16 %v325
    %v1349 = vunpack.c.h.b16 %v325
    %v1350 = vunpack.c.l.b16 %v326
    %v1351 = vunpack.c.h.b16 %v326
    %v1352 = vunpack.c.l.b16 %v327
    %v1353 = vunpack.c.h.b16 %v327
    %v1354 = vunpack.c.l.b16 %v328
    %v1355 = vunpack.c.h.b16 %v328
    %v1356 = vunpack.c.l.b16 %v329
    %v1357 = vunpack.c.h.b16 %v329
    %v1358 = vunpack.c.l.b16 %v330
    %v1359 = vunpack.c.h.b16 %v330
    %v1360 = vunpack.c.l.b16 %v331
    %v1361 = vunpack.c.h.b16 %v331
    %v1362 = vunpack.c.l.b16 %v332
    %v1363 = vunpack.c.h.b16 %v332
    %v1364 = vunpack.c.l.b16 %v333
    %v1365 = vunpack.c.h.b16 %v333
    %v1366 = vunpack.c.l.b16 %v334
    %v1367 = vunpack.c.h.b16 %v334
    %v1368 = vunpack.c.l.b16 %v335
    %v1369 = vunpack.c.h.b16 %v335
    %v1370 = vunpack.c.l.b16 %v336
    %v1371 = vunpack.c.h.b16 %v336
    %v1372 = vunpack.c.l.b16 %v337
    %v1373 = vunpack.c.h.b16 %v337
    %v1374 = vunpack.c.l.b16 %v338
    %v1375 = vunpack.c.h.b16 %v338
    %v1376 = vunpack.c.l.b16 %v339
    %v1377 = vunpack.c.h.b16 %v339
    %v1378 = vunpack.c.l.b16 %v340
    %v1379 = vunpack.c.h.b16 %v340
    %v1380 = vunpack.c.l.b16 %v341
    %v1381 = vunpack.c.h.b16 %v341
    %v1382 = vunpack.c.l.b16 %v342
    %v1383 = vunpack.c.h.b16 %v342
    %v1384 = vunpack.c.l.b16 %v343
    %v1385 = vunpack.c.h.b16 %v343
    %v1386 = vunpack.c.l.b16 %v344
    %v1387 = vunpack.c.h.b16 %v344
    %v1388 = vunpack.c.l.b16 %v345
    %v1389 = vunpack.c.h.b16 %v345
    %v1390 = vunpack.c.l.b16 %v346
    %v1391 = vunpack.c.h.b16 %v346
    %v1392 = vunpack.c.l.b16 %v347
    %v1393 = vunpack.c.h.b16 %v347
    %v1394 = vunpack.c.l.b16 %v348
    %v1395 = vunpack.c.h.b16 %v348
    %v1396 = vunpack.c.l.b16 %v349
    %v1397 = vunpack.c.h.b16 %v349
    %v1398 = vunpack.c.l.b16 %v350
    %v1399 = vunpack.c.h.b16 %v350
    %v1400 = vunpack.c.l.b16 %v351
    %v1401 = vunpack.c.h.b16 %v351
    %v1402 = vunpack.c.l.b16 %v352
    %v1403 = vunpack.c.h.b16 %v352
    %v1404 = vunpack.c.l.b16 %v353
    %v1405 = vunpack.c.h.b16 %v353
    %v1406 = vunpack.c.l.b16 %v354
    %v1407 = vunpack.c.h.b16 %v354
    %v1408 = vunpack.c.l.b16 %v355
    %v1409 = vunpack.c.h.b16 %v355
    %v1410 = vunpack.c.l.b16 %v356
    %v1411 = vunpack.c.h.b16 %v356
    %v1412 = vunpack.c.l.b16 %v357
    %v1413 = vunpack.c.h.b16 %v357
    %v1414 = vunpack.c.l.b16 %v358
    %v1415 = vunpack.c.h.b16 %v358
    %v1416 = vunpack.c.l.b16 %v359
    %v1417 = vunpack.c.h.b16 %v359
    %v1418 = vunpack.c.l.b16 %v360
    %v1419 = vunpack.c.h.b16 %v360
    %v1420 = vunpack.c.l.b16 %v361
    %v1421 = vunpack.c.h.b16 %v361
    %v1422 = vunpack.c.l.b16 %v362
    %v1423 = vunpack.c.h.b16 %v362
    %v1424 = vunpack.c.l.b16 %v363
    %v1425 = vunpack.c.h.b16 %v363
    %v1426 = vunpack.c.l.b16 %v364
    %v1427 = vunpack.c.h.b16 %v364
    %v1428 = vunpack.c.l.b16 %v365
    %v1429 = vunpack.c.h.b16 %v365
    %v1430 = vunpack.c.l.b16 %v366
    %v1431 = vunpack.c.h.b16 %v366
    %v1432 = vunpack.c.l.b16 %v367
    %v1433 = vunpack.c.h.b16 %v367
    %v1434 = vunpack.c.l.b16 %v368
    %v1435 = vunpack.c.h.b16 %v368
    %v1436 = vunpack.c.l.b16 %v369
    %v1437 = vunpack.c.h.b16 %v369
    %v1438 = vunpack.c.l.b16 %v370
    %v1439 = vunpack.c.h.b16 %v370
    %v1440 = vunpack.c.l.b16 %v371
    %v1441 = vunpack.c.h.b16 %v371
    %v1442 = vunpack.c.l.b16 %v372
    %v1443 = vunpack.c.h.b16 %v372
    %v1444 = vunpack.c.l.b16 %v373
    %v1445 = vunpack.c.h.b16 %v373
    %v1446 = vunpack.c.l.b16 %v374
    %v1447 = vunpack.c.h.b16 %v374
    %v1448 = vunpack.c.l.b16 %v375
    %v1449 = vunpack.c.h.b16 %v375
    %v1450 = vunpack.c.l.b16 %v376
    %v1451 = vunpack.c.h.b16 %v376
    %v1452 = vunpack.c.l.b16 %v377
    %v1453 = vunpack.c.h.b16 %v377
    %v1454 = vunpack.c.l.b16 %v378
    %v1455 = vunpack.c.h.b16 %v378
    %v1456 = vunpack.c.l.b16 %v379
    %v1457 = vunpack.c.h.b16 %v379
    %v1458 = vunpack.c.l.b16 %v380
    %v1459 = vunpack.c.h.b16 %v380
    %v1460 = vunpack.c.l.b16 %v381
    %v1461 = vunpack.c.h.b16 %v381
    %v1462 = vunpack.c.l.b16 %v382
    %v1463 = vunpack.c.h.b16 %v382
    %v1464 = vunpack.c.l.b16 %v383
    %v1465 = vunpack.c.h.b16 %v383
    %v1466 = vunpack.c.l.b16 %v384
    %v1467 = vunpack.c.h.b16 %v384
    %v1468 = vunpack.c.l.b16 %v385
    %v1469 = vunpack.c.h.b16 %v385
    %v1470 = vunpack.c.l.b16 %v386
    %v1471 = vunpack.c.h.b16 %v386
    %v1472 = vunpack.c.l.b16 %v387
    %v1473 = vunpack.c.h.b16 %v387
    %v1474 = vunpack.c.l.b16 %v388
    %v1475 = vunpack.c.h.b16 %v388
    %v1476 = vunpack.c.l.b16 %v389
    %v1477 = vunpack.c.h.b16 %v389
    %v1478 = vunpack.c.l.b16 %v390
    %v1479 = vunpack.c.h.b16 %v390
    %v1480 = vunpack.c.l.b16 %v391
    %v1481 = vunpack.c.h.b16 %v391
    %v1482 = vunpack.c.l.b16 %v392
    %v1483 = vunpack.c.h.b16 %v392
    %v1484 = vunpack.c.l.b16 %v393
    %v1485 = vunpack.c.h.b16 %v393
    %v1486 = vunpack.c.l.b16 %v394
    %v1487 = vunpack.c.h.b16 %v394
    %v1488 = vunpack.c.l.b16 %v395
    %v1489 = vunpack.c.h.b16 %v395
    %v1490 = vunpack.c.l.b16 %v396
    %v1491 = vunpack.c.h.b16 %v396
    %v1492 = vunpack.c.l.b16 %v397
    %v1493 = vunpack.c.h.b16 %v397
    %v1494 = vunpack.c.l.b16 %v398
    %v1495 = vunpack.c.h.b16 %v398
    %v1496 = vunpack.c.l.b16 %v399
    %v1497 = vunpack.c.h.b16 %v399
    %v1498 = vunpack.c.l.b16 %v400
    %v1499 = vunpack.c.h.b16 %v400
    %v1500 = vunpack.c.l.b16 %v401
    %v1501 = vunpack.c.h.b16 %v401
    %v1502 = vunpack.c.l.b16 %v402
    %v1503 = vunpack.c.h.b16 %v402
    %v1504 = vunpack.c.l.b16 %v403
    %v1505 = vunpack.c.h.b16 %v403
    %v1506 = vunpack.c.l.b16 %v404
    %v1507 = vunpack.c.h.b16 %v404
    %v1508 = vunpack.c.l.b16 %v405
    %v1509 = vunpack.c.h.b16 %v405
    %v1510 = vunpack.c.l.b16 %v406
    %v1511 = vunpack.c.h.b16 %v406
    %v1512 = vunpack.c.l.b16 %v407
    %v1513 = vunpack.c.h.b16 %v407
    %v1514 = vunpack.c.l.b16 %v408
    %v1515 = vunpack.c.h.b16 %v408
    %v1516 = vunpack.c.l.b16 %v409
    %v1517 = vunpack.c.h.b16 %v409
    %v1518 = vunpack.c.l.b16 %v410
    %v1519 = vunpack.c.h.b16 %v410
    %v1520 = vunpack.c.l.b16 %v411
    %v1521 = vunpack.c.h.b16 %v411
    %v1522 = vunpack.c.l.b16 %v412
    %v1523 = vunpack.c.h.b16 %v412
    %v1524 = vunpack.c.l.b16 %v413
    %v1525 = vunpack.c.h.b16 %v413
    %v1526 = vunpack.c.l.b16 %v414
    %v1527 = vunpack.c.h.b16 %v414
    %v1528 = vunpack.c.l.b16 %v415
    %v1529 = vunpack.c.h.b16 %v415
    %v1530 = vunpack.c.l.b16 %v416
    %v1531 = vunpack.c.h.b16 %v416
    %v1532 = vunpack.c.l.b16 %v417
    %v1533 = vunpack.c.h.b16 %v417
    %v1534 = vunpack.c.l.b16 %v418
    %v1535 = vunpack.c.h.b16 %v418
    %v1536 = vunpack.c.l.b16 %v419
    %v1537 = vunpack.c.h.b16 %v419
    %v1538 = vunpack.c.l.b16 %v420
    %v1539 = vunpack.c.h.b16 %v420
    %v1540 = vunpack.c.l.b16 %v421
    %v1541 = vunpack.c.h.b16 %v421
    %v1542 = vunpack.c.l.b16 %v422
    %v1543 = vunpack.c.h.b16 %v422
    %v1544 = vunpack.c.l.b16 %v423
    %v1545 = vunpack.c.h.b16 %v423
    %v1546 = vunpack.c.l.b16 %v424
    %v1547 = vunpack.c.h.b16 %v424
    %v1548 = vunpack.c.l.b16 %v425
    %v1549 = vunpack.c.h.b16 %v425
    %v1550 = vunpack.c.l.b16 %v426
    %v1551 = vunpack.c.h.b16 %v426
    %v1552 = vunpack.c.l.b16 %v427
    %v1553 = vunpack.c.h.b16 %v427
    %v1554 = vunpack.c.l.b16 %v428
    %v1555 = vunpack.c.h.b16 %v428
    %v1556 = vunpack.c.l.b16 %v429
    %v1557 = vunpack.c.h.b16 %v429
    %v1558 = vunpack.c.l.b16 %v430
    %v1559 = vunpack.c.h.b16 %v430
    %v1560 = vunpack.c.l.b16 %v431
    %v1561 = vunpack.c.h.b16 %v431
    %v1562 = vunpack.c.l.b16 %v432
    %v1563 = vunpack.c.h.b16 %v432
    %v1564 = vunpack.c.l.b16 %v433
    %v1565 = vunpack.c.h.b16 %v433
    %v1566 = vunpack.c.l.b16 %v434
    %v1567 = vunpack.c.h.b16 %v434
    %v1568 = vunpack.c.l.b16 %v435
    %v1569 = vunpack.c.h.b16 %v435
    %v1570 = vunpack.c.l.b16 %v436
    %v1571 = vunpack.c.h.b16 %v436
    %v1572 = vunpack.c.l.b16 %v437
    %v1573 = vunpack.c.h.b16 %v437
    %v1574 = vunpack.c.l.b16 %v438
    %v1575 = vunpack.c.h.b16 %v438
    %v1576 = vunpack.c.l.b16 %v439
    %v1577 = vunpack.c.h.b16 %v439
    %v1578 = vunpack.c.l.b16 %v440
    %v1579 = vunpack.c.h.b16 %v440
    %v1580 = vunpack.c.l.b16 %v441
    %v1581 = vunpack.c.h.b16 %v441
    %v1582 = vunpack.c.l.b16 %v442
    %v1583 = vunpack.c.h.b16 %v442
    %v1584 = vunpack.c.l.b16 %v443
    %v1585 = vunpack.c.h.b16 %v443
    %v1586 = vunpack.c.l.b16 %v444
    %v1587 = vunpack.c.h.b16 %v444
    %v1588 = vunpack.c.l.b16 %v445
    %v1589 = vunpack.c.h.b16 %v445
    %v1590 = vunpack.c.l.b16 %v446
    %v1591 = vunpack.c.h.b16 %v446
    %v1592 = vunpack.c.l.b16 %v447
    %v1593 = vunpack.c.h.b16 %v447
    %v1594 = vunpack.c.l.b16 %v448
    %v1595 = vunpack.c.h.b16 %v448
    %v1596 = vunpack.c.l.b16 %v449
    %v1597 = vunpack.c.h.b16 %v449
    %v1598 = vunpack.c.l.b16 %v450
    %v1599 = vunpack.c.h.b16 %v450
    %v1600 = vunpack.c.l.b16 %v451
    %v1601 = vunpack.c.h.b16 %v451
    %v1602 = vunpack.c.l.b16 %v452
    %v1603 = vunpack.c.h.b16 %v452
    %v1604 = vunpack.c.l.b16 %v453
    %v1605 = vunpack.c.h.b16 %v453
    %v1606 = vunpack.c.l.b16 %v454
    %v1607 = vunpack.c.h.b16 %v454
    %v1608 = vunpack.c.l.b16 %v455
    %v1609 = vunpack.c.h.b16 %v455
    %v1610 = vunpack.c.l.b16 %v456
    %v1611 = vunpack.c.h.b16 %v456
    %v1612 = vunpack.c.l.b16 %v457
    %v1613 = vunpack.c.h.b16 %v457
    %v1614 = vunpack.c.l.b16 %v458
    %v1615 = vunpack.c.h.b16 %v458
    %v1616 = vunpack.c.l.b16 %v459
    %v1617 = vunpack.c.h.b16 %v459
    %v1618 = vunpack.c.l.b16 %v460
    %v1619 = vunpack.c.h.b16 %v460
    %v1620 = vunpack.c.l.b16 %v461
    %v1621 = vunpack.c.h.b16 %v461
    %v1622 = vunpack.c.l.b16 %v462
    %v1623 = vunpack.c.h.b16 %v462
    %v1624 = vunpack.c.l.b16 %v463
    %v1625 = vunpack.c.h.b16 %v463
    %v1626 = vunpack.c.l.b16 %v464
    %v1627 = vunpack.c.h.b16 %v464
    %v1628 = vunpack.c.l.b16 %v465
    %v1629 = vunpack.c.h.b16 %v465
    %v1630 = vunpack.c.l.b16 %v466
    %v1631 = vunpack.c.h.b16 %v466
    %v1632 = vunpack.c.l.b16 %v467
    %v1633 = vunpack.c.h.b16 %v467
    %v1634 = vunpack.c.l.b16 %v468
    %v1635 = vunpack.c.h.b16 %v468
    %v1636 = vunpack.c.l.b16 %v469
    %v1637 = vunpack.c.h.b16 %v469
    %v1638 = vunpack.c.l.b16 %v470
    %v1639 = vunpack.c.h.b16 %v470
    %v1640 = vunpack.c.l.b16 %v471
    %v1641 = vunpack.c.h.b16 %v471
    %v1642 = vunpack.c.l.b16 %v472
    %v1643 = vunpack.c.h.b16 %v472
    %v1644 = vunpack.c.l.b16 %v473
    %v1645 = vunpack.c.h.b16 %v473
    %v1646 = vunpack.c.l.b16 %v474
    %v1647 = vunpack.c.h.b16 %v474
    %v1648 = vunpack.c.l.b16 %v475
    %v1649 = vunpack.c.h.b16 %v475
    %v1650 = vunpack.c.l.b16 %v476
    %v1651 = vunpack.c.h.b16 %v476
    %v1652 = vunpack.c.l.b16 %v477
    %v1653 = vunpack.c.h.b16 %v477
    %v1654 = vunpack.c.l.b16 %v478
    %v1655 = vunpack.c.h.b16 %v478
    %v1656 = vunpack.c.l.b16 %v479
    %v1657 = vunpack.c.h.b16 %v479
    %v1658 = vunpack.c.l.b16 %v480
    %v1659 = vunpack.c.h.b16 %v480
    %v1660 = vunpack.c.l.b16 %v481
    %v1661 = vunpack.c.h.b16 %v481
    %v1662 = vunpack.c.l.b16 %v482
    %v1663 = vunpack.c.h.b16 %v482
    %v1664 = vunpack.c.l.b16 %v483
    %v1665 = vunpack.c.h.b16 %v483
    %v1666 = vunpack.c.l.b16 %v484
    %v1667 = vunpack.c.h.b16 %v484
    %v1668 = vunpack.c.l.b16 %v485
    %v1669 = vunpack.c.h.b16 %v485
    %v1670 = vunpack.c.l.b16 %v486
    %v1671 = vunpack.c.h.b16 %v486
    %v1672 = vunpack.c.l.b16 %v487
    %v1673 = vunpack.c.h.b16 %v487
    %v1674 = vunpack.c.l.b16 %v488
    %v1675 = vunpack.c.h.b16 %v488
    %v1676 = vunpack.c.l.b16 %v489
    %v1677 = vunpack.c.h.b16 %v489
    %v1678 = vunpack.c.l.b16 %v490
    %v1679 = vunpack.c.h.b16 %v490
    %v1680 = vunpack.c.l.b16 %v491
    %v1681 = vunpack.c.h.b16 %v491
    %v1682 = vunpack.c.l.b16 %v492
    %v1683 = vunpack.c.h.b16 %v492
    %v1684 = vunpack.c.l.b16 %v493
    %v1685 = vunpack.c.h.b16 %v493
    %v1686 = vunpack.c.l.b16 %v494
    %v1687 = vunpack.c.h.b16 %v494
    %v1688 = vunpack.c.l.b16 %v495
    %v1689 = vunpack.c.h.b16 %v495
    %v1690 = vunpack.c.l.b16 %v496
    %v1691 = vunpack.c.h.b16 %v496
    %v1692 = vunpack.c.l.b16 %v497
    %v1693 = vunpack.c.h.b16 %v497
    %v1694 = vunpack.c.l.b16 %v498
    %v1695 = vunpack.c.h.b16 %v498
    %v1696 = vunpack.c.l.b16 %v499
    %v1697 = vunpack.c.h.b16 %v499
    %v1698 = vpack.c.b16 %v918, %v914
    %v1699 = vpack.c.b16 %v919, %v915
    %v1700 = vpack.c.b16 %v920, %v916
    %v1701 = vpack.c.b16 %v921, %v917
    %v1702 = vpack.c.b16 %v926, %v922
    %v1703 = vpack.c.b16 %v927, %v923
    %v1704 = vpack.c.b16 %v928, %v924
    %v1705 = vpack.c.b16 %v929, %v925
    %v1706 = vpack.c.b16 %v934, %v930
    %v1707 = vpack.c.b16 %v935, %v931
    %v1708 = vpack.c.b16 %v936, %v932
    %v1709 = vpack.c.b16 %v937, %v933
    %v1710 = vpack.c.b16 %v942, %v938
    %v1711 = vpack.c.b16 %v943, %v939
    %v1712 = vpack.c.b16 %v944, %v940
    %v1713 = vpack.c.b16 %v945, %v941
    %v1714 = vpack.c.b16 %v950, %v946
    %v1715 = vpack.c.b16 %v951, %v947
    %v1716 = vpack.c.b16 %v952, %v948
    %v1717 = vpack.c.b16 %v953, %v949
    %v1718 = vpack.c.b16 %v958, %v954
    %v1719 = vpack.c.b16 %v959, %v955
    %v1720 = vpack.c.b16 %v960, %v956
    %v1721 = vpack.c.b16 %v961, %v957
    %v1722 = vpack.c.b16 %v966, %v962
    %v1723 = vpack.c.b16 %v967, %v963
    %v1724 = vpack.c.b16 %v968, %v964
    %v1725 = vpack.c.b16 %v969, %v965
    %v1726 = vpack.c.b16 %v974, %v970
    %v1727 = vpack.c.b16 %v975, %v971
    %v1728 = vpack.c.b16 %v976, %v972
    %v1729 = vpack.c.b16 %v977, %v973
    %v1730 = vpack.c.b16 %v982, %v978
    %v1731 = vpack.c.b16 %v983, %v979
    %v1732 = vpack.c.b16 %v984, %v980
    %v1733 = vpack.c.b16 %v985, %v981
    %v1734 = vpack.c.b16 %v990, %v986
    %v1735 = vpack.c.b16 %v991, %v987
    %v1736 = vpack.c.b16 %v992, %v988
    %v1737 = vpack.c.b16 %v993, %v989
    %v1738 = vpack.c.b16 %v998, %v994
    %v1739 = vpack.c.b16 %v999, %v995
    %v1740 = vpack.c.b16 %v1000, %v996
    %v1741 = vpack.c.b16 %v1001, %v997
    %v1742 = vpack.c.b16 %v1006, %v1002
    %v1743 = vpack.c.b16 %v1007, %v1003
    %v1744 = vpack.c.b16 %v1008, %v1004
    %v1745 = vpack.c.b16 %v1009, %v1005
    %v1746 = vpack.c.b16 %v1014, %v1010
    %v1747 = vpack.c.b16 %v1015, %v1011
    %v1748 = vpack.c.b16 %v1016, %v1012
    %v1749 = vpack.c.b16 %v1017, %v1013
    %v1750 = vpack.c.b16 %v1022, %v1018
    %v1751 = vpack.c.b16 %v1023, %v1019
    %v1752 = vpack.c.b16 %v1024, %v1020
    %v1753 = vpack.c.b16 %v1025, %v1021
    %v1754 = vpack.c.b16 %v1030, %v1026
    %v1755 = vpack.c.b16 %v1031, %v1027
    %v1756 = vpack.c.b16 %v1032, %v1028
    %v1757 = vpack.c.b16 %v1033, %v1029
    %v1758 = vpack.c.b16 %v1038, %v1034
    %v1759 = vpack.c.b16 %v1039, %v1035
    %v1760 = vpack.c.b16 %v1040, %v1036
    %v1761 = vpack.c.b16 %v1041, %v1037
    %v1762 = vpack.c.b16 %v1046, %v1042
    %v1763 = vpack.c.b16 %v1047, %v1043
    %v1764 = vpack.c.b16 %v1048, %v1044
    %v1765 = vpack.c.b16 %v1049, %v1045
    %v1766 = vpack.c.b16 %v1054, %v1050
    %v1767 = vpack.c.b16 %v1055, %v1051
    %v1768 = vpack.c.b16 %v1056, %v1052
    %v1769 = vpack.c.b16 %v1057, %v1053
    %v1770 = vpack.c.b16 %v1062, %v1058
    %v1771 = vpack.c.b16 %v1063, %v1059
    %v1772 = vpack.c.b16 %v1064, %v1060
    %v1773 = vpack.c.b16 %v1065, %v1061
    %v1774 = vpack.c.b16 %v1070, %v1066
    %v1775 = vpack.c.b16 %v1071, %v1067
    %v1776 = vpack.c.b16 %v1072, %v1068
    %v1777 = vpack.c.b16 %v1073, %v1069
    %v1778 = vpack.c.b16 %v1078, %v1074
    %v1779 = vpack.c.b16 %v1079, %v1075
    %v1780 = vpack.c.b16 %v1080, %v1076
    %v1781 = vpack.c.b16 %v1081, %v1077
    %v1782 = vpack.c.b16 %v1086, %v1082
    %v1783 = vpack.c.b16 %v1087, %v1083
    %v1784 = vpack.c.b16 %v1088, %v1084
    %v1785 = vpack.c.b16 %v1089, %v1085
    %v1786 = vpack.c.b16 %v1094, %v1090
    %v1787 = vpack.c.b16 %v1095, %v1091
    %v1788 = vpack.c.b16 %v1096, %v1092
    %v1789 = vpack.c.b16 %v1097, %v1093
    %v1790 = vpack.c.b16 %v1102, %v1098
    %v1791 = vpack.c.b16 %v1103, %v1099
    %v1792 = vpack.c.b16 %v1104, %v1100
    %v1793 = vpack.c.b16 %v1105, %v1101
    %v1794 = vpack.c.b16 %v1110, %v1106
    %v1795 = vpack.c.b16 %v1111, %v1107
    %v1796 = vpack.c.b16 %v1112, %v1108
    %v1797 = vpack.c.b16 %v1113, %v1109
    %v1798 = vpack.c.b16 %v1118, %v1114
    %v1799 = vpack.c.b16 %v1119, %v1115
    %v1800 = vpack.c.b16 %v1120, %v1116
    %v1801 = vpack.c.b16 %v1121, %v1117
    %v1802 = vpack.c.b16 %v1126, %v1122
    %v1803 = vpack.c.b16 %v1127, %v1123
    %v1804 = vpack.c.b16 %v1128, %v1124
    %v1805 = vpack.c.b16 %v1129, %v1125
    %v1806 = vpack.c.b16 %v1134, %v1130
    %v1807 = vpack.c.b16 %v1135, %v1131
    %v1808 = vpack.c.b16 %v1136, %v1132
    %v1809 = vpack.c.b16 %v1137, %v1133
    %v1810 = vpack.c.b16 %v1142, %v1138
    %v1811 = vpack.c.b16 %v1143, %v1139
    %v1812 = vpack.c.b16 %v1144, %v1140
    %v1813 = vpack.c.b16 %v1145, %v1141
    %v1814 = vpack.c.b16 %v1150, %v1146
    %v1815 = vpack.c.b16 %v1151, %v1147
    %v1816 = vpack.c.b16 %v1152, %v1148
    %v1817 = vpack.c.b16 %v1153, %v1149
    %v1818 = vpack.c.b16 %v1158, %v1154
    %v1819 = vpack.c.b16 %v1159, %v1155
    %v1820 = vpack.c.b16 %v1160, %v1156
    %v1821 = vpack.c.b16 %v1161, %v1157
    %v1822 = vpack.c.b16 %v1166, %v1162
    %v1823 = vpack.c.b16 %v1167, %v1163
    %v1824 = vpack.c.b16 %v1168, %v1164
    %v1825 = vpack.c.b16 %v1169, %v1165
    %v1826 = vpack.c.b16 %v1174, %v1170
    %v1827 = vpack.c.b16 %v1175, %v1171
    %v1828 = vpack.c.b16 %v1176, %v1172
    %v1829 = vpack.c.b16 %v1177, %v1173
    %v1830 = vpack.c.b16 %v1182, %v1178
    %v1831 = vpack.c.b16 %v1183, %v1179
    %v1832 = vpack.c.b16 %v1184, %v1180
    %v1833 = vpack.c.b16 %v1185, %v1181
    %v1834 = vpack.c.b16 %v1190, %v1186
    %v1835 = vpack.c.b16 %v1191, %v1187
    %v1836 = vpack.c.b16 %v1192, %v1188
    %v1837 = vpack.c.b16 %v1193, %v1189
    %v1838 = vpack.c.b16 %v1198, %v1194
    %v1839 = vpack.c.b16 %v1199, %v1195
    %v1840 = vpack.c.b16 %v1200, %v1196
    %v1841 = vpack.c.b16 %v1201, %v1197
    %v1842 = vpack.c.b16 %v1206, %v1202
    %v1843 = vpack.c.b16 %v1207, %v1203
    %v1844 = vpack.c.b16 %v1208, %v1204
    %v1845 = vpack.c.b16 %v1209, %v1205
    %v1846 = vpack.c.b16 %v1214, %v1210
    %v1847 = vpack.c.b16 %v1215, %v1211
    %v1848 = vpack.c.b16 %v1216, %v1212
    %v1849 = vpack.c.b16 %v1217, %v1213
    %v1850 = vpack.c.b16 %v1222, %v1218
    %v1851 = vpack.c.b16 %v1223, %v1219
    %v1852 = vpack.c.b16 %v1224, %v1220
    %v1853 = vpack.c.b16 %v1225, %v1221
    %v1854 = vpack.c.b16 %v1230, %v1226
    %v1855 = vpack.c.b16 %v1231, %v1227
    %v1856 = vpack.c.b16 %v1232, %v1228
    %v1857 = vpack.c.b16 %v1233, %v1229
    %v1858 = vpack.c.b16 %v1238, %v1234
    %v1859 = vpack.c.b16 %v1239, %v1235
    %v1860 = vpack.c.b16 %v1240, %v1236
    %v1861 = vpack.c.b16 %v1241, %v1237
    %v1862 = vpack.c.b16 %v1246, %v1242
    %v1863 = vpack.c.b16 %v1247, %v1243
    %v1864 = vpack.c.b16 %v1248, %v1244
    %v1865 = vpack.c.b16 %v1249, %v1245
    %v1866 = vpack.c.b16 %v1254, %v1250
    %v1867 = vpack.c.b16 %v1255, %v1251
    %v1868 = vpack.c.b16 %v1256, %v1252
    %v1869 = vpack.c.b16 %v1257, %v1253
    %v1870 = vpack.c.b16 %v1262, %v1258
    %v1871 = vpack.c.b16 %v1263, %v1259
    %v1872 = vpack.c.b16 %v1264, %v1260
    %v1873 = vpack.c.b16 %v1265, %v1261
    %v1874 = vpack.c.b16 %v1270, %v1266
    %v1875 = vpack.c.b16 %v1271, %v1267
    %v1876 = vpack.c.b16 %v1272, %v1268
    %v1877 = vpack.c.b16 %v1273, %v1269
    %v1878 = vpack.c.b16 %v1278, %v1274
    %v1879 = vpack.c.b16 %v1279, %v1275
    %v1880 = vpack.c.b16 %v1280, %v1276
    %v1881 = vpack.c.b16 %v1281, %v1277
    %v1882 = vpack.c.b16 %v1286, %v1282
    %v1883 = vpack.c.b16 %v1287, %v1283
    %v1884 = vpack.c.b16 %v1288, %v1284
    %v1885 = vpack.c.b16 %v1289, %v1285
    %v1886 = vpack.c.b16 %v1294, %v1290
    %v1887 = vpack.c.b16 %v1295, %v1291
    %v1888 = vpack.c.b16 %v1296, %v1292
    %v1889 = vpack.c.b16 %v1297, %v1293
    %v1890 = vpack.c.b16 %v1302, %v1298
    %v1891 = vpack.c.b16 %v1303, %v1299
    %v1892 = vpack.c.b16 %v1304, %v1300
    %v1893 = vpack.c.b16 %v1305, %v1301
    %v1894 = vpack.c.b16 %v1310, %v1306
    %v1895 = vpack.c.b16 %v1311, %v1307
    %v1896 = vpack.c.b16 %v1312, %v1308
    %v1897 = vpack.c.b16 %v1313, %v1309
    %v1898 = vpack.c.b16 %v1318, %v1314
    %v1899 = vpack.c.b16 %v1319, %v1315
    %v1900 = vpack.c.b16 %v1320, %v1316
    %v1901 = vpack.c.b16 %v1321, %v1317
    %v1902 = vpack.c.b16 %v1326, %v1322
    %v1903 = vpack.c.b16 %v1327, %v1323
    %v1904 = vpack.c.b16 %v1328, %v1324
    %v1905 = vpack.c.b16 %v1329, %v1325
    %v1906 = vpack.c.b16 %v1334, %v1330
    %v1907 = vpack.c.b16 %v1335, %v1331
    %v1908 = vpack.c.b16 %v1336, %v1332
    %v1909 = vpack.c.b16 %v1337, %v1333
    %v1910 = vpack.c.b16 %v1342, %v1338
    %v1911 = vpack.c.b16 %v1343, %v1339
    %v1912 = vpack.c.b16 %v1344, %v1340
    %v1913 = vpack.c.b16 %v1345, %v1341
    %v1914 = vpack.c.b16 %v1350, %v1346
    %v1915 = vpack.c.b16 %v1351, %v1347
    %v1916 = vpack.c.b16 %v1352, %v1348
    %v1917 = vpack.c.b16 %v1353, %v1349
    %v1918 = vpack.c.b16 %v1358, %v1354
    %v1919 = vpack.c.b16 %v1359, %v1355
    %v1920 = vpack.c.b16 %v1360, %v1356
    %v1921 = vpack.c.b16 %v1361, %v1357
    %v1922 = vpack.c.b16 %v1366, %v1362
    %v1923 = vpack.c.b16 %v1367, %v1363
    %v1924 = vpack.c.b16 %v1368, %v1364
    %v1925 = vpack.c.b16 %v1369, %v1365
    %v1926 = vpack.c.b16 %v1374, %v1370
    %v1927 = vpack.c.b16 %v1375, %v1371
    %v1928 = vpack.c.b16 %v1376, %v1372
    %v1929 = vpack.c.b16 %v1377, %v1373
    %v1930 = vpack.c.b16 %v1382, %v1378
    %v1931 = vpack.c.b16 %v1383, %v1379
    %v1932 = vpack.c.b16 %v1384, %v1380
    %v1933 = vpack.c.b16 %v1385, %v1381
    %v1934 = vpack.c.b16 %v1390, %v1386
    %v1935 = vpack.c.b16 %v1391, %v1387
    %v1936 = vpack.c.b16 %v1392, %v1388
    %v1937 = vpack.c.b16 %v1393, %v1389
    %v1938 = vpack.c.b16 %v1398, %v1394
    %v1939 = vpack.c.b16 %v1399, %v1395
    %v1940 = vpack.c.b16 %v1400, %v1396
    %v1941 = vpack.c.b16 %v1401, %v1397
    %v1942 = vpack.c.b16 %v1406, %v1402
    %v1943 = vpack.c.b16 %v1407, %v1403
    %v1944 = vpack.c.b16 %v1408, %v1404
    %v1945 = vpack.c.b16 %v1409, %v1405
    %v1946 = vpack.c.b16 %v1414, %v1410
    %v1947 = vpack.c.b16 %v1415, %v1411
    %v1948 = vpack.c.b16 %v1416, %v1412
    %v1949 = vpack.c.b16 %v1417, %v1413
    %v1950 = vpack.c.b16 %v1422, %v1418
    %v1951 = vpack.c.b16 %v1423, %v1419
    %v1952 = vpack.c.b16 %v1424, %v1420
    %v1953 = vpack.c.b16 %v1425, %v1421
    %v1954 = vpack.c.b16 %v1430, %v1426
    %v1955 = vpack.c.b16 %v1431, %v1427
    %v1956 = vpack.c.b16 %v1432, %v1428
    %v1957 = vpack.c.b16 %v1433, %v1429
    %v1958 = vpack.c.b16 %v1438, %v1434
    %v1959 = vpack.c.b16 %v1439, %v1435
    %v1960 = vpack.c.b16 %v1440, %v1436
    %v1961 = vpack.c.b16 %v1441, %v1437
    %v1962 = vpack.c.b16 %v1446, %v1442
    %v1963 = vpack.c.b16 %v1447, %v1443
    %v1964 = vpack.c.b16 %v1448, %v1444
    %v1965 = vpack.c.b16 %v1449, %v1445
    %v1966 = vpack.c.b16 %v1454, %v1450
    %v1967 = vpack.c.b16 %v1455, %v1451
    %v1968 = vpack.c.b16 %v1456, %v1452
    %v1969 = vpack.c.b16 %v1457, %v1453
    %v1970 = vpack.c.b16 %v1462, %v1458
    %v1971 = vpack.c.b16 %v1463, %v1459
    %v1972 = vpack.c.b16 %v1464, %v1460
    %v1973 = vpack.c.b16 %v1465, %v1461
    %v1974 = vpack.c.b16 %v1470, %v1466
    %v1975 = vpack.c.b16 %v1471, %v1467
    %v1976 = vpack.c.b16 %v1472, %v1468
    %v1977 = vpack.c.b16 %v1473, %v1469
    %v1978 = vpack.c.b16 %v1478, %v1474
    %v1979 = vpack.c.b16 %v1479, %v1475
    %v1980 = vpack.c.b16 %v1480, %v1476
    %v1981 = vpack.c.b16 %v1481, %v1477
    %v1982 = vpack.c.b16 %v1486, %v1482
    %v1983 = vpack.c.b16 %v1487, %v1483
    %v1984 = vpack.c.b16 %v1488, %v1484
    %v1985 = vpack.c.b16 %v1489, %v1485
    %v1986 = vpack.c.b16 %v1494, %v1490
    %v1987 = vpack.c.b16 %v1495, %v1491
    %v1988 = vpack.c.b16 %v1496, %v1492
    %v1989 = vpack.c.b16 %v1497, %v1493
    %v1990 = vpack.c.b16 %v1502, %v1498
    %v1991 = vpack.c.b16 %v1503, %v1499
    %v1992 = vpack.c.b16 %v1504, %v1500
    %v1993 = vpack.c.b16 %v1505, %v1501
    %v1994 = vpack.c.b16 %v1510, %v1506
    %v1995 = vpack.c.b16 %v1511, %v1507
    %v1996 = vpack.c.b16 %v1512, %v1508
    %v1997 = vpack.c.b16 %v1513, %v1509
    %v1998 = vpack.c.b16 %v1518, %v1514
    %v1999 = vpack.c.b16 %v1519, %v1515
    %v2000 = vpack.c.b16 %v1520, %v1516
    %v2001 = vpack.c.b16 %v1521, %v1517
    %v2002 = vpack.c.b16 %v1526, %v1522
    %v2003 = vpack.c.b16 %v1527, %v1523
    %v2004 = vpack.c.b16 %v1528, %v1524
    %v2005 = vpack.c.b16 %v1529, %v1525
    %v2006 = vpack.c.b16 %v1534, %v1530
    %v2007 = vpack.c.b16 %v1535, %v1531
    %v2008 = vpack.c.b16 %v1536, %v1532
    %v2009 = vpack.c.b16 %v1537, %v1533
    %v2010 = vpack.c.b16 %v1542, %v1538
    %v2011 = vpack.c.b16 %v1543, %v1539
    %v2012 = vpack.c.b16 %v1544, %v1540
    %v2013 = vpack.c.b16 %v1545, %v1541
    %v2014 = vpack.c.b16 %v1550, %v1546
    %v2015 = vpack.c.b16 %v1551, %v1547
    %v2016 = vpack.c.b16 %v1552, %v1548
    %v2017 = vpack.c.b16 %v1553, %v1549
    %v2018 = vpack.c.b16 %v1558, %v1554
    %v2019 = vpack.c.b16 %v1559, %v1555
    %v2020 = vpack.c.b16 %v1560, %v1556
    %v2021 = vpack.c.b16 %v1561, %v1557
    %v2022 = vpack.c.b16 %v1566, %v1562
    %v2023 = vpack.c.b16 %v1567, %v1563
    %v2024 = vpack.c.b16 %v1568, %v1564
    %v2025 = vpack.c.b16 %v1569, %v1565
    %v2026 = vpack.c.b16 %v1574, %v1570
    %v2027 = vpack.c.b16 %v1575, %v1571
    %v2028 = vpack.c.b16 %v1576, %v1572
    %v2029 = vpack.c.b16 %v1577, %v1573
    %v2030 = vpack.c.b16 %v1582, %v1578
    %v2031 = vpack.c.b16 %v1583, %v1579
    %v2032 = vpack.c.b16 %v1584, %v1580
    %v2033 = vpack.c.b16 %v1585, %v1581
    %v2034 = vpack.c.b16 %v1590, %v1586
    %v2035 = vpack.c.b16 %v1591, %v1587
    %v2036 = vpack.c.b16 %v1592, %v1588
    %v2037 = vpack.c.b16 %v1593, %v1589
    %v2038 = vpack.c.b16 %v1598, %v1594
    %v2039 = vpack.c.b16 %v1599, %v1595
    %v2040 = vpack.c.b16 %v1600, %v1596
    %v2041 = vpack.c.b16 %v1601, %v1597
    %v2042 = vpack.c.b16 %v1606, %v1602
    %v2043 = vpack.c.b16 %v1607, %v1603
    %v2044 = vpack.c.b16 %v1608, %v1604
    %v2045 = vpack.c.b16 %v1609, %v1605
    %v2046 = vpack.c.b16 %v1614, %v1610
    %v2047 = vpack.c.b16 %v1615, %v1611
    %v2048 = vpack.c.b16 %v1616, %v1612
    %v2049 = vpack.c.b16 %v1617, %v1613
    %v2050 = vpack.c.b16 %v1622, %v1618
    %v2051 = vpack.c.b16 %v1623, %v1619
    %v2052 = vpack.c.b16 %v1624, %v1620
    %v2053 = vpack.c.b16 %v1625, %v1621
    %v2054 = vpack.c.b16 %v1630, %v1626
    %v2055 = vpack.c.b16 %v1631, %v1627
    %v2056 = vpack.c.b16 %v1632, %v1628
    %v2057 = vpack.c.b16 %v1633, %v1629
    %v2058 = vpack.c.b16 %v1638, %v1634
    %v2059 = vpack.c.b16 %v1639, %v1635
    %v2060 = vpack.c.b16 %v1640, %v1636
    %v2061 = vpack.c.b16 %v1641, %v1637
    %v2062 = vpack.c.b16 %v1646, %v1642
    %v2063 = vpack.c.b16 %v1647, %v1643
    %v2064 = vpack.c.b16 %v1648, %v1644
    %v2065 = vpack.c.b16 %v1649, %v1645
    %v2066 = vpack.c.b16 %v1654, %v1650
    %v2067 = vpack.c.b16 %v1655, %v1651
    %v2068 = vpack.c.b16 %v1656, %v1652
    %v2069 = vpack.c.b16 %v1657, %v1653
    %v2070 = vpack.c.b16 %v1662, %v1658
    %v2071 = vpack.c.b16 %v1663, %v1659
    %v2072 = vpack.c.b16 %v1664, %v1660
    %v2073 = vpack.c.b16 %v1665, %v1661
    %v2074 = vpack.c.b16 %v1670, %v1666
    %v2075 = vpack.c.b16 %v1671, %v1667
    %v2076 = vpack.c.b16 %v1672, %v1668
    %v2077 = vpack.c.b16 %v1673, %v1669
    %v2078 = vpack.c.b16 %v1678, %v1674
    %v2079 = vpack.c.b16 %v1679, %v1675
    %v2080 = vpack.c.b16 %v1680, %v1676
    %v2081 = vpack.c.b16 %v1681, %v1677
    %v2082 = vpack.c.b16 %v1686, %v1682
    %v2083 = vpack.c.b16 %v1687, %v1683
    %v2084 = vpack.c.b16 %v1688, %v1684
    %v2085 = vpack.c.b16 %v1689, %v1685
    %v2086 = vpack.c.b16 %v1694, %v1690
    %v2087 = vpack.c.b16 %v1695, %v1691
    %v2088 = vpack.c.b16 %v1696, %v1692
    %v2089 = vpack.c.b16 %v1697, %v1693
    %vm2482 = vcmask 261120
    %v2484 = vsel %vm2482, %v107, 0
    %2486 = vmatprep.subr.bf16.mxu0 %v1727
    %2487 = vmatpush1.bf16.msra.mxu0 %v1726
    %2488 = vmatprep.subr.bf16.mxu0 %v1723
    %2489 = vmatpush1.bf16.msra.mxu0 %v1722
    %2490 = vmatprep.subr.bf16.mxu0 %v1719
    %2491 = vmatpush1.bf16.msra.mxu0 %v1718
    %2492 = vmatprep.subr.bf16.mxu0 %v1715
    %2493 = vmatpush1.bf16.msra.mxu0 %v1714
    %2494 = vmatprep.subr.bf16.mxu0 %v1711
    %2495 = vmatpush1.bf16.msra.mxu0 %v1710
    %2496 = vmatprep.subr.bf16.mxu0 %v1707
    %2497 = vmatpush1.bf16.msra.mxu0 %v1706
    %2498 = vmatprep.subr.bf16.mxu0 %v1703
    %2499 = vmatpush1.bf16.msra.mxu0 %v1702
    %2500 = vmatprep.subr.bf16.mxu0 %v1699
    %2501 = vmatpush1.bf16.msra.mxu0 %v1698
    %2502 = vmatprep.subr.bf16.mxu0 %v1759
    %2503 = vmatpush2.bf16.msra.mxu0 %v1758
    %2504 = vmatprep.subr.bf16.mxu0 %v1755
    %2505 = vmatpush2.bf16.msra.mxu0 %v1754
    %2506 = vmatprep.subr.bf16.mxu0 %v1751
    %2507 = vmatpush2.bf16.msra.mxu0 %v1750
    %2508 = vmatprep.subr.bf16.mxu0 %v1747
    %2509 = vmatpush2.bf16.msra.mxu0 %v1746
    %2510 = vmatprep.subr.bf16.mxu0 %v1743
    %2511 = vmatpush2.bf16.msra.mxu0 %v1742
    %2512 = vmatprep.subr.bf16.mxu0 %v1739
    %2513 = vmatpush2.bf16.msra.mxu0 %v1738
    %2514 = vmatprep.subr.bf16.mxu0 %v1735
    %2515 = vmatpush2.bf16.msra.mxu0 %v1734
    %2516 = vmatprep.subr.bf16.mxu0 %v1731
    %2517 = vmatpush2.bf16.msra.mxu0 %v1730
    %2518 = vmatprep.mubr.bf16.mxu0 %v96
    %2519 = vmatmul.mubr.bf16.gmra.mxu0 %v95
    %v2520 = vpop.f32.mrf.mxu0
    %v2521 = vadd.f32 %v505, %v2520
    %v2522 = vpop.f32.mrf.mxu0
    %v2523 = vadd.f32 %v509, %v2522
    %v2524 = vpop.f32.mrf.mxu0
    %v2525 = vpop.f32.mrf.mxu0
    %2526 = vdwg.mxu0
    %2527 = vmatprep.subr.bf16.mxu0 %v1791
    %2528 = vmatpush1.bf16.msra.mxu0 %v1790
    %2529 = vmatprep.subr.bf16.mxu0 %v1787
    %2530 = vmatpush1.bf16.msra.mxu0 %v1786
    %2531 = vmatprep.subr.bf16.mxu0 %v1783
    %2532 = vmatpush1.bf16.msra.mxu0 %v1782
    %2533 = vmatprep.subr.bf16.mxu0 %v1779
    %2534 = vmatpush1.bf16.msra.mxu0 %v1778
    %2535 = vmatprep.subr.bf16.mxu0 %v1775
    %2536 = vmatpush1.bf16.msra.mxu0 %v1774
    %2537 = vmatprep.subr.bf16.mxu0 %v1771
    %2538 = vmatpush1.bf16.msra.mxu0 %v1770
    %2539 = vmatprep.subr.bf16.mxu0 %v1767
    %2540 = vmatpush1.bf16.msra.mxu0 %v1766
    %2541 = vmatprep.subr.bf16.mxu0 %v1763
    %2542 = vmatpush1.bf16.msra.mxu0 %v1762
    %2543 = vmatprep.subr.bf16.mxu0 %v1823
    %2544 = vmatpush2.bf16.msra.mxu0 %v1822
    %2545 = vmatprep.subr.bf16.mxu0 %v1819
    %2546 = vmatpush2.bf16.msra.mxu0 %v1818
    %2547 = vmatprep.subr.bf16.mxu0 %v1815
    %2548 = vmatpush2.bf16.msra.mxu0 %v1814
    %2549 = vmatprep.subr.bf16.mxu0 %v1811
    %2550 = vmatpush2.bf16.msra.mxu0 %v1810
    %2551 = vmatprep.subr.bf16.mxu0 %v1807
    %2552 = vmatpush2.bf16.msra.mxu0 %v1806
    %2553 = vmatprep.subr.bf16.mxu0 %v1803
    %2554 = vmatpush2.bf16.msra.mxu0 %v1802
    %2555 = vmatprep.subr.bf16.mxu0 %v1799
    %2556 = vmatpush2.bf16.msra.mxu0 %v1798
    %2557 = vmatprep.subr.bf16.mxu0 %v1795
    %2558 = vmatpush2.bf16.msra.mxu0 %v1794
    %2559 = vmatprep.mubr.bf16.mxu0 %v98
    %2560 = vmatmul.mubr.bf16.gmra.mxu0 %v97
    %v2561 = vpop.f32.mrf.mxu0
    %v2562 = vadd.f32 %v2521, %v2561
    %v2563 = vpop.f32.mrf.mxu0
    %v2564 = vadd.f32 %v2523, %v2563
    %v2565 = vpop.f32.mrf.mxu0
    %v2566 = vpop.f32.mrf.mxu0
    %2567 = vdwg.mxu0
    %2568 = vmatprep.subr.bf16.mxu0 %v1855
    %2569 = vmatpush1.bf16.msra.mxu0 %v1854
    %2570 = vmatprep.subr.bf16.mxu0 %v1851
    %2571 = vmatpush1.bf16.msra.mxu0 %v1850
    %2572 = vmatprep.subr.bf16.mxu0 %v1847
    %2573 = vmatpush1.bf16.msra.mxu0 %v1846
    %2574 = vmatprep.subr.bf16.mxu0 %v1843
    %2575 = vmatpush1.bf16.msra.mxu0 %v1842
    %2576 = vmatprep.subr.bf16.mxu0 %v1839
    %2577 = vmatpush1.bf16.msra.mxu0 %v1838
    %2578 = vmatprep.subr.bf16.mxu0 %v1835
    %2579 = vmatpush1.bf16.msra.mxu0 %v1834
    %2580 = vmatprep.subr.bf16.mxu0 %v1831
    %2581 = vmatpush1.bf16.msra.mxu0 %v1830
    %2582 = vmatprep.subr.bf16.mxu0 %v1827
    %2583 = vmatpush1.bf16.msra.mxu0 %v1826
    %2584 = vmatprep.subr.bf16.mxu0 %v1887
    %2585 = vmatpush2.bf16.msra.mxu0 %v1886
    %2586 = vmatprep.subr.bf16.mxu0 %v1883
    %2587 = vmatpush2.bf16.msra.mxu0 %v1882
    %2588 = vmatprep.subr.bf16.mxu0 %v1879
    %2589 = vmatpush2.bf16.msra.mxu0 %v1878
    %2590 = vmatprep.subr.bf16.mxu0 %v1875
    %2591 = vmatpush2.bf16.msra.mxu0 %v1874
    %2592 = vmatprep.subr.bf16.mxu0 %v1871
    %2593 = vmatpush2.bf16.msra.mxu0 %v1870
    %2594 = vmatprep.subr.bf16.mxu0 %v1867
    %2595 = vmatpush2.bf16.msra.mxu0 %v1866
    %2596 = vmatprep.subr.bf16.mxu0 %v1863
    %2597 = vmatpush2.bf16.msra.mxu0 %v1862
    %2598 = vmatprep.subr.bf16.mxu0 %v1859
    %2599 = vmatpush2.bf16.msra.mxu0 %v1858
    %2600 = vmatprep.mubr.bf16.mxu0 %v100
    %2601 = vmatmul.mubr.bf16.gmra.mxu0 %v99
    %v2602 = vpop.f32.mrf.mxu0
    %v2603 = vadd.f32 %v2562, %v2602
    %v2604 = vpop.f32.mrf.mxu0
    %v2605 = vadd.f32 %v2564, %v2604
    %v2606 = vpop.f32.mrf.mxu0
    %v2607 = vpop.f32.mrf.mxu0
    %2608 = vdwg.mxu0
    %2609 = vmatprep.subr.bf16.mxu0 %v1919
    %2610 = vmatpush1.bf16.msra.mxu0 %v1918
    %2611 = vmatprep.subr.bf16.mxu0 %v1915
    %2612 = vmatpush1.bf16.msra.mxu0 %v1914
    %2613 = vmatprep.subr.bf16.mxu0 %v1911
    %2614 = vmatpush1.bf16.msra.mxu0 %v1910
    %2615 = vmatprep.subr.bf16.mxu0 %v1907
    %2616 = vmatpush1.bf16.msra.mxu0 %v1906
    %2617 = vmatprep.subr.bf16.mxu0 %v1903
    %2618 = vmatpush1.bf16.msra.mxu0 %v1902
    %2619 = vmatprep.subr.bf16.mxu0 %v1899
    %2620 = vmatpush1.bf16.msra.mxu0 %v1898
    %2621 = vmatprep.subr.bf16.mxu0 %v1895
    %2622 = vmatpush1.bf16.msra.mxu0 %v1894
    %2623 = vmatprep.subr.bf16.mxu0 %v1891
    %2624 = vmatpush1.bf16.msra.mxu0 %v1890
    %2625 = vmatprep.subr.bf16.mxu0 %v1951
    %2626 = vmatpush2.bf16.msra.mxu0 %v1950
    %2627 = vmatprep.subr.bf16.mxu0 %v1947
    %2628 = vmatpush2.bf16.msra.mxu0 %v1946
    %2629 = vmatprep.subr.bf16.mxu0 %v1943
    %2630 = vmatpush2.bf16.msra.mxu0 %v1942
    %2631 = vmatprep.subr.bf16.mxu0 %v1939
    %2632 = vmatpush2.bf16.msra.mxu0 %v1938
    %2633 = vmatprep.subr.bf16.mxu0 %v1935
    %2634 = vmatpush2.bf16.msra.mxu0 %v1934
    %2635 = vmatprep.subr.bf16.mxu0 %v1931
    %2636 = vmatpush2.bf16.msra.mxu0 %v1930
    %2637 = vmatprep.subr.bf16.mxu0 %v1927
    %2638 = vmatpush2.bf16.msra.mxu0 %v1926
    %2639 = vmatprep.subr.bf16.mxu0 %v1923
    %2640 = vmatpush2.bf16.msra.mxu0 %v1922
    %2641 = vmatprep.mubr.bf16.mxu0 %v102
    %2642 = vmatmul.mubr.bf16.gmra.mxu0 %v101
    %v2643 = vpop.f32.mrf.mxu0
    %v2644 = vadd.f32 %v2603, %v2643
    %v2645 = vpop.f32.mrf.mxu0
    %v2646 = vadd.f32 %v2605, %v2645
    %v2647 = vpop.f32.mrf.mxu0
    %v2648 = vpop.f32.mrf.mxu0
    %2649 = vdwg.mxu0
    %2650 = vmatprep.subr.bf16.mxu0 %v1983
    %2651 = vmatpush1.bf16.msra.mxu0 %v1982
    %2652 = vmatprep.subr.bf16.mxu0 %v1979
    %2653 = vmatpush1.bf16.msra.mxu0 %v1978
    %2654 = vmatprep.subr.bf16.mxu0 %v1975
    %2655 = vmatpush1.bf16.msra.mxu0 %v1974
    %2656 = vmatprep.subr.bf16.mxu0 %v1971
    %2657 = vmatpush1.bf16.msra.mxu0 %v1970
    %2658 = vmatprep.subr.bf16.mxu0 %v1967
    %2659 = vmatpush1.bf16.msra.mxu0 %v1966
    %2660 = vmatprep.subr.bf16.mxu0 %v1963
    %2661 = vmatpush1.bf16.msra.mxu0 %v1962
    %2662 = vmatprep.subr.bf16.mxu0 %v1959
    %2663 = vmatpush1.bf16.msra.mxu0 %v1958
    %2664 = vmatprep.subr.bf16.mxu0 %v1955
    %2665 = vmatpush1.bf16.msra.mxu0 %v1954
    %2666 = vmatprep.subr.bf16.mxu0 %v2015
    %2667 = vmatpush2.bf16.msra.mxu0 %v2014
    %2668 = vmatprep.subr.bf16.mxu0 %v2011
    %2669 = vmatpush2.bf16.msra.mxu0 %v2010
    %2670 = vmatprep.subr.bf16.mxu0 %v2007
    %2671 = vmatpush2.bf16.msra.mxu0 %v2006
    %2672 = vmatprep.subr.bf16.mxu0 %v2003
    %2673 = vmatpush2.bf16.msra.mxu0 %v2002
    %2674 = vmatprep.subr.bf16.mxu0 %v1999
    %2675 = vmatpush2.bf16.msra.mxu0 %v1998
    %2676 = vmatprep.subr.bf16.mxu0 %v1995
    %2677 = vmatpush2.bf16.msra.mxu0 %v1994
    %2678 = vmatprep.subr.bf16.mxu0 %v1991
    %2679 = vmatpush2.bf16.msra.mxu0 %v1990
    %2680 = vmatprep.subr.bf16.mxu0 %v1987
    %2681 = vmatpush2.bf16.msra.mxu0 %v1986
    %2682 = vmatprep.mubr.bf16.mxu0 %v104
    %2683 = vmatmul.mubr.bf16.gmra.mxu0 %v103
    %v2684 = vpop.f32.mrf.mxu0
    %v2685 = vadd.f32 %v2644, %v2684
    %v2686 = vpop.f32.mrf.mxu0
    %v2687 = vadd.f32 %v2646, %v2686
    %v2688 = vpop.f32.mrf.mxu0
    %v2689 = vpop.f32.mrf.mxu0
    %2690 = vdwg.mxu0
    %2691 = vmatprep.subr.bf16.mxu0 %v2047
    %2692 = vmatpush1.bf16.msra.mxu0 %v2046
    %2693 = vmatprep.subr.bf16.mxu0 %v2043
    %2694 = vmatpush1.bf16.msra.mxu0 %v2042
    %2695 = vmatprep.subr.bf16.mxu0 %v2039
    %2696 = vmatpush1.bf16.msra.mxu0 %v2038
    %2697 = vmatprep.subr.bf16.mxu0 %v2035
    %2698 = vmatpush1.bf16.msra.mxu0 %v2034
    %2699 = vmatprep.subr.bf16.mxu0 %v2031
    %2700 = vmatpush1.bf16.msra.mxu0 %v2030
    %2701 = vmatprep.subr.bf16.mxu0 %v2027
    %2702 = vmatpush1.bf16.msra.mxu0 %v2026
    %2703 = vmatprep.subr.bf16.mxu0 %v2023
    %2704 = vmatpush1.bf16.msra.mxu0 %v2022
    %2705 = vmatprep.subr.bf16.mxu0 %v2019
    %2706 = vmatpush1.bf16.msra.mxu0 %v2018
    %2707 = vmatprep.subr.bf16.mxu0 %v2079
    %2708 = vmatpush2.bf16.msra.mxu0 %v2078
    %2709 = vmatprep.subr.bf16.mxu0 %v2075
    %2710 = vmatpush2.bf16.msra.mxu0 %v2074
    %2711 = vmatprep.subr.bf16.mxu0 %v2071
    %2712 = vmatpush2.bf16.msra.mxu0 %v2070
    %2713 = vmatprep.subr.bf16.mxu0 %v2067
    %2714 = vmatpush2.bf16.msra.mxu0 %v2066
    %2715 = vmatprep.subr.bf16.mxu0 %v2063
    %2716 = vmatpush2.bf16.msra.mxu0 %v2062
    %2717 = vmatprep.subr.bf16.mxu0 %v2059
    %2718 = vmatpush2.bf16.msra.mxu0 %v2058
    %2719 = vmatprep.subr.bf16.mxu0 %v2055
    %2720 = vmatpush2.bf16.msra.mxu0 %v2054
    %2721 = vmatprep.subr.bf16.mxu0 %v2051
    %2722 = vmatpush2.bf16.msra.mxu0 %v2050
    %2723 = vmatprep.mubr.bf16.mxu0 %v106
    %2724 = vmatmul.mubr.bf16.gmra.mxu0 %v105
    %v2725 = vpop.f32.mrf.mxu0
    %v2726 = vadd.f32 %v2685, %v2725
    %v2727 = vpop.f32.mrf.mxu0
    %v2728 = vadd.f32 %v2687, %v2727
    %v2729 = vpop.f32.mrf.mxu0
    %v2730 = vpop.f32.mrf.mxu0
    %2731 = vdwg.mxu0
    %2732 = vmatprep.subr.bf16.mxu0 0
    %2733 = vmatpush1.bf16.msra.mxu0 0
    %2734 = vmatprep.subr.bf16.mxu0 0
    %2735 = vmatpush1.bf16.msra.mxu0 0
    %2736 = vmatprep.subr.bf16.mxu0 0
    %2737 = vmatpush1.bf16.msra.mxu0 0
    %2738 = vmatprep.subr.bf16.mxu0 0
    %2739 = vmatpush1.bf16.msra.mxu0 0
    %2740 = vmatprep.subr.bf16.mxu0 0
    %2741 = vmatpush1.bf16.msra.mxu0 0
    %2742 = vmatprep.subr.bf16.mxu0 0
    %2743 = vmatpush1.bf16.msra.mxu0 0
    %2744 = vmatprep.subr.bf16.mxu0 %v2087
    %2745 = vmatpush1.bf16.msra.mxu0 %v2086
    %2746 = vmatprep.subr.bf16.mxu0 %v2083
    %2747 = vmatpush1.bf16.msra.mxu0 %v2082
    %2748 = vmatprep.subr.bf16.mxu0 0
    %2749 = vmatpush2.bf16.msra.mxu0 0
    %2750 = vmatprep.subr.bf16.mxu0 0
    %2751 = vmatpush2.bf16.msra.mxu0 0
    %2752 = vmatprep.subr.bf16.mxu0 0
    %2753 = vmatpush2.bf16.msra.mxu0 0
    %2754 = vmatprep.subr.bf16.mxu0 0
    %2755 = vmatpush2.bf16.msra.mxu0 0
    %2756 = vmatprep.subr.bf16.mxu0 0
    %2757 = vmatpush2.bf16.msra.mxu0 0
    %2758 = vmatprep.subr.bf16.mxu0 0
    %2759 = vmatpush2.bf16.msra.mxu0 0
    %2760 = vmatprep.subr.bf16.mxu0 0
    %2761 = vmatpush2.bf16.msra.mxu0 0
    %2762 = vmatprep.subr.bf16.mxu0 0
    %2763 = vmatpush2.bf16.msra.mxu0 0
    %2764 = vmatprep.mubr.bf16.mxu0 0
    %2765 = vmatmul.mubr.bf16.gmra.mxu0 %v2484
    %v2766 = vpop.f32.mrf.mxu0
    %v2767 = vadd.f32 %v2726, %v2766
    %v2768 = vpop.f32.mrf.mxu0
    %v2769 = vadd.f32 %v2728, %v2768
    %v2770 = vpop.f32.mrf.mxu0
    %v2771 = vpop.f32.mrf.mxu0
    %2772 = vdwg.mxu0
    %2773 = vmatprep.subr.bf16.mxu0 %v1729
    %2774 = vmatpush1.bf16.msra.mxu0 %v1728
    %2775 = vmatprep.subr.bf16.mxu0 %v1725
    %2776 = vmatpush1.bf16.msra.mxu0 %v1724
    %2777 = vmatprep.subr.bf16.mxu0 %v1721
    %2778 = vmatpush1.bf16.msra.mxu0 %v1720
    %2779 = vmatprep.subr.bf16.mxu0 %v1717
    %2780 = vmatpush1.bf16.msra.mxu0 %v1716
    %2781 = vmatprep.subr.bf16.mxu0 %v1713
    %2782 = vmatpush1.bf16.msra.mxu0 %v1712
    %2783 = vmatprep.subr.bf16.mxu0 %v1709
    %2784 = vmatpush1.bf16.msra.mxu0 %v1708
    %2785 = vmatprep.subr.bf16.mxu0 %v1705
    %2786 = vmatpush1.bf16.msra.mxu0 %v1704
    %2787 = vmatprep.subr.bf16.mxu0 %v1701
    %2788 = vmatpush1.bf16.msra.mxu0 %v1700
    %2789 = vmatprep.subr.bf16.mxu0 %v1761
    %2790 = vmatpush2.bf16.msra.mxu0 %v1760
    %2791 = vmatprep.subr.bf16.mxu0 %v1757
    %2792 = vmatpush2.bf16.msra.mxu0 %v1756
    %2793 = vmatprep.subr.bf16.mxu0 %v1753
    %2794 = vmatpush2.bf16.msra.mxu0 %v1752
    %2795 = vmatprep.subr.bf16.mxu0 %v1749
    %2796 = vmatpush2.bf16.msra.mxu0 %v1748
    %2797 = vmatprep.subr.bf16.mxu0 %v1745
    %2798 = vmatpush2.bf16.msra.mxu0 %v1744
    %2799 = vmatprep.subr.bf16.mxu0 %v1741
    %2800 = vmatpush2.bf16.msra.mxu0 %v1740
    %2801 = vmatprep.subr.bf16.mxu0 %v1737
    %2802 = vmatpush2.bf16.msra.mxu0 %v1736
    %2803 = vmatprep.subr.bf16.mxu0 %v1733
    %2804 = vmatpush2.bf16.msra.mxu0 %v1732
    %2805 = vmatprep.mubr.bf16.mxu0 %v96
    %2806 = vmatmul.mubr.bf16.gmra.mxu0 %v95
    %v2807 = vpop.f32.mrf.mxu0
    %v2808 = vadd.f32 %v513, %v2807
    %v2809 = vpop.f32.mrf.mxu0
    %v2810 = vadd.f32 %v517, %v2809
    %v2811 = vpop.f32.mrf.mxu0
    %v2812 = vpop.f32.mrf.mxu0
    %2813 = vdwg.mxu0
    %2814 = vmatprep.subr.bf16.mxu0 %v1793
    %2815 = vmatpush1.bf16.msra.mxu0 %v1792
    %2816 = vmatprep.subr.bf16.mxu0 %v1789
    %2817 = vmatpush1.bf16.msra.mxu0 %v1788
    %2818 = vmatprep.subr.bf16.mxu0 %v1785
    %2819 = vmatpush1.bf16.msra.mxu0 %v1784
    %2820 = vmatprep.subr.bf16.mxu0 %v1781
    %2821 = vmatpush1.bf16.msra.mxu0 %v1780
    %2822 = vmatprep.subr.bf16.mxu0 %v1777
    %2823 = vmatpush1.bf16.msra.mxu0 %v1776
    %2824 = vmatprep.subr.bf16.mxu0 %v1773
    %2825 = vmatpush1.bf16.msra.mxu0 %v1772
    %2826 = vmatprep.subr.bf16.mxu0 %v1769
    %2827 = vmatpush1.bf16.msra.mxu0 %v1768
    %2828 = vmatprep.subr.bf16.mxu0 %v1765
    %2829 = vmatpush1.bf16.msra.mxu0 %v1764
    %2830 = vmatprep.subr.bf16.mxu0 %v1825
    %2831 = vmatpush2.bf16.msra.mxu0 %v1824
    %2832 = vmatprep.subr.bf16.mxu0 %v1821
    %2833 = vmatpush2.bf16.msra.mxu0 %v1820
    %2834 = vmatprep.subr.bf16.mxu0 %v1817
    %2835 = vmatpush2.bf16.msra.mxu0 %v1816
    %2836 = vmatprep.subr.bf16.mxu0 %v1813
    %2837 = vmatpush2.bf16.msra.mxu0 %v1812
    %2838 = vmatprep.subr.bf16.mxu0 %v1809
    %2839 = vmatpush2.bf16.msra.mxu0 %v1808
    %2840 = vmatprep.subr.bf16.mxu0 %v1805
    %2841 = vmatpush2.bf16.msra.mxu0 %v1804
    %2842 = vmatprep.subr.bf16.mxu0 %v1801
    %2843 = vmatpush2.bf16.msra.mxu0 %v1800
    %2844 = vmatprep.subr.bf16.mxu0 %v1797
    %2845 = vmatpush2.bf16.msra.mxu0 %v1796
    %2846 = vmatprep.mubr.bf16.mxu0 %v98
    %2847 = vmatmul.mubr.bf16.gmra.mxu0 %v97
    %v2848 = vpop.f32.mrf.mxu0
    %v2849 = vadd.f32 %v2808, %v2848
    %v2850 = vpop.f32.mrf.mxu0
    %v2851 = vadd.f32 %v2810, %v2850
    %v2852 = vpop.f32.mrf.mxu0
    %v2853 = vpop.f32.mrf.mxu0
    %2854 = vdwg.mxu0
    %2855 = vmatprep.subr.bf16.mxu0 %v1857
    %2856 = vmatpush1.bf16.msra.mxu0 %v1856
    %2857 = vmatprep.subr.bf16.mxu0 %v1853
    %2858 = vmatpush1.bf16.msra.mxu0 %v1852
    %2859 = vmatprep.subr.bf16.mxu0 %v1849
    %2860 = vmatpush1.bf16.msra.mxu0 %v1848
    %2861 = vmatprep.subr.bf16.mxu0 %v1845
    %2862 = vmatpush1.bf16.msra.mxu0 %v1844
    %2863 = vmatprep.subr.bf16.mxu0 %v1841
    %2864 = vmatpush1.bf16.msra.mxu0 %v1840
    %2865 = vmatprep.subr.bf16.mxu0 %v1837
    %2866 = vmatpush1.bf16.msra.mxu0 %v1836
    %2867 = vmatprep.subr.bf16.mxu0 %v1833
    %2868 = vmatpush1.bf16.msra.mxu0 %v1832
    %2869 = vmatprep.subr.bf16.mxu0 %v1829
    %2870 = vmatpush1.bf16.msra.mxu0 %v1828
    %2871 = vmatprep.subr.bf16.mxu0 %v1889
    %2872 = vmatpush2.bf16.msra.mxu0 %v1888
    %2873 = vmatprep.subr.bf16.mxu0 %v1885
    %2874 = vmatpush2.bf16.msra.mxu0 %v1884
    %2875 = vmatprep.subr.bf16.mxu0 %v1881
    %2876 = vmatpush2.bf16.msra.mxu0 %v1880
    %2877 = vmatprep.subr.bf16.mxu0 %v1877
    %2878 = vmatpush2.bf16.msra.mxu0 %v1876
    %2879 = vmatprep.subr.bf16.mxu0 %v1873
    %2880 = vmatpush2.bf16.msra.mxu0 %v1872
    %2881 = vmatprep.subr.bf16.mxu0 %v1869
    %2882 = vmatpush2.bf16.msra.mxu0 %v1868
    %2883 = vmatprep.subr.bf16.mxu0 %v1865
    %2884 = vmatpush2.bf16.msra.mxu0 %v1864
    %2885 = vmatprep.subr.bf16.mxu0 %v1861
    %2886 = vmatpush2.bf16.msra.mxu0 %v1860
    %2887 = vmatprep.mubr.bf16.mxu0 %v100
    %2888 = vmatmul.mubr.bf16.gmra.mxu0 %v99
    %v2889 = vpop.f32.mrf.mxu0
    %v2890 = vadd.f32 %v2849, %v2889
    %v2891 = vpop.f32.mrf.mxu0
    %v2892 = vadd.f32 %v2851, %v2891
    %v2893 = vpop.f32.mrf.mxu0
    %v2894 = vpop.f32.mrf.mxu0
    %2895 = vdwg.mxu0
    %2896 = vmatprep.subr.bf16.mxu0 %v1921
    %2897 = vmatpush1.bf16.msra.mxu0 %v1920
    %2898 = vmatprep.subr.bf16.mxu0 %v1917
    %2899 = vmatpush1.bf16.msra.mxu0 %v1916
    %2900 = vmatprep.subr.bf16.mxu0 %v1913
    %2901 = vmatpush1.bf16.msra.mxu0 %v1912
    %2902 = vmatprep.subr.bf16.mxu0 %v1909
    %2903 = vmatpush1.bf16.msra.mxu0 %v1908
    %2904 = vmatprep.subr.bf16.mxu0 %v1905
    %2905 = vmatpush1.bf16.msra.mxu0 %v1904
    %2906 = vmatprep.subr.bf16.mxu0 %v1901
    %2907 = vmatpush1.bf16.msra.mxu0 %v1900
    %2908 = vmatprep.subr.bf16.mxu0 %v1897
    %2909 = vmatpush1.bf16.msra.mxu0 %v1896
    %2910 = vmatprep.subr.bf16.mxu0 %v1893
    %2911 = vmatpush1.bf16.msra.mxu0 %v1892
    %2912 = vmatprep.subr.bf16.mxu0 %v1953
    %2913 = vmatpush2.bf16.msra.mxu0 %v1952
    %2914 = vmatprep.subr.bf16.mxu0 %v1949
    %2915 = vmatpush2.bf16.msra.mxu0 %v1948
    %2916 = vmatprep.subr.bf16.mxu0 %v1945
    %2917 = vmatpush2.bf16.msra.mxu0 %v1944
    %2918 = vmatprep.subr.bf16.mxu0 %v1941
    %2919 = vmatpush2.bf16.msra.mxu0 %v1940
    %2920 = vmatprep.subr.bf16.mxu0 %v1937
    %2921 = vmatpush2.bf16.msra.mxu0 %v1936
    %2922 = vmatprep.subr.bf16.mxu0 %v1933
    %2923 = vmatpush2.bf16.msra.mxu0 %v1932
    %2924 = vmatprep.subr.bf16.mxu0 %v1929
    %2925 = vmatpush2.bf16.msra.mxu0 %v1928
    %2926 = vmatprep.subr.bf16.mxu0 %v1925
    %2927 = vmatpush2.bf16.msra.mxu0 %v1924
    %2928 = vmatprep.mubr.bf16.mxu0 %v102
    %2929 = vmatmul.mubr.bf16.gmra.mxu0 %v101
    %v2930 = vpop.f32.mrf.mxu0
    %v2931 = vadd.f32 %v2890, %v2930
    %v2932 = vpop.f32.mrf.mxu0
    %v2933 = vadd.f32 %v2892, %v2932
    %v2934 = vpop.f32.mrf.mxu0
    %v2935 = vpop.f32.mrf.mxu0
    %2936 = vdwg.mxu0
    %2937 = vmatprep.subr.bf16.mxu0 %v1985
    %2938 = vmatpush1.bf16.msra.mxu0 %v1984
    %2939 = vmatprep.subr.bf16.mxu0 %v1981
    %2940 = vmatpush1.bf16.msra.mxu0 %v1980
    %2941 = vmatprep.subr.bf16.mxu0 %v1977
    %2942 = vmatpush1.bf16.msra.mxu0 %v1976
    %2943 = vmatprep.subr.bf16.mxu0 %v1973
    %2944 = vmatpush1.bf16.msra.mxu0 %v1972
    %2945 = vmatprep.subr.bf16.mxu0 %v1969
    %2946 = vmatpush1.bf16.msra.mxu0 %v1968
    %2947 = vmatprep.subr.bf16.mxu0 %v1965
    %2948 = vmatpush1.bf16.msra.mxu0 %v1964
    %2949 = vmatprep.subr.bf16.mxu0 %v1961
    %2950 = vmatpush1.bf16.msra.mxu0 %v1960
    %2951 = vmatprep.subr.bf16.mxu0 %v1957
    %2952 = vmatpush1.bf16.msra.mxu0 %v1956
    %2953 = vmatprep.subr.bf16.mxu0 %v2017
    %2954 = vmatpush2.bf16.msra.mxu0 %v2016
    %2955 = vmatprep.subr.bf16.mxu0 %v2013
    %2956 = vmatpush2.bf16.msra.mxu0 %v2012
    %2957 = vmatprep.subr.bf16.mxu0 %v2009
    %2958 = vmatpush2.bf16.msra.mxu0 %v2008
    %2959 = vmatprep.subr.bf16.mxu0 %v2005
    %2960 = vmatpush2.bf16.msra.mxu0 %v2004
    %2961 = vmatprep.subr.bf16.mxu0 %v2001
    %2962 = vmatpush2.bf16.msra.mxu0 %v2000
    %2963 = vmatprep.subr.bf16.mxu0 %v1997
    %2964 = vmatpush2.bf16.msra.mxu0 %v1996
    %2965 = vmatprep.subr.bf16.mxu0 %v1993
    %2966 = vmatpush2.bf16.msra.mxu0 %v1992
    %2967 = vmatprep.subr.bf16.mxu0 %v1989
    %2968 = vmatpush2.bf16.msra.mxu0 %v1988
    %2969 = vmatprep.mubr.bf16.mxu0 %v104
    %2970 = vmatmul.mubr.bf16.gmra.mxu0 %v103
    %v2971 = vpop.f32.mrf.mxu0
    %v2972 = vadd.f32 %v2931, %v2971
    %v2973 = vpop.f32.mrf.mxu0
    %v2974 = vadd.f32 %v2933, %v2973
    %v2975 = vpop.f32.mrf.mxu0
    %v2976 = vpop.f32.mrf.mxu0
    %2977 = vdwg.mxu0
    %2978 = vmatprep.subr.bf16.mxu0 %v2049
    %2979 = vmatpush1.bf16.msra.mxu0 %v2048
    %2980 = vmatprep.subr.bf16.mxu0 %v2045
    %2981 = vmatpush1.bf16.msra.mxu0 %v2044
    %2982 = vmatprep.subr.bf16.mxu0 %v2041
    %2983 = vmatpush1.bf16.msra.mxu0 %v2040
    %2984 = vmatprep.subr.bf16.mxu0 %v2037
    %2985 = vmatpush1.bf16.msra.mxu0 %v2036
    %2986 = vmatprep.subr.bf16.mxu0 %v2033
    %2987 = vmatpush1.bf16.msra.mxu0 %v2032
    %2988 = vmatprep.subr.bf16.mxu0 %v2029
    %2989 = vmatpush1.bf16.msra.mxu0 %v2028
    %2990 = vmatprep.subr.bf16.mxu0 %v2025
    %2991 = vmatpush1.bf16.msra.mxu0 %v2024
    %2992 = vmatprep.subr.bf16.mxu0 %v2021
    %2993 = vmatpush1.bf16.msra.mxu0 %v2020
    %2994 = vmatprep.subr.bf16.mxu0 %v2081
    %2995 = vmatpush2.bf16.msra.mxu0 %v2080
    %2996 = vmatprep.subr.bf16.mxu0 %v2077
    %2997 = vmatpush2.bf16.msra.mxu0 %v2076
    %2998 = vmatprep.subr.bf16.mxu0 %v2073
    %2999 = vmatpush2.bf16.msra.mxu0 %v2072
    %3000 = vmatprep.subr.bf16.mxu0 %v2069
    %3001 = vmatpush2.bf16.msra.mxu0 %v2068
    %3002 = vmatprep.subr.bf16.mxu0 %v2065
    %3003 = vmatpush2.bf16.msra.mxu0 %v2064
    %3004 = vmatprep.subr.bf16.mxu0 %v2061
    %3005 = vmatpush2.bf16.msra.mxu0 %v2060
    %3006 = vmatprep.subr.bf16.mxu0 %v2057
    %3007 = vmatpush2.bf16.msra.mxu0 %v2056
    %3008 = vmatprep.subr.bf16.mxu0 %v2053
    %3009 = vmatpush2.bf16.msra.mxu0 %v2052
    %3010 = vmatprep.mubr.bf16.mxu0 %v106
    %3011 = vmatmul.mubr.bf16.gmra.mxu0 %v105
    %v3012 = vpop.f32.mrf.mxu0
    %v3013 = vadd.f32 %v2972, %v3012
    %v3014 = vpop.f32.mrf.mxu0
    %v3015 = vadd.f32 %v2974, %v3014
    %v3016 = vpop.f32.mrf.mxu0
    %v3017 = vpop.f32.mrf.mxu0
    %3018 = vdwg.mxu0
    %3019 = vmatprep.subr.bf16.mxu0 0
    %3020 = vmatpush1.bf16.msra.mxu0 0
    %3021 = vmatprep.subr.bf16.mxu0 0
    %3022 = vmatpush1.bf16.msra.mxu0 0
    %3023 = vmatprep.subr.bf16.mxu0 0
    %3024 = vmatpush1.bf16.msra.mxu0 0
    %3025 = vmatprep.subr.bf16.mxu0 0
    %3026 = vmatpush1.bf16.msra.mxu0 0
    %3027 = vmatprep.subr.bf16.mxu0 0
    %3028 = vmatpush1.bf16.msra.mxu0 0
    %3029 = vmatprep.subr.bf16.mxu0 0
    %3030 = vmatpush1.bf16.msra.mxu0 0
    %3031 = vmatprep.subr.bf16.mxu0 %v2089
    %3032 = vmatpush1.bf16.msra.mxu0 %v2088
    %3033 = vmatprep.subr.bf16.mxu0 %v2085
    %3034 = vmatpush1.bf16.msra.mxu0 %v2084
    %3035 = vmatprep.subr.bf16.mxu0 0
    %3036 = vmatpush2.bf16.msra.mxu0 0
    %3037 = vmatprep.subr.bf16.mxu0 0
    %3038 = vmatpush2.bf16.msra.mxu0 0
    %3039 = vmatprep.subr.bf16.mxu0 0
    %3040 = vmatpush2.bf16.msra.mxu0 0
    %3041 = vmatprep.subr.bf16.mxu0 0
    %3042 = vmatpush2.bf16.msra.mxu0 0
    %3043 = vmatprep.subr.bf16.mxu0 0
    %3044 = vmatpush2.bf16.msra.mxu0 0
    %3045 = vmatprep.subr.bf16.mxu0 0
    %3046 = vmatpush2.bf16.msra.mxu0 0
    %3047 = vmatprep.subr.bf16.mxu0 0
    %3048 = vmatpush2.bf16.msra.mxu0 0
    %3049 = vmatprep.subr.bf16.mxu0 0
    %3050 = vmatpush2.bf16.msra.mxu0 0
    %3051 = vmatprep.mubr.bf16.mxu0 0
    %3052 = vmatmul.mubr.bf16.gmra.mxu0 %v2484
    %v3053 = vpop.f32.mrf.mxu0
    %v3054 = vadd.f32 %v3013, %v3053
    %v3055 = vpop.f32.mrf.mxu0
    %v3056 = vadd.f32 %v3015, %v3055
    %v3057 = vpop.f32.mrf.mxu0
    %v3058 = vpop.f32.mrf.mxu0
    %3059 = vdwg.mxu0
    %v3060 = vmax.f32 %v2767, 0.0
    %v3061 = vmax.f32 %v2769, 0.0
    %v3062 = vmax.f32 %v3054, 0.0
    %v3063 = vmax.f32 %v3056, 0.0
    %v3068 = vcombine.low %v3060, %v3061
    %v3069 = vcombine.low %v3062, %v3063
    %v3071 = vunpack.c.l.s4 1983009808
    %v3072 = vunpack.c.0.s8 %v3071
    %v3073 = vlaneseq
    %v3074 = vshrl.u32 %v3073, 7
    %v3075 = vsub.s32 %v3072, %v3074
    %v3076 = vrot.slane %v3068, %v3075
    %v3078 = vunpack.c.l.s4 1983009808
    %v3079 = vunpack.c.0.s8 %v3078
    %v3080 = vlaneseq
    %v3081 = vshrl.u32 %v3080, 7
    %v3082 = vsub.s32 %v3079, %v3081
    %v3083 = vrot.slane %v3069, %v3082
    %v3084 = vcombine.low %v3076, %v3083
    %3086 = vst [vmem:[#allocation2] sm:$0xff] %v3084
    // Predicated region
    $region14: #{deepmind_forward.7} parent=1 // pred_check
      _
    $region15: #{deepmind_forward.7} parent=1 // pred_check_branch
      %3088 = sbr.rel (0) target = $region17
    $region16: #{deepmind_forward.7} parent=1 // pred_region
      %s3090 = ssub.s32 128, 128
      %3091 = vsyncadd [#allocation3], %s3090
      %s3093 = sshll.u32 [#allocation2], 4
      %s3094 = int_to_ptr.vmem [resolvable:$true] %s3093
      %3096 = dma.vmem_to_hbm [thread:$0]  %s3094, 128, %s3, [#allocation3]
    $region17: #{deepmind_forward.7} parent=1 // pred_fallthru
      _
    // Predicated region
    $region18: #{deepmind_forward.7} parent=1 // pred_check
      _
    $region19: #{deepmind_forward.7} parent=1 // pred_check_branch
      %3098 = sbr.rel (0) target = $region21
    $region20: #{deepmind_forward.7} parent=1 // pred_region
      %3099 = dma.done [#allocation3], 128
    $region21: #{deepmind_forward.7} parent=1 // pred_fallthru
      _
    %3100 = vsyncpa [#allocation3], 1

</llo_original>
